<compile_context>
chip_gen: v6e
topology: v6e:2x2x1
jax: 0.10.0
libtpu: 0.0.40
codegen_flags: <defaults>
</compile_context>

<pallas_src>
import functools

import jax
import jax.numpy as jnp
from jax.experimental import pallas as pl
from jax.experimental.pallas import tpu as pltpu

_HIGH = jax.lax.Precision.HIGHEST


def _f32_bytes(*shapes):
    total = 0
    for s in shapes:
        n = 1
        for d in s:
            n *= int(d)
        total += 4 * n
    return total


def _head(h_n, w1, b1):
    """linear1 + tanh.  w1 is (A, H) PyTorch layout."""
    A = w1.shape[0]
    if A == 1:
        # VPU multiply + cross-lane reduce; avoids an (B,H)@(H,1) MXU matmul
        # that would produce 1 useful lane.
        z = jnp.sum(h_n * w1, axis=-1, keepdims=True)
    else:
        z = jax.lax.dot_general(h_n, w1, (((1,), (1,)), ((), ())),
                                preferred_element_type=jnp.float32,
                                precision=_HIGH)
    return jnp.tanh(z + b1)


def _lstm_cell(x, h0, c0, w_ih_t, w_hh_t, b):
    """One LSTM step, gate order i,f,g,o.  All operands already in VMEM."""
    H = h0.shape[1]
    gates = (jnp.dot(x, w_ih_t, preferred_element_type=jnp.float32,
                     precision=_HIGH)
             + jnp.dot(h0, w_hh_t, preferred_element_type=jnp.float32,
                       precision=_HIGH)
             + b)                                            # (B, 4H)
    i_g = jax.nn.sigmoid(gates[:, 0 * H:1 * H])
    f_g = jax.nn.sigmoid(gates[:, 1 * H:2 * H])
    g_g = jnp.tanh(gates[:, 2 * H:3 * H])
    o_g = jax.nn.sigmoid(gates[:, 3 * H:4 * H])
    c_n = f_g * c0 + i_g * g_g
    h_n = o_g * jnp.tanh(c_n)
    return h_n, c_n


# -----------------------------------------------------------------------------
# Rollout kernel: T policy steps in ONE pallas_call (grid=(T,), "arbitrary").
# Weights stay VMEM-resident across the grid; h/c live in the resident output
# blocks (their index_map is constant, so they are written back to HBM once).
# -----------------------------------------------------------------------------
def _rollout_kernel(x_ref, w_ih_t_ref, w_hh_t_ref, b_ref, w1_ref, b1_ref,
                    act_ref, hn_ref, cn_ref):
    @pl.when(pl.program_id(0) == 0)
    def _():
        hn_ref[...] = jnp.zeros_like(hn_ref)
        cn_ref[...] = jnp.zeros_like(cn_ref)

    h_n, c_n = _lstm_cell(x_ref[...], hn_ref[...], cn_ref[...],
                          w_ih_t_ref[...], w_hh_t_ref[...], b_ref[...])
    hn_ref[...] = h_n
    cn_ref[...] = c_n
    act_ref[...] = _head(h_n, w1_ref[...], b1_ref[...])


@jax.jit
def lstm_policy_rollout(xs, params):
    """Run T policy steps (first step = begin_sequence=True, rest recurrent)
    inside a single pallas_call.  xs: (T, B, state_dim).
    Returns (actions (T,B,A), h_n (B,H), c_n (B,H))."""
    T, B, S = xs.shape
    A, H = params["w1"].shape

    flops = T * (2 * B * S * 4 * H + 2 * B * H * 4 * H + 12 * B * H
                 + 2 * B * H * A)
    transcendentals = T * B * (5 * H + A)
    bytes_accessed = _f32_bytes((T, B, S), (S, 4 * H), (H, 4 * H),
                                (1, 4 * H), (A, H), (1, A),
                                (T, B, A), (B, H), (B, H))

    acts, h_n, c_n = pl.pallas_call(
        _rollout_kernel,
        grid=(T,),
        in_specs=[
            pl.BlockSpec((None, B, S), lambda t: (t, 0, 0)),      # per-step x
            pl.BlockSpec((S, 4 * H), lambda t: (0, 0)),           # resident
            pl.BlockSpec((H, 4 * H), lambda t: (0, 0)),           # resident
            pl.BlockSpec((1, 4 * H), lambda t: (0, 0)),           # resident
            pl.BlockSpec((A, H), lambda t: (0, 0)),               # resident
            pl.BlockSpec((1, A), lambda t: (0, 0)),               # resident
        ],
        out_specs=(
            pl.BlockSpec((None, B, A), lambda t: (t, 0, 0)),      # per-step act
            pl.BlockSpec((B, H), lambda t: (0, 0)),               # h carry
            pl.BlockSpec((B, H), lambda t: (0, 0)),               # c carry
        ),
        out_shape=(jax.ShapeDtypeStruct((T, B, A), jnp.float32),
                   jax.ShapeDtypeStruct((B, H), jnp.float32),
                   jax.ShapeDtypeStruct((B, H), jnp.float32)),
        compiler_params=pltpu.CompilerParams(
            dimension_semantics=("arbitrary",)),
        cost_estimate=pl.CostEstimate(flops=flops,
                                      transcendentals=transcendentals,
                                      bytes_accessed=bytes_accessed),
    )(xs, params["w_ih_t"], params["w_hh_t"], params["b"],
      params["w1"], params["b1"])
    return acts, h_n, c_n


# -----------------------------------------------------------------------------
# Single-step kernels (exact forward() semantics, for host-in-the-loop use).
# -----------------------------------------------------------------------------
def _step_kernel_begin(x_ref, w_ih_t_ref, b_ref, w1_ref, b1_ref,
                       out_ref, hn_ref, cn_ref):
    """begin_sequence=True: h0 = c0 = 0, so the recurrent matmul and the
    forget-gate contribution vanish and are neither computed nor DMA'd."""
    H = hn_ref.shape[1]
    gates = (jnp.dot(x_ref[...], w_ih_t_ref[...],
                     preferred_element_type=jnp.float32, precision=_HIGH)
             + b_ref[...])                                   # (B, 4H)
    i_g = jax.nn.sigmoid(gates[:, 0 * H:1 * H])
    g_g = jnp.tanh(gates[:, 2 * H:3 * H])
    o_g = jax.nn.sigmoid(gates[:, 3 * H:4 * H])
    c_n = i_g * g_g                                          # f*c0 == 0
    h_n = o_g * jnp.tanh(c_n)
    hn_ref[...] = h_n
    cn_ref[...] = c_n
    out_ref[...] = _head(h_n, w1_ref[...], b1_ref[...])


def _step_kernel_recurrent(x_ref, h0_ref, c0_ref, w_ih_t_ref, w_hh_t_ref,
                           b_ref, w1_ref, b1_ref,
                           out_ref, hn_ref, cn_ref):
    """begin_sequence=False: x and h0 are separate VMEM inputs; the two gate
    matmuls are summed in-kernel (no wrapper-side concat/pad)."""
    h_n, c_n = _lstm_cell(x_ref[...], h0_ref[...], c0_ref[...],
                          w_ih_t_ref[...], w_hh_t_ref[...], b_ref[...])
    hn_ref[...] = h_n
    cn_ref[...] = c_n
    out_ref[...] = _head(h_n, w1_ref[...], b1_ref[...])


@functools.partial(jax.jit, static_argnames=("begin_sequence",))
def lstm_direct_policy_forward(x, params, hn=None, cn=None,
                               begin_sequence=True):
    """Returns (action, h_n, c_n), mirroring LSTM_direct_policy_model.forward."""
    B, S = x.shape
    A, H = params["w1"].shape

    vmem = pl.BlockSpec(memory_space=pltpu.MemorySpace.VMEM)
    out_shapes = (jax.ShapeDtypeStruct((B, A), jnp.float32),
                  jax.ShapeDtypeStruct((B, H), jnp.float32),
                  jax.ShapeDtypeStruct((B, H), jnp.float32))

    if begin_sequence:
        args = (x, params["w_ih_t"], params["b"], params["w1"], params["b1"])
        kernel = _step_kernel_begin
        aliases = {}
        flops = 2 * B * S * 4 * H + 8 * B * H + 2 * B * H * A
        transcendentals = B * (4 * H + A)
    else:
        if hn is None or cn is None:
            raise ValueError("begin_sequence=False requires hn and cn from a "
                             "previous call.")
        args = (x, hn, cn, params["w_ih_t"], params["w_hh_t"], params["b"],
                params["w1"], params["b1"])
        kernel = _step_kernel_recurrent
        # Donate the incoming h/c HBM buffers to the h/c outputs.
        aliases = {1: 1, 2: 2}
        flops = (2 * B * S * 4 * H + 2 * B * H * 4 * H + 12 * B * H
                 + 2 * B * H * A)
        transcendentals = B * (5 * H + A)

    bytes_accessed = _f32_bytes(*(a.shape for a in args),
                                (B, A), (B, H), (B, H))

    out, h_n, c_n = pl.pallas_call(
        kernel,
        out_shape=out_shapes,
        in_specs=[vmem] * len(args),
        out_specs=(vmem, vmem, vmem),
        input_output_aliases=aliases,
        cost_estimate=pl.CostEstimate(flops=flops,
                                      transcendentals=transcendentals,
                                      bytes_accessed=bytes_accessed),
    )(*args)
    return out, h_n, c_n


def init_params(key, state_dim=4, action_dim=1, hidden_size=128):
    """PyTorch-style U(-k, k) init, packed into kernel-friendly layouts."""
    # Keep i/f/g/o gate slice boundaries lane-aligned (no VMEM relayout copies).
    assert hidden_size % 128 == 0, "hidden_size must be a multiple of 128"

    ks = jax.random.split(key, 6)
    k = 1.0 / jnp.sqrt(hidden_size)

    w_ih = jax.random.uniform(ks[0], (4 * hidden_size, state_dim),
                              jnp.float32, -k, k)
    w_hh = jax.random.uniform(ks[1], (4 * hidden_size, hidden_size),
                              jnp.float32, -k, k)
    b_ih = jax.random.uniform(ks[2], (4 * hidden_size,), jnp.float32, -k, k)
    b_hh = jax.random.uniform(ks[3], (4 * hidden_size,), jnp.float32, -k, k)
    w1 = jax.random.uniform(ks[4], (action_dim, hidden_size),
                            jnp.float32, -k, k)
    b1 = jax.random.uniform(ks[5], (action_dim,), jnp.float32, -k, k)

    return {
        "w_ih_t": w_ih.T,            # (S, 4H)
        "w_hh_t": w_hh.T,            # (H, 4H)
        "b": (b_ih + b_hh).reshape(1, 4 * hidden_size),
        "w1": w1,                    # (A, H) PyTorch layout
        "b1": b1.reshape(1, action_dim),
    }
    # TODO(synk): linear2/linear3/relu are defined in __init__ but never used
    # in forward(), so they are intentionally not instantiated here.


def _reference_step(x, params, h0, c0):
    """Pure-JAX LSTM step + tanh(linear1) reference."""
    H = params["w_hh_t"].shape[0]
    gates = (jnp.dot(x, params["w_ih_t"], precision=_HIGH)
             + jnp.dot(h0, params["w_hh_t"], precision=_HIGH)
             + params["b"])
    i = jax.nn.sigmoid(gates[:, 0 * H:1 * H])
    f = jax.nn.sigmoid(gates[:, 1 * H:2 * H])
    g = jnp.tanh(gates[:, 2 * H:3 * H])
    o = jax.nn.sigmoid(gates[:, 3 * H:4 * H])
    c = f * c0 + i * g
    h = o * jnp.tanh(c)
    out = jnp.tanh(jnp.dot(h, params["w1"].T, precision=_HIGH) + params["b1"])
    return out, h, c


if __name__ == "__main__":
    key = jax.random.PRNGKey(0)
    k_param, k_x = jax.random.split(key)

    state_dim, action_dim, hidden_size = 4, 1, 128
    batch, T = 8, 8

    params = init_params(k_param, state_dim, action_dim, hidden_size)
    xs = jax.random.normal(k_x, (T, batch, state_dim), jnp.float32)

    # Path 1: whole T-step rollout in ONE pallas_call (the big win).
    acts, hn_roll, cn_roll = lstm_policy_rollout(xs, params)

    # Path 2: per-step forward() semantics (begin_sequence=True, then False).
    out0, hn, cn = lstm_direct_policy_forward(xs[0], params,
                                              begin_sequence=True)
    step_outs = [out0]
    for t in range(1, T):
        o, hn, cn = lstm_direct_policy_forward(xs[t], params, hn=hn, cn=cn,
                                               begin_sequence=False)
        step_outs.append(o)
    step_outs = jnp.stack(step_outs)

    jax.block_until_ready((acts, hn_roll, cn_roll, step_outs, hn, cn))

    # Pure-JAX reference rollout.
    h = jnp.zeros((batch, hidden_size), jnp.float32)
    c = jnp.zeros_like(h)
    ref_outs = []
    for t in range(T):
        o, h, c = _reference_step(xs[t], params, h, c)
        ref_outs.append(o)
    ref_outs = jnp.stack(ref_outs)

    assert acts.shape == (T, batch, action_dim)
    assert hn_roll.shape == (batch, hidden_size)
    assert cn_roll.shape == (batch, hidden_size)
    assert jnp.allclose(acts, ref_outs, atol=1e-5, rtol=1e-5)
    assert jnp.allclose(hn_roll, h, atol=1e-5, rtol=1e-5)
    assert jnp.allclose(cn_roll, c, atol=1e-5, rtol=1e-5)
    assert jnp.allclose(step_outs, ref_outs, atol=1e-5, rtol=1e-5)
    assert jnp.allclose(hn, h, atol=1e-5, rtol=1e-5)
    assert jnp.allclose(cn, c, atol=1e-5, rtol=1e-5)

    print("KERNEL_OK")
</pallas_src>

<mosaic_0001>
module attributes {stable_mosaic.version = 11 : i64} {
  func.func @_rollout_kernel(%arg0: i32, %arg1: memref<1x8x4xf32, #tpu.memory_space<vmem>>, %arg2: memref<4x512xf32, #tpu.memory_space<vmem>>, %arg3: memref<128x512xf32, #tpu.memory_space<vmem>>, %arg4: memref<1x512xf32, #tpu.memory_space<vmem>>, %arg5: memref<1x128xf32, #tpu.memory_space<vmem>>, %arg6: memref<1x1xf32, #tpu.memory_space<vmem>>, %arg7: memref<1x8x1xf32, #tpu.memory_space<vmem>>, %arg8: memref<8x128xf32, #tpu.memory_space<vmem>>, %arg9: memref<8x128xf32, #tpu.memory_space<vmem>>) attributes {dimension_semantics = [#tpu.dimension_semantics<arbitrary>], iteration_bounds = array<i64: 8>, scalar_prefetch = 0 : i64, scratch_operands = 0 : i64, tpu.core_type = #tpu.core_type<tc>, window_params = [{transform_indices = @transform_0, window_bounds = array<i64: 1, 8, 4>}, {pipeline_mode = #tpu.pipeline_mode<synchronous>, transform_indices = @transform_1, window_bounds = array<i64: 4, 512>}, {pipeline_mode = #tpu.pipeline_mode<synchronous>, transform_indices = @transform_2, window_bounds = array<i64: 128, 512>}, {pipeline_mode = #tpu.pipeline_mode<synchronous>, transform_indices = @transform_3, window_bounds = array<i64: 1, 512>}, {pipeline_mode = #tpu.pipeline_mode<synchronous>, transform_indices = @transform_4, window_bounds = array<i64: 1, 128>}, {pipeline_mode = #tpu.pipeline_mode<synchronous>, transform_indices = @transform_5, window_bounds = array<i64: 1, 1>}, {transform_indices = @transform_6, window_bounds = array<i64: 1, 8, 1>}, {pipeline_mode = #tpu.pipeline_mode<synchronous>, transform_indices = @transform_7, window_bounds = array<i64: 8, 128>}, {pipeline_mode = #tpu.pipeline_mode<synchronous>, transform_indices = @transform_8, window_bounds = array<i64: 8, 128>}]} {
    %c0_i32 = arith.constant 0 : i32
    %0 = arith.cmpi eq, %arg0, %c0_i32 : i32
    %1 = arith.extui %0 : i1 to i32
    %c0_i32_0 = arith.constant 0 : i32
    %2 = arith.cmpi ne, %1, %c0_i32_0 : i32
    scf.if %2 {
      %cst_29 = arith.constant 0.000000e+00 : f32
      %54 = vector.broadcast %cst_29 : f32 to vector<8x128xf32>
      %c0_30 = arith.constant 0 : index
      %c0_31 = arith.constant 0 : index
      %55 = vector.load %arg8[%c0_30, %c0_31] : memref<8x128xf32, #tpu.memory_space<vmem>>, vector<8x128xf32>
      tpu.vector_store %arg8[%c0_30, %c0_31], %54 {strides = array<i32>} : memref<8x128xf32, #tpu.memory_space<vmem>>, vector<8x128xf32>,
      %cst_32 = arith.constant 0.000000e+00 : f32
      %56 = vector.broadcast %cst_32 : f32 to vector<8x128xf32>
      %c0_33 = arith.constant 0 : index
      %c0_34 = arith.constant 0 : index
      %57 = vector.load %arg9[%c0_33, %c0_34] : memref<8x128xf32, #tpu.memory_space<vmem>>, vector<8x128xf32>
      tpu.vector_store %arg9[%c0_33, %c0_34], %56 {strides = array<i32>} : memref<8x128xf32, #tpu.memory_space<vmem>>, vector<8x128xf32>,
    } else {
    }
    %c0 = arith.constant 0 : index
    %c0_1 = arith.constant 0 : index
    %c0_2 = arith.constant 0 : index
    %3 = vector.load %arg1[%c0, %c0_1, %c0_2] : memref<1x8x4xf32, #tpu.memory_space<vmem>>, vector<1x8x4xf32>
    %4 = vector.shape_cast %3 : vector<1x8x4xf32> to vector<8x4xf32>
    %c0_3 = arith.constant 0 : index
    %c0_4 = arith.constant 0 : index
    %5 = vector.load %arg8[%c0_3, %c0_4] : memref<8x128xf32, #tpu.memory_space<vmem>>, vector<8x128xf32>
    %c0_5 = arith.constant 0 : index
    %c0_6 = arith.constant 0 : index
    %6 = vector.load %arg9[%c0_5, %c0_6] : memref<8x128xf32, #tpu.memory_space<vmem>>, vector<8x128xf32>
    %c0_7 = arith.constant 0 : index
    %c0_8 = arith.constant 0 : index
    %7 = vector.load %arg2[%c0_7, %c0_8] : memref<4x512xf32, #tpu.memory_space<vmem>>, vector<4x512xf32>
    %c0_9 = arith.constant 0 : index
    %c0_10 = arith.constant 0 : index
    %8 = vector.load %arg3[%c0_9, %c0_10] : memref<128x512xf32, #tpu.memory_space<vmem>>, vector<128x512xf32>
    %c0_11 = arith.constant 0 : index
    %c0_12 = arith.constant 0 : index
    %9 = vector.load %arg4[%c0_11, %c0_12] : memref<1x512xf32, #tpu.memory_space<vmem>>, vector<1x512xf32>
    %cst = arith.constant dense<0.000000e+00> : vector<8x512xf32>
    %10 = tpu.matmul %4, %7, %cst {dimension_numbers = #tpu.dot_dimension_numbers<[1], [0], [0], [1], [0, 0, 1, 1], [], []>, precision = #tpu.contract_precision<fp32>} : vector<8x4xf32>, vector<4x512xf32>, vector<8x512xf32> -> vector<8x512xf32>
    %cst_13 = arith.constant dense<0.000000e+00> : vector<8x512xf32>
    %11 = tpu.matmul %5, %8, %cst_13 {dimension_numbers = #tpu.dot_dimension_numbers<[1], [0], [0], [1], [0, 0, 1, 1], [], []>, precision = #tpu.contract_precision<fp32>} : vector<8x128xf32>, vector<128x512xf32>, vector<8x512xf32> -> vector<8x512xf32>
    %12 = arith.addf %10, %11 : vector<8x512xf32>
    %13 = vector.broadcast %9 : vector<1x512xf32> to vector<8x512xf32>
    %14 = arith.addf %12, %13 : vector<8x512xf32>
    %15 = vector.extract_strided_slice %14 {offsets = [0, 0], sizes = [8, 128], strides = [1, 1]} : vector<8x512xf32> to vector<8x128xf32>
    %16 = arith.negf %15 : vector<8x128xf32>
    %17 = math.exp %16 : vector<8x128xf32>
    %cst_14 = arith.constant 1.000000e+00 : f32
    %18 = vector.broadcast %cst_14 : f32 to vector<8x128xf32>
    %19 = arith.addf %18, %17 : vector<8x128xf32>
    %20 = arith.divf %18, %19 : vector<8x128xf32>
    %21 = vector.extract_strided_slice %14 {offsets = [0, 128], sizes = [8, 128], strides = [1, 1]} : vector<8x512xf32> to vector<8x128xf32>
    %22 = arith.negf %21 : vector<8x128xf32>
    %23 = math.exp %22 : vector<8x128xf32>
    %cst_15 = arith.constant 1.000000e+00 : f32
    %24 = vector.broadcast %cst_15 : f32 to vector<8x128xf32>
    %25 = arith.addf %24, %23 : vector<8x128xf32>
    %26 = arith.divf %24, %25 : vector<8x128xf32>
    %27 = vector.extract_strided_slice %14 {offsets = [0, 256], sizes = [8, 128], strides = [1, 1]} : vector<8x512xf32> to vector<8x128xf32>
    %28 = math.tanh %27 : vector<8x128xf32>
    %29 = vector.extract_strided_slice %14 {offsets = [0, 384], sizes = [8, 128], strides = [1, 1]} : vector<8x512xf32> to vector<8x128xf32>
    %30 = arith.negf %29 : vector<8x128xf32>
    %31 = math.exp %30 : vector<8x128xf32>
    %cst_16 = arith.constant 1.000000e+00 : f32
    %32 = vector.broadcast %cst_16 : f32 to vector<8x128xf32>
    %33 = arith.addf %32, %31 : vector<8x128xf32>
    %34 = arith.divf %32, %33 : vector<8x128xf32>
    %35 = arith.mulf %26, %6 : vector<8x128xf32>
    %36 = arith.mulf %20, %28 : vector<8x128xf32>
    %37 = arith.addf %35, %36 : vector<8x128xf32>
    %38 = math.tanh %37 : vector<8x128xf32>
    %39 = arith.mulf %34, %38 : vector<8x128xf32>
    %c0_17 = arith.constant 0 : index
    %c0_18 = arith.constant 0 : index
    %40 = vector.load %arg8[%c0_17, %c0_18] : memref<8x128xf32, #tpu.memory_space<vmem>>, vector<8x128xf32>
    tpu.vector_store %arg8[%c0_17, %c0_18], %39 {strides = array<i32>} : memref<8x128xf32, #tpu.memory_space<vmem>>, vector<8x128xf32>,
    %c0_19 = arith.constant 0 : index
    %c0_20 = arith.constant 0 : index
    %41 = vector.load %arg9[%c0_19, %c0_20] : memref<8x128xf32, #tpu.memory_space<vmem>>, vector<8x128xf32>
    tpu.vector_store %arg9[%c0_19, %c0_20], %37 {strides = array<i32>} : memref<8x128xf32, #tpu.memory_space<vmem>>, vector<8x128xf32>,
    %c0_21 = arith.constant 0 : index
    %c0_22 = arith.constant 0 : index
    %42 = vector.load %arg5[%c0_21, %c0_22] : memref<1x128xf32, #tpu.memory_space<vmem>>, vector<1x128xf32>
    %c0_23 = arith.constant 0 : index
    %c0_24 = arith.constant 0 : index
    %43 = vector.load %arg6[%c0_23, %c0_24] : memref<1x1xf32, #tpu.memory_space<vmem>>, vector<1x1xf32>
    %44 = vector.broadcast %42 : vector<1x128xf32> to vector<8x128xf32>
    %45 = arith.mulf %39, %44 : vector<8x128xf32>
    %cst_25 = arith.constant dense<0.000000e+00> : vector<8xf32>
    %46 = vector.multi_reduction <add>, %45, %cst_25 [1] : vector<8x128xf32> to vector<8xf32>
    %47 = vector.shape_cast %46 : vector<8xf32> to vector<8x1xf32>
    %48 = vector.broadcast %43 : vector<1x1xf32> to vector<8x1xf32>
    %49 = arith.addf %47, %48 : vector<8x1xf32>
    %50 = math.tanh %49 : vector<8x1xf32>
    %c0_26 = arith.constant 0 : index
    %c0_27 = arith.constant 0 : index
    %c0_28 = arith.constant 0 : index
    %51 = vector.load %arg7[%c0_26, %c0_27, %c0_28] : memref<1x8x1xf32, #tpu.memory_space<vmem>>, vector<1x8x1xf32>
    %52 = vector.shape_cast %51 : vector<1x8x1xf32> to vector<8x1xf32>
    %53 = vector.shape_cast %50 : vector<8x1xf32> to vector<1x8x1xf32>
    tpu.vector_store %arg7[%c0_26, %c0_27, %c0_28], %53 {strides = array<i32>} : memref<1x8x1xf32, #tpu.memory_space<vmem>>, vector<1x8x1xf32>,
    return
  }
  func.func @transform_0(%arg0: i32) -> (i32, i32, i32) {
    %c0_i32 = arith.constant 0 : i32
    %c0_i32_0 = arith.constant 0 : i32
    %c0_i32_1 = arith.constant 0 : i32
    return %arg0, %c0_i32, %c0_i32_0 : i32, i32, i32
  }
  func.func @transform_1(%arg0: i32) -> (i32, i32) {
    %c0_i32 = arith.constant 0 : i32
    %c0_i32_0 = arith.constant 0 : i32
    %c0_i32_1 = arith.constant 0 : i32
    return %c0_i32, %c0_i32_0 : i32, i32
  }
  func.func @transform_2(%arg0: i32) -> (i32, i32) {
    %c0_i32 = arith.constant 0 : i32
    %c0_i32_0 = arith.constant 0 : i32
    %c0_i32_1 = arith.constant 0 : i32
    return %c0_i32, %c0_i32_0 : i32, i32
  }
  func.func @transform_3(%arg0: i32) -> (i32, i32) {
    %c0_i32 = arith.constant 0 : i32
    %c0_i32_0 = arith.constant 0 : i32
    %c0_i32_1 = arith.constant 0 : i32
    return %c0_i32, %c0_i32_0 : i32, i32
  }
  func.func @transform_4(%arg0: i32) -> (i32, i32) {
    %c0_i32 = arith.constant 0 : i32
    %c0_i32_0 = arith.constant 0 : i32
    %c0_i32_1 = arith.constant 0 : i32
    return %c0_i32, %c0_i32_0 : i32, i32
  }
  func.func @transform_5(%arg0: i32) -> (i32, i32) {
    %c0_i32 = arith.constant 0 : i32
    %c0_i32_0 = arith.constant 0 : i32
    %c0_i32_1 = arith.constant 0 : i32
    return %c0_i32, %c0_i32_0 : i32, i32
  }
  func.func @transform_6(%arg0: i32) -> (i32, i32, i32) {
    %c0_i32 = arith.constant 0 : i32
    %c0_i32_0 = arith.constant 0 : i32
    %c0_i32_1 = arith.constant 0 : i32
    return %arg0, %c0_i32, %c0_i32_0 : i32, i32, i32
  }
  func.func @transform_7(%arg0: i32) -> (i32, i32) {
    %c0_i32 = arith.constant 0 : i32
    %c0_i32_0 = arith.constant 0 : i32
    %c0_i32_1 = arith.constant 0 : i32
    return %c0_i32, %c0_i32_0 : i32, i32
  }
  func.func @transform_8(%arg0: i32) -> (i32, i32) {
    %c0_i32 = arith.constant 0 : i32
    %c0_i32_0 = arith.constant 0 : i32
    %c0_i32_1 = arith.constant 0 : i32
    return %c0_i32, %c0_i32_0 : i32, i32
  }
}

</mosaic_0001>

<llo_original>
// kernel: lstm_policy_rollout.1
$region0: #{lstm_policy_rollout.1}
  #allocation0 [shape = 'u32[]', space=smem, size = 0x4, offset = 0x4, fixed_abs, tag = 'smem constant byte address 0x4 - core index']
  #allocation1 [shape = 'u32[144,128]{1,0:T(1,128)}', space=vmem, size = 0x12000, scoped, tag = 'internal scratch']
  #allocation2 [shape = 'f32[1,1]{1,0:T(1,128)S(1)}', space=vmem, size = 0x200, scoped, tag = 'scoped memory for lstm_policy_rollout.1']
  %s0 = inlined_call_operand.vmem [shape: f32[8,8,4], index: 0, kind: input, shape index: {}]
  %s1 = inlined_call_operand.vmem [shape: f32[4,512], index: 1, kind: input, shape index: {}]
  %s2 = inlined_call_operand.hbm [shape: f32[128,512], index: 2, kind: input, shape index: {}]
  %s3 = inlined_call_operand.vmem [shape: f32[1,512], index: 3, kind: input, shape index: {}]
  %s4 = inlined_call_operand.vmem [shape: f32[1,128], index: 4, kind: input, shape index: {}]
  %s5 = inlined_call_operand.<no memory space> [shape: f32[1,1], index: 5, kind: input, shape index: {}]
  %s6 = inlined_call_operand.vmem [shape: f32[8,8,1], index: 6, kind: output, shape index: {0}]
  %s7 = inlined_call_operand.hbm [shape: f32[8,128], index: 7, kind: output, shape index: {1}]
  %s8 = inlined_call_operand.hbm [shape: f32[8,128], index: 8, kind: output, shape index: {2}]
  %9 = xla_tuple %s6, %s7, %s8
  %s10 = sld [smem:[#allocation0]]
  $region81: #{lstm_policy_rollout.1} parent=0
    _
  %s12 = ssub.s32 1, %s10
  %s13 = scalar_select 0, %s12, %s10
  %v14 = vstv %s5
  %15 = vst [vmem:[#allocation2] sm:$0x1] %v14
  $region1: #{lstm_policy_rollout.1} parent=0
    #allocation3 [shape = 'u8[262144]{0}', space=vmem, size = 0x40000, scoped, tag = 'input window, operand 2, single buffered']
    #allocation4 [shape = 's32[2]{0}', space=sflag, size = 0x8, scoped, tag = 'scoped memory for lstm_policy_rollout.1']
    #allocation5 [shape = 's32[2]{0}', space=sflag, size = 0x8, scoped, tag = 'scoped memory for lstm_policy_rollout.1']
    #allocation6 [shape = 'u8[4096]{0}', space=vmem, size = 0x1000, scoped, tag = 'output window, operand 1, single buffered']
    #allocation7 [shape = 'u8[4096]{0}', space=vmem, size = 0x1000, scoped, tag = 'output window, operand 2, single buffered']
    #allocation8 [shape = 's32[1]{0}', space=sflag, size = 0x4, scoped, tag = 'scoped memory for lstm_policy_rollout.1']
    %16 = vsyncpa [#allocation4], 0
    %17 = vsyncpa [#allocation5], 0
    %18 = vsyncpa [#allocation8], 0
    loop: start=0, step=1, limit=10
    $region2: #{lstm_policy_rollout.1} parent=1 // loop_pre_header
      _
    $region3: #{lstm_policy_rollout.1} parent=1 // loop_header
      %s20 = sphi 0, %s24
      %p21 = scmp.ge.s32.totalorder %s20, 10
      %s30 = sphi 0, %s32
      %s33 = sphi 0, %s30
      %s34 = sphi 0, %s33
      %s50 = sphi 0, %s34
      %s54 = sphi 0, %s54
      %s56 = sphi 0, %s54
      %s57 = sphi 0, %s56
      %s71 = sphi 0, %s57
      %s75 = sphi 0, %s75
      %s77 = sphi 0, %s75
      %s78 = sphi 0, %s77
      %s92 = sphi 0, %s78
      %s96 = sphi 0, %s96
      %s98 = sphi 0, %s96
      %s99 = sphi 0, %s98
      %s113 = sphi 0, %s99
      %s117 = sphi 0, %s117
      %s119 = sphi 0, %s117
      %s120 = sphi 0, %s119
      %s134 = sphi 0, %s120
      %s138 = sphi 0, %s138
      %s140 = sphi 0, %s138
      %s141 = sphi 0, %s140
      %s155 = sphi 0, %s141
      %s161 = sphi 0, %s163
      %s164 = sphi 0, %s161
      %s165 = sphi 0, %s164
      %s181 = sphi 0, %s165
      %s185 = sphi 0, %s185
      %s187 = sphi 0, %s185
      %s188 = sphi 0, %s187
      %s202 = sphi 0, %s188
      %s206 = sphi 0, %s206
      %s208 = sphi 0, %s206
      %s209 = sphi 0, %s208
      %s223 = sphi 0, %s209
    $region4: #{lstm_policy_rollout.1} parent=1 // loop_header_branch
      %23 = sbr.rel (%p21) target = $region8
    $region5: #{lstm_policy_rollout.1} parent=1 // loop_body
      %s25 = ssub.s32 %s20, 1
      %s26 = ssub.s32 %s20, 2
      %s27 = sadd.s32 %s20, 1
      %s28 = ssub.s32 %s20, %s27
      %p29 = scmp.eq.s32.totalorder %s28, 0
      %s31 = sadd.s32 %s30, 1
      %s32 = scalar_select %p29, %s30, %s31
      %p35 = pneg %p29
      %p36 = scmp.eq.s32.totalorder %s20, 7
      %p37 = por %p35, %p36
      %p38 = scmp.ne.s32.totalorder %s30, %s33
      %p39 = scmp.eq.s32.totalorder %s20, 0
      %p40 = por %p38, %p39
      %p41 = scmp.ne.s32.totalorder %s30, %s33
      %p42 = scmp.eq.s32.totalorder %s25, 7
      %p43 = por %p41, %p42
      %p44 = scmp.ne.s32.totalorder %s33, %s34
      %p45 = scmp.eq.s32.totalorder %s25, 0
      %p46 = por %p44, %p45
      %p47 = scmp.ne.s32.totalorder %s33, %s34
      %p48 = scmp.eq.s32.totalorder %s26, 7
      %p49 = por %p47, %p48
      %p51 = scmp.ne.s32.totalorder %s34, %s50
      %p52 = scmp.eq.s32.totalorder %s26, 0
      %p53 = por %p51, %p52
      %s55 = sadd.s32 %s54, 1
      %p58 = scmp.eq.s32.totalorder %s20, 7
      %p59 = scmp.ne.s32.totalorder %s54, %s56
      %p60 = scmp.eq.s32.totalorder %s20, 0
      %p61 = por %p59, %p60
      %p62 = scmp.ne.s32.totalorder %s54, %s56
      %p63 = scmp.eq.s32.totalorder %s25, 7
      %p64 = por %p62, %p63
      %p65 = scmp.ne.s32.totalorder %s56, %s57
      %p66 = scmp.eq.s32.totalorder %s25, 0
      %p67 = por %p65, %p66
      %p68 = scmp.ne.s32.totalorder %s56, %s57
      %p69 = scmp.eq.s32.totalorder %s26, 7
      %p70 = por %p68, %p69
      %p72 = scmp.ne.s32.totalorder %s57, %s71
      %p73 = scmp.eq.s32.totalorder %s26, 0
      %p74 = por %p72, %p73
      %s76 = sadd.s32 %s75, 1
      %p79 = scmp.eq.s32.totalorder %s20, 7
      %p80 = scmp.ne.s32.totalorder %s75, %s77
      %p81 = scmp.eq.s32.totalorder %s20, 0
      %p82 = por %p80, %p81
      %p83 = scmp.ne.s32.totalorder %s75, %s77
      %p84 = scmp.eq.s32.totalorder %s25, 7
      %p85 = por %p83, %p84
      %p86 = scmp.ne.s32.totalorder %s77, %s78
      %p87 = scmp.eq.s32.totalorder %s25, 0
      %p88 = por %p86, %p87
      %p89 = scmp.ne.s32.totalorder %s77, %s78
      %p90 = scmp.eq.s32.totalorder %s26, 7
      %p91 = por %p89, %p90
      %p93 = scmp.ne.s32.totalorder %s78, %s92
      %p94 = scmp.eq.s32.totalorder %s26, 0
      %p95 = por %p93, %p94
      %s97 = sadd.s32 %s96, 1
      %p100 = scmp.eq.s32.totalorder %s20, 7
      %p101 = scmp.ne.s32.totalorder %s96, %s98
      %p102 = scmp.eq.s32.totalorder %s20, 0
      %p103 = por %p101, %p102
      %p104 = scmp.ne.s32.totalorder %s96, %s98
      %p105 = scmp.eq.s32.totalorder %s25, 7
      %p106 = por %p104, %p105
      %p107 = scmp.ne.s32.totalorder %s98, %s99
      %p108 = scmp.eq.s32.totalorder %s25, 0
      %p109 = por %p107, %p108
      %p110 = scmp.ne.s32.totalorder %s98, %s99
      %p111 = scmp.eq.s32.totalorder %s26, 7
      %p112 = por %p110, %p111
      %p114 = scmp.ne.s32.totalorder %s99, %s113
      %p115 = scmp.eq.s32.totalorder %s26, 0
      %p116 = por %p114, %p115
      %s118 = sadd.s32 %s117, 1
      %p121 = scmp.eq.s32.totalorder %s20, 7
      %p122 = scmp.ne.s32.totalorder %s117, %s119
      %p123 = scmp.eq.s32.totalorder %s20, 0
      %p124 = por %p122, %p123
      %p125 = scmp.ne.s32.totalorder %s117, %s119
      %p126 = scmp.eq.s32.totalorder %s25, 7
      %p127 = por %p125, %p126
      %p128 = scmp.ne.s32.totalorder %s119, %s120
      %p129 = scmp.eq.s32.totalorder %s25, 0
      %p130 = por %p128, %p129
      %p131 = scmp.ne.s32.totalorder %s119, %s120
      %p132 = scmp.eq.s32.totalorder %s26, 7
      %p133 = por %p131, %p132
      %p135 = scmp.ne.s32.totalorder %s120, %s134
      %p136 = scmp.eq.s32.totalorder %s26, 0
      %p137 = por %p135, %p136
      %s139 = sadd.s32 %s138, 1
      %p142 = scmp.eq.s32.totalorder %s20, 7
      %p143 = scmp.ne.s32.totalorder %s138, %s140
      %p144 = scmp.eq.s32.totalorder %s20, 0
      %p145 = por %p143, %p144
      %p146 = scmp.ne.s32.totalorder %s138, %s140
      %p147 = scmp.eq.s32.totalorder %s25, 7
      %p148 = por %p146, %p147
      %p149 = scmp.ne.s32.totalorder %s140, %s141
      %p150 = scmp.eq.s32.totalorder %s25, 0
      %p151 = por %p149, %p150
      %p152 = scmp.ne.s32.totalorder %s140, %s141
      %p153 = scmp.eq.s32.totalorder %s26, 7
      %p154 = por %p152, %p153
      %p156 = scmp.ne.s32.totalorder %s141, %s155
      %p157 = scmp.eq.s32.totalorder %s26, 0
      %p158 = por %p156, %p157
      %s159 = ssub.s32 %s20, %s27
      %p160 = scmp.eq.s32.totalorder %s159, 0
      %s162 = sadd.s32 %s161, 1
      %s163 = scalar_select %p160, %s161, %s162
      %p166 = pneg %p160
      %p167 = scmp.eq.s32.totalorder %s20, 7
      %p168 = por %p166, %p167
      %p169 = scmp.ne.s32.totalorder %s161, %s164
      %p170 = scmp.eq.s32.totalorder %s20, 0
      %p171 = por %p169, %p170
      %p172 = scmp.ne.s32.totalorder %s161, %s164
      %p173 = scmp.eq.s32.totalorder %s25, 7
      %p174 = por %p172, %p173
      %p175 = scmp.ne.s32.totalorder %s164, %s165
      %p176 = scmp.eq.s32.totalorder %s25, 0
      %p177 = por %p175, %p176
      %p178 = scmp.ne.s32.totalorder %s164, %s165
      %p179 = scmp.eq.s32.totalorder %s26, 7
      %p180 = por %p178, %p179
      %p182 = scmp.ne.s32.totalorder %s165, %s181
      %p183 = scmp.eq.s32.totalorder %s26, 0
      %p184 = por %p182, %p183
      %s186 = sadd.s32 %s185, 1
      %p189 = scmp.eq.s32.totalorder %s20, 7
      %p190 = scmp.ne.s32.totalorder %s185, %s187
      %p191 = scmp.eq.s32.totalorder %s20, 0
      %p192 = por %p190, %p191
      %p193 = scmp.ne.s32.totalorder %s185, %s187
      %p194 = scmp.eq.s32.totalorder %s25, 7
      %p195 = por %p193, %p194
      %p196 = scmp.ne.s32.totalorder %s187, %s188
      %p197 = scmp.eq.s32.totalorder %s25, 0
      %p198 = por %p196, %p197
      %p199 = scmp.ne.s32.totalorder %s187, %s188
      %p200 = scmp.eq.s32.totalorder %s26, 7
      %p201 = por %p199, %p200
      %p203 = scmp.ne.s32.totalorder %s188, %s202
      %p204 = scmp.eq.s32.totalorder %s26, 0
      %p205 = por %p203, %p204
      %s207 = sadd.s32 %s206, 1
      %p210 = scmp.eq.s32.totalorder %s20, 7
      %p211 = scmp.ne.s32.totalorder %s206, %s208
      %p212 = scmp.eq.s32.totalorder %s20, 0
      %p213 = por %p211, %p212
      %p214 = scmp.ne.s32.totalorder %s206, %s208
      %p215 = scmp.eq.s32.totalorder %s25, 7
      %p216 = por %p214, %p215
      %p217 = scmp.ne.s32.totalorder %s208, %s209
      %p218 = scmp.eq.s32.totalorder %s25, 0
      %p219 = por %p217, %p218
      %p220 = scmp.ne.s32.totalorder %s208, %s209
      %p221 = scmp.eq.s32.totalorder %s26, 7
      %p222 = por %p220, %p221
      %p224 = scmp.ne.s32.totalorder %s209, %s223
      %p225 = scmp.eq.s32.totalorder %s26, 0
      %p226 = por %p224, %p225
      %p227 = scmp.le.s32.totalorder 1, %s20
      %p228 = scmp.lt.s32.totalorder %s20, 9
      %p229 = pnand %p227, %p228
      %p230 = pneg %p229
      // Predicated region
      $region9: #{lstm_policy_rollout.1} parent=5 // pred_check
        _
      $region10: #{lstm_policy_rollout.1} parent=5 // pred_check_branch
        %232 = sbr.rel (%p229) target = $region12
      $region11: #{lstm_policy_rollout.1} parent=5 // pred_region
        %s233 = ssub.s32 %s20, 1
        // Predicated region
        $region13: #{lstm_policy_rollout.1} parent=11 // pred_check
          %p234 = pneg %p67
        $region14: #{lstm_policy_rollout.1} parent=11 // pred_check_branch
          %236 = sbr.rel (%p234) target = $region16
        $region15: #{lstm_policy_rollout.1} parent=11 // pred_region
          _
        $region16: #{lstm_policy_rollout.1} parent=11 // pred_fallthru
          _
        // Predicated region
        $region17: #{lstm_policy_rollout.1} parent=11 // pred_check
          %p237 = pneg %p88
        $region18: #{lstm_policy_rollout.1} parent=11 // pred_check_branch
          %239 = sbr.rel (%p237) target = $region20
        $region19: #{lstm_policy_rollout.1} parent=11 // pred_region
          %s241 = ssub.s32 8192, 8192
          %242 = vsyncadd [#allocation4], %s241
          %s243 = sshll.u32 [#allocation3], 4
          %s244 = int_to_ptr.vmem [resolvable:$true] %s243
          %249 = dma.hbm_to_vmem [thread:$0]  %s2, 8192, %s244, [#allocation4], 512, 512, 32
        $region20: #{lstm_policy_rollout.1} parent=11 // pred_fallthru
          _
        // Predicated region
        $region21: #{lstm_policy_rollout.1} parent=11 // pred_check
          %p250 = pneg %p109
        $region22: #{lstm_policy_rollout.1} parent=11 // pred_check_branch
          %252 = sbr.rel (%p250) target = $region24
        $region23: #{lstm_policy_rollout.1} parent=11 // pred_region
          _
        $region24: #{lstm_policy_rollout.1} parent=11 // pred_fallthru
          _
        // Predicated region
        $region25: #{lstm_policy_rollout.1} parent=11 // pred_check
          %p253 = pneg %p130
        $region26: #{lstm_policy_rollout.1} parent=11 // pred_check_branch
          %255 = sbr.rel (%p253) target = $region28
        $region27: #{lstm_policy_rollout.1} parent=11 // pred_region
          _
        $region28: #{lstm_policy_rollout.1} parent=11 // pred_fallthru
          _
        // Predicated region
        $region29: #{lstm_policy_rollout.1} parent=11 // pred_check
          %p256 = pneg %p151
        $region30: #{lstm_policy_rollout.1} parent=11 // pred_check_branch
          %258 = sbr.rel (%p256) target = $region32
        $region31: #{lstm_policy_rollout.1} parent=11 // pred_region
          _
        $region32: #{lstm_policy_rollout.1} parent=11 // pred_fallthru
          _
      $region12: #{lstm_policy_rollout.1} parent=5 // pred_fallthru
        _
      %p259 = scmp.lt.s32.totalorder %s20, 8
      // Predicated region
      $region33: #{lstm_policy_rollout.1} parent=5 // pred_check
        %p260 = pneg %p259
      $region34: #{lstm_policy_rollout.1} parent=5 // pred_check_branch
        %262 = sbr.rel (%p260) target = $region36
      $region35: #{lstm_policy_rollout.1} parent=5 // pred_region
        // Predicated region
        $region37: #{lstm_policy_rollout.1} parent=35 // pred_check
          %p263 = pneg %p40
        $region38: #{lstm_policy_rollout.1} parent=35 // pred_check_branch
          %265 = sbr.rel (%p263) target = $region40
        $region39: #{lstm_policy_rollout.1} parent=35 // pred_region
          %p266 = scmp.lt.s32.totalorder %s20, 7
          %s267 = scalar_select %p266, %s20, 7
          %s268 = smul.addr %s267, 8
          %s269 = scalar_lea.vmem %s0, %s268
        $region40: #{lstm_policy_rollout.1} parent=35 // pred_fallthru
          _
      $region36: #{lstm_policy_rollout.1} parent=5 // pred_fallthru
        _
      %p270 = scmp.le.s32.totalorder 1, %s20
      %p271 = scmp.lt.s32.totalorder %s20, 9
      %p272 = pnand %p270, %p271
      %p273 = pneg %p272
      // Predicated region
      $region41: #{lstm_policy_rollout.1} parent=5 // pred_check
        _
      $region42: #{lstm_policy_rollout.1} parent=5 // pred_check_branch
        %275 = sbr.rel (%p272) target = $region44
      $region43: #{lstm_policy_rollout.1} parent=5 // pred_region
        %s276 = ssub.s32 %s20, 1
        // Predicated region
        $region45: #{lstm_policy_rollout.1} parent=43 // pred_check
          %p277 = pneg %p88
        $region46: #{lstm_policy_rollout.1} parent=43 // pred_check_branch
          %279 = sbr.rel (%p277) target = $region48
        $region47: #{lstm_policy_rollout.1} parent=43 // pred_region
          %280 = dma.done [#allocation4], 8192
        $region48: #{lstm_policy_rollout.1} parent=43 // pred_fallthru
          _
        %p281 = scmp.lt.s32.totalorder %s25, 7
        %s282 = scalar_select %p281, %s25, 7
        %s283 = smul.addr %s282, 8
        %s284 = scalar_lea.vmem %s0, %s283
        %p285 = pneg %p46
        %p286 = pneg %p43
        %p287 = pneg %p67
        %p288 = pneg %p64
        %p289 = pneg %p88
        %p290 = pneg %p85
        %p291 = pneg %p109
        %p292 = pneg %p106
        %p293 = pneg %p130
        %p294 = pneg %p127
        %p295 = pneg %p151
        %p296 = pneg %p148
        %p297 = pneg %p177
        %p298 = pneg %p174
        %p299 = scmp.lt.s32.totalorder %s25, 7
        %s300 = scalar_select %p299, %s25, 7
        %s301 = smul.addr %s300, 8
        %s302 = scalar_lea.vmem %s6, %s301
        %p303 = pneg %p198
        %p304 = pneg %p195
        %p305 = pneg %p219
        %p306 = pneg %p216
        %p307 = scmp.lt.s32.totalorder %s25, 7
        %s308 = scalar_select %p307, %s25, 7
        %s309 = smul.addr %s308, 8
        %s310 = scalar_lea.vmem %s0, %s309
        %p311 = scmp.lt.s32.totalorder %s25, 7
        %s312 = scalar_select %p311, %s25, 7
        %s313 = smul.addr %s312, 8
        %s314 = scalar_lea.vmem %s6, %s313
        %p315 = scmp.eq.s32.totalorder %s25, 0
        // Predicated region
        $region49: #{lstm_policy_rollout.1} parent=43 // pred_check
          %p316 = pneg %p315
        $region50: #{lstm_policy_rollout.1} parent=43 // pred_check_branch
          %318 = sbr.rel (%p316) target = $region52
        $region51: #{lstm_policy_rollout.1} parent=43 // pred_region
          %319 = vst [vmem:[#allocation6] sm:$0xff] 0.0
          %320 = vst [vmem:[#allocation7] sm:$0xff] 0.0
        $region52: #{lstm_policy_rollout.1} parent=43 // pred_fallthru
          _
        %v321 = vld [vmem:[%s310] sm:$0xff]
        %v322 = vld [vmem:[#allocation6] sm:$0xff]
        %v323 = vld [vmem:[#allocation7] sm:$0xff]
        %v324 = vld [vmem:[%s1] sm:$0xff]
        %v325 = vld [vmem:[%s1 + $0x8] sm:$0xff]
        %v326 = vld [vmem:[#allocation3] sm:$0xff]
        %v327 = vld [vmem:[#allocation3 + $0x8] sm:$0xff]
        %v328 = vld [vmem:[#allocation3 + $0x10] sm:$0xff]
        %v329 = vld [vmem:[#allocation3 + $0x18] sm:$0xff]
        %v330 = vld [vmem:[#allocation3 + $0x20] sm:$0xff]
        %v331 = vld [vmem:[#allocation3 + $0x28] sm:$0xff]
        %v332 = vld [vmem:[#allocation3 + $0x30] sm:$0xff]
        %v333 = vld [vmem:[#allocation3 + $0x38] sm:$0xff]
        %v334 = vld [vmem:[#allocation3 + $0x40] sm:$0xff]
        %v335 = vld [vmem:[#allocation3 + $0x48] sm:$0xff]
        %v336 = vld [vmem:[#allocation3 + $0x50] sm:$0xff]
        %v337 = vld [vmem:[#allocation3 + $0x58] sm:$0xff]
        %v338 = vld [vmem:[#allocation3 + $0x60] sm:$0xff]
        %v339 = vld [vmem:[#allocation3 + $0x68] sm:$0xff]
        %v340 = vld [vmem:[#allocation3 + $0x70] sm:$0xff]
        %v341 = vld [vmem:[#allocation3 + $0x78] sm:$0xff]
        %v342 = vld [vmem:[#allocation3 + $0x80] sm:$0xff]
        %v343 = vld [vmem:[#allocation3 + $0x88] sm:$0xff]
        %v344 = vld [vmem:[#allocation3 + $0x90] sm:$0xff]
        %v345 = vld [vmem:[#allocation3 + $0x98] sm:$0xff]
        %v346 = vld [vmem:[#allocation3 + $0xa0] sm:$0xff]
        %v347 = vld [vmem:[#allocation3 + $0xa8] sm:$0xff]
        %v348 = vld [vmem:[#allocation3 + $0xb0] sm:$0xff]
        %v349 = vld [vmem:[#allocation3 + $0xb8] sm:$0xff]
        %v350 = vld [vmem:[#allocation3 + $0xc0] sm:$0xff]
        %v351 = vld [vmem:[#allocation3 + $0xc8] sm:$0xff]
        %v352 = vld [vmem:[#allocation3 + $0xd0] sm:$0xff]
        %v353 = vld [vmem:[#allocation3 + $0xd8] sm:$0xff]
        %v354 = vld [vmem:[#allocation3 + $0xe0] sm:$0xff]
        %v355 = vld [vmem:[#allocation3 + $0xe8] sm:$0xff]
        %v356 = vld [vmem:[#allocation3 + $0xf0] sm:$0xff]
        %v357 = vld [vmem:[#allocation3 + $0xf8] sm:$0xff]
        %v358 = vld [vmem:[#allocation3 + $0x100] sm:$0xff]
        %v359 = vld [vmem:[#allocation3 + $0x108] sm:$0xff]
        %v360 = vld [vmem:[#allocation3 + $0x110] sm:$0xff]
        %v361 = vld [vmem:[#allocation3 + $0x118] sm:$0xff]
        %v362 = vld [vmem:[#allocation3 + $0x120] sm:$0xff]
        %v363 = vld [vmem:[#allocation3 + $0x128] sm:$0xff]
        %v364 = vld [vmem:[#allocation3 + $0x130] sm:$0xff]
        %v365 = vld [vmem:[#allocation3 + $0x138] sm:$0xff]
        %v366 = vld [vmem:[#allocation3 + $0x140] sm:$0xff]
        %v367 = vld [vmem:[#allocation3 + $0x148] sm:$0xff]
        %v368 = vld [vmem:[#allocation3 + $0x150] sm:$0xff]
        %v369 = vld [vmem:[#allocation3 + $0x158] sm:$0xff]
        %v370 = vld [vmem:[#allocation3 + $0x160] sm:$0xff]
        %v371 = vld [vmem:[#allocation3 + $0x168] sm:$0xff]
        %v372 = vld [vmem:[#allocation3 + $0x170] sm:$0xff]
        %v373 = vld [vmem:[#allocation3 + $0x178] sm:$0xff]
        %v374 = vld [vmem:[#allocation3 + $0x180] sm:$0xff]
        %v375 = vld [vmem:[#allocation3 + $0x188] sm:$0xff]
        %v376 = vld [vmem:[#allocation3 + $0x190] sm:$0xff]
        %v377 = vld [vmem:[#allocation3 + $0x198] sm:$0xff]
        %v378 = vld [vmem:[#allocation3 + $0x1a0] sm:$0xff]
        %v379 = vld [vmem:[#allocation3 + $0x1a8] sm:$0xff]
        %v380 = vld [vmem:[#allocation3 + $0x1b0] sm:$0xff]
        %v381 = vld [vmem:[#allocation3 + $0x1b8] sm:$0xff]
        %v382 = vld [vmem:[#allocation3 + $0x1c0] sm:$0xff]
        %v383 = vld [vmem:[#allocation3 + $0x1c8] sm:$0xff]
        %v384 = vld [vmem:[#allocation3 + $0x1d0] sm:$0xff]
        %v385 = vld [vmem:[#allocation3 + $0x1d8] sm:$0xff]
        %v386 = vld [vmem:[#allocation3 + $0x1e0] sm:$0xff]
        %v387 = vld [vmem:[#allocation3 + $0x1e8] sm:$0xff]
        %v388 = vld [vmem:[#allocation3 + $0x1f0] sm:$0xff]
        %v389 = vld [vmem:[#allocation3 + $0x1f8] sm:$0xff]
        %v390 = vld [vmem:[%s3] sm:$0xf]
        %v391 = vand.u32 %v387, 4294901760
        %392 = vmatprep.subr.mxu0 %v391
        %v393 = vand.u32 %v386, 4294901760
        %394 = vmatpush1.msra.mxu0 %v393
        %v395 = vand.u32 %v383, 4294901760
        %396 = vmatprep.subr.mxu0 %v395
        %v397 = vand.u32 %v382, 4294901760
        %398 = vmatpush1.msra.mxu0 %v397
        %v399 = vand.u32 %v379, 4294901760
        %400 = vmatprep.subr.mxu0 %v399
        %v401 = vand.u32 %v378, 4294901760
        %402 = vmatpush1.msra.mxu0 %v401
        %v403 = vand.u32 %v375, 4294901760
        %404 = vmatprep.subr.mxu0 %v403
        %v405 = vand.u32 %v374, 4294901760
        %406 = vmatpush1.msra.mxu0 %v405
        %v407 = vand.u32 %v371, 4294901760
        %408 = vmatprep.subr.mxu0 %v407
        %v409 = vand.u32 %v370, 4294901760
        %410 = vmatpush1.msra.mxu0 %v409
        %v411 = vand.u32 %v367, 4294901760
        %412 = vmatprep.subr.mxu0 %v411
        %v413 = vand.u32 %v366, 4294901760
        %414 = vmatpush1.msra.mxu0 %v413
        %v415 = vand.u32 %v363, 4294901760
        %416 = vmatprep.subr.mxu0 %v415
        %v417 = vand.u32 %v362, 4294901760
        %418 = vmatpush1.msra.mxu0 %v417
        %v419 = vand.u32 %v359, 4294901760
        %420 = vmatprep.subr.mxu0 %v419
        %v421 = vand.u32 %v358, 4294901760
        %422 = vmatpush1.msra.mxu0 %v421
        %v423 = vand.u32 %v355, 4294901760
        %424 = vmatprep.subr.mxu0 %v423
        %v425 = vand.u32 %v354, 4294901760
        %426 = vmatpush1.msra.mxu0 %v425
        %v427 = vand.u32 %v351, 4294901760
        %428 = vmatprep.subr.mxu0 %v427
        %v429 = vand.u32 %v350, 4294901760
        %430 = vmatpush1.msra.mxu0 %v429
        %v431 = vand.u32 %v347, 4294901760
        %432 = vmatprep.subr.mxu0 %v431
        %v433 = vand.u32 %v346, 4294901760
        %434 = vmatpush1.msra.mxu0 %v433
        %v435 = vand.u32 %v343, 4294901760
        %436 = vmatprep.subr.mxu0 %v435
        %v437 = vand.u32 %v342, 4294901760
        %438 = vmatpush1.msra.mxu0 %v437
        %v439 = vand.u32 %v339, 4294901760
        %440 = vmatprep.subr.mxu0 %v439
        %v441 = vand.u32 %v338, 4294901760
        %442 = vmatpush1.msra.mxu0 %v441
        %v443 = vand.u32 %v335, 4294901760
        %444 = vmatprep.subr.mxu0 %v443
        %v445 = vand.u32 %v334, 4294901760
        %446 = vmatpush1.msra.mxu0 %v445
        %v447 = vand.u32 %v331, 4294901760
        %448 = vmatprep.subr.mxu0 %v447
        %v449 = vand.u32 %v330, 4294901760
        %450 = vmatpush1.msra.mxu0 %v449
        %v451 = vand.u32 %v327, 4294901760
        %452 = vmatprep.subr.mxu0 %v451
        %v453 = vand.u32 %v326, 4294901760
        %454 = vmatpush1.msra.mxu0 %v453
        %455 = vmatprep.subr.mxu0 0.0
        %456 = vmatpush2.msra.mxu0 0.0
        %457 = vmatprep.subr.mxu0 0.0
        %458 = vmatpush2.msra.mxu0 0.0
        %459 = vmatprep.subr.mxu0 0.0
        %460 = vmatpush2.msra.mxu0 0.0
        %461 = vmatprep.subr.mxu0 0.0
        %462 = vmatpush2.msra.mxu0 0.0
        %463 = vmatprep.subr.mxu0 0.0
        %464 = vmatpush2.msra.mxu0 0.0
        %465 = vmatprep.subr.mxu0 0.0
        %466 = vmatpush2.msra.mxu0 0.0
        %467 = vmatprep.subr.mxu0 0.0
        %468 = vmatpush2.msra.mxu0 0.0
        %469 = vmatprep.subr.mxu0 0.0
        %470 = vmatpush2.msra.mxu0 0.0
        %471 = vmatprep.subr.mxu0 0.0
        %472 = vmatpush2.msra.mxu0 0.0
        %473 = vmatprep.subr.mxu0 0.0
        %474 = vmatpush2.msra.mxu0 0.0
        %475 = vmatprep.subr.mxu0 0.0
        %476 = vmatpush2.msra.mxu0 0.0
        %477 = vmatprep.subr.mxu0 0.0
        %478 = vmatpush2.msra.mxu0 0.0
        %479 = vmatprep.subr.mxu0 0.0
        %480 = vmatpush2.msra.mxu0 0.0
        %481 = vmatprep.subr.mxu0 0.0
        %482 = vmatpush2.msra.mxu0 0.0
        %483 = vmatprep.subr.mxu0 0.0
        %484 = vmatpush2.msra.mxu0 0.0
        %485 = vmatprep.subr.mxu0 0.0
        %486 = vmatpush2.msra.mxu0 0.0
        %487 = vmatprep.mubr.f32.mxu0 0.0
        %v488 = vand.u32 %v322, 4294901760
        %v489 = vsub.f32 %v322, %v488
        %v490 = vand.u32 %v489, 4294901760
        %v491 = vsub.f32 %v489, %v490
        %v492 = vand.u32 %v491, 4294901760
        %493 = vmatmul.mubr.f32.gmra.mxu0 %v492
        %v494 = vpop.f32.mrf.mxu0
        %v495 = vadd.f32 0.0, %v494
        %v496 = vpop.f32.mrf.mxu0
        %v497 = vadd.f32 0.0, %v496
        %498 = vdwg.mxu0
        %v499 = vand.u32 %v387, 4294901760
        %v500 = vsub.f32 %v387, %v499
        %v501 = vand.u32 %v500, 4294901760
        %v502 = vsub.f32 %v500, %v501
        %v503 = vand.u32 %v502, 4294901760
        %504 = vmatprep.subr.mxu0 %v503
        %v505 = vand.u32 %v386, 4294901760
        %v506 = vsub.f32 %v386, %v505
        %v507 = vand.u32 %v506, 4294901760
        %v508 = vsub.f32 %v506, %v507
        %v509 = vand.u32 %v508, 4294901760
        %510 = vmatpush1.msra.mxu0 %v509
        %v511 = vand.u32 %v383, 4294901760
        %v512 = vsub.f32 %v383, %v511
        %v513 = vand.u32 %v512, 4294901760
        %v514 = vsub.f32 %v512, %v513
        %v515 = vand.u32 %v514, 4294901760
        %516 = vmatprep.subr.mxu0 %v515
        %v517 = vand.u32 %v382, 4294901760
        %v518 = vsub.f32 %v382, %v517
        %v519 = vand.u32 %v518, 4294901760
        %v520 = vsub.f32 %v518, %v519
        %v521 = vand.u32 %v520, 4294901760
        %522 = vmatpush1.msra.mxu0 %v521
        %v523 = vand.u32 %v379, 4294901760
        %v524 = vsub.f32 %v379, %v523
        %v525 = vand.u32 %v524, 4294901760
        %v526 = vsub.f32 %v524, %v525
        %v527 = vand.u32 %v526, 4294901760
        %528 = vmatprep.subr.mxu0 %v527
        %v529 = vand.u32 %v378, 4294901760
        %v530 = vsub.f32 %v378, %v529
        %v531 = vand.u32 %v530, 4294901760
        %v532 = vsub.f32 %v530, %v531
        %v533 = vand.u32 %v532, 4294901760
        %534 = vmatpush1.msra.mxu0 %v533
        %v535 = vand.u32 %v375, 4294901760
        %v536 = vsub.f32 %v375, %v535
        %v537 = vand.u32 %v536, 4294901760
        %v538 = vsub.f32 %v536, %v537
        %v539 = vand.u32 %v538, 4294901760
        %540 = vmatprep.subr.mxu0 %v539
        %v541 = vand.u32 %v374, 4294901760
        %v542 = vsub.f32 %v374, %v541
        %v543 = vand.u32 %v542, 4294901760
        %v544 = vsub.f32 %v542, %v543
        %v545 = vand.u32 %v544, 4294901760
        %546 = vmatpush1.msra.mxu0 %v545
        %v547 = vand.u32 %v371, 4294901760
        %v548 = vsub.f32 %v371, %v547
        %v549 = vand.u32 %v548, 4294901760
        %v550 = vsub.f32 %v548, %v549
        %v551 = vand.u32 %v550, 4294901760
        %552 = vmatprep.subr.mxu0 %v551
        %v553 = vand.u32 %v370, 4294901760
        %v554 = vsub.f32 %v370, %v553
        %v555 = vand.u32 %v554, 4294901760
        %v556 = vsub.f32 %v554, %v555
        %v557 = vand.u32 %v556, 4294901760
        %558 = vmatpush1.msra.mxu0 %v557
        %v559 = vand.u32 %v367, 4294901760
        %v560 = vsub.f32 %v367, %v559
        %v561 = vand.u32 %v560, 4294901760
        %v562 = vsub.f32 %v560, %v561
        %v563 = vand.u32 %v562, 4294901760
        %564 = vmatprep.subr.mxu0 %v563
        %v565 = vand.u32 %v366, 4294901760
        %v566 = vsub.f32 %v366, %v565
        %v567 = vand.u32 %v566, 4294901760
        %v568 = vsub.f32 %v566, %v567
        %v569 = vand.u32 %v568, 4294901760
        %570 = vmatpush1.msra.mxu0 %v569
        %v571 = vand.u32 %v363, 4294901760
        %v572 = vsub.f32 %v363, %v571
        %v573 = vand.u32 %v572, 4294901760
        %v574 = vsub.f32 %v572, %v573
        %v575 = vand.u32 %v574, 4294901760
        %576 = vmatprep.subr.mxu0 %v575
        %v577 = vand.u32 %v362, 4294901760
        %v578 = vsub.f32 %v362, %v577
        %v579 = vand.u32 %v578, 4294901760
        %v580 = vsub.f32 %v578, %v579
        %v581 = vand.u32 %v580, 4294901760
        %582 = vmatpush1.msra.mxu0 %v581
        %v583 = vand.u32 %v359, 4294901760
        %v584 = vsub.f32 %v359, %v583
        %v585 = vand.u32 %v584, 4294901760
        %v586 = vsub.f32 %v584, %v585
        %v587 = vand.u32 %v586, 4294901760
        %588 = vmatprep.subr.mxu0 %v587
        %v589 = vand.u32 %v358, 4294901760
        %v590 = vsub.f32 %v358, %v589
        %v591 = vand.u32 %v590, 4294901760
        %v592 = vsub.f32 %v590, %v591
        %v593 = vand.u32 %v592, 4294901760
        %594 = vmatpush1.msra.mxu0 %v593
        %v595 = vand.u32 %v355, 4294901760
        %v596 = vsub.f32 %v355, %v595
        %v597 = vand.u32 %v596, 4294901760
        %v598 = vsub.f32 %v596, %v597
        %v599 = vand.u32 %v598, 4294901760
        %600 = vmatprep.subr.mxu0 %v599
        %v601 = vand.u32 %v354, 4294901760
        %v602 = vsub.f32 %v354, %v601
        %v603 = vand.u32 %v602, 4294901760
        %v604 = vsub.f32 %v602, %v603
        %v605 = vand.u32 %v604, 4294901760
        %606 = vmatpush1.msra.mxu0 %v605
        %v607 = vand.u32 %v351, 4294901760
        %v608 = vsub.f32 %v351, %v607
        %v609 = vand.u32 %v608, 4294901760
        %v610 = vsub.f32 %v608, %v609
        %v611 = vand.u32 %v610, 4294901760
        %612 = vmatprep.subr.mxu0 %v611
        %v613 = vand.u32 %v350, 4294901760
        %v614 = vsub.f32 %v350, %v613
        %v615 = vand.u32 %v614, 4294901760
        %v616 = vsub.f32 %v614, %v615
        %v617 = vand.u32 %v616, 4294901760
        %618 = vmatpush1.msra.mxu0 %v617
        %v619 = vand.u32 %v347, 4294901760
        %v620 = vsub.f32 %v347, %v619
        %v621 = vand.u32 %v620, 4294901760
        %v622 = vsub.f32 %v620, %v621
        %v623 = vand.u32 %v622, 4294901760
        %624 = vmatprep.subr.mxu0 %v623
        %v625 = vand.u32 %v346, 4294901760
        %v626 = vsub.f32 %v346, %v625
        %v627 = vand.u32 %v626, 4294901760
        %v628 = vsub.f32 %v626, %v627
        %v629 = vand.u32 %v628, 4294901760
        %630 = vmatpush1.msra.mxu0 %v629
        %v631 = vand.u32 %v343, 4294901760
        %v632 = vsub.f32 %v343, %v631
        %v633 = vand.u32 %v632, 4294901760
        %v634 = vsub.f32 %v632, %v633
        %v635 = vand.u32 %v634, 4294901760
        %636 = vmatprep.subr.mxu0 %v635
        %v637 = vand.u32 %v342, 4294901760
        %v638 = vsub.f32 %v342, %v637
        %v639 = vand.u32 %v638, 4294901760
        %v640 = vsub.f32 %v638, %v639
        %v641 = vand.u32 %v640, 4294901760
        %642 = vmatpush1.msra.mxu0 %v641
        %v643 = vand.u32 %v339, 4294901760
        %v644 = vsub.f32 %v339, %v643
        %v645 = vand.u32 %v644, 4294901760
        %v646 = vsub.f32 %v644, %v645
        %v647 = vand.u32 %v646, 4294901760
        %648 = vmatprep.subr.mxu0 %v647
        %v649 = vand.u32 %v338, 4294901760
        %v650 = vsub.f32 %v338, %v649
        %v651 = vand.u32 %v650, 4294901760
        %v652 = vsub.f32 %v650, %v651
        %v653 = vand.u32 %v652, 4294901760
        %654 = vmatpush1.msra.mxu0 %v653
        %v655 = vand.u32 %v335, 4294901760
        %v656 = vsub.f32 %v335, %v655
        %v657 = vand.u32 %v656, 4294901760
        %v658 = vsub.f32 %v656, %v657
        %v659 = vand.u32 %v658, 4294901760
        %660 = vmatprep.subr.mxu0 %v659
        %v661 = vand.u32 %v334, 4294901760
        %v662 = vsub.f32 %v334, %v661
        %v663 = vand.u32 %v662, 4294901760
        %v664 = vsub.f32 %v662, %v663
        %v665 = vand.u32 %v664, 4294901760
        %666 = vmatpush1.msra.mxu0 %v665
        %v667 = vand.u32 %v331, 4294901760
        %v668 = vsub.f32 %v331, %v667
        %v669 = vand.u32 %v668, 4294901760
        %v670 = vsub.f32 %v668, %v669
        %v671 = vand.u32 %v670, 4294901760
        %672 = vmatprep.subr.mxu0 %v671
        %v673 = vand.u32 %v330, 4294901760
        %v674 = vsub.f32 %v330, %v673
        %v675 = vand.u32 %v674, 4294901760
        %v676 = vsub.f32 %v674, %v675
        %v677 = vand.u32 %v676, 4294901760
        %678 = vmatpush1.msra.mxu0 %v677
        %v679 = vand.u32 %v327, 4294901760
        %v680 = vsub.f32 %v327, %v679
        %v681 = vand.u32 %v680, 4294901760
        %v682 = vsub.f32 %v680, %v681
        %v683 = vand.u32 %v682, 4294901760
        %684 = vmatprep.subr.mxu0 %v683
        %v685 = vand.u32 %v326, 4294901760
        %v686 = vsub.f32 %v326, %v685
        %v687 = vand.u32 %v686, 4294901760
        %v688 = vsub.f32 %v686, %v687
        %v689 = vand.u32 %v688, 4294901760
        %690 = vmatpush1.msra.mxu0 %v689
        %691 = vmatprep.subr.mxu0 0.0
        %692 = vmatpush2.msra.mxu0 0.0
        %693 = vmatprep.subr.mxu0 0.0
        %694 = vmatpush2.msra.mxu0 0.0
        %695 = vmatprep.subr.mxu0 0.0
        %696 = vmatpush2.msra.mxu0 0.0
        %697 = vmatprep.subr.mxu0 0.0
        %698 = vmatpush2.msra.mxu0 0.0
        %699 = vmatprep.subr.mxu0 0.0
        %700 = vmatpush2.msra.mxu0 0.0
        %701 = vmatprep.subr.mxu0 0.0
        %702 = vmatpush2.msra.mxu0 0.0
        %703 = vmatprep.subr.mxu0 0.0
        %704 = vmatpush2.msra.mxu0 0.0
        %705 = vmatprep.subr.mxu0 0.0
        %706 = vmatpush2.msra.mxu0 0.0
        %707 = vmatprep.subr.mxu0 0.0
        %708 = vmatpush2.msra.mxu0 0.0
        %709 = vmatprep.subr.mxu0 0.0
        %710 = vmatpush2.msra.mxu0 0.0
        %711 = vmatprep.subr.mxu0 0.0
        %712 = vmatpush2.msra.mxu0 0.0
        %713 = vmatprep.subr.mxu0 0.0
        %714 = vmatpush2.msra.mxu0 0.0
        %715 = vmatprep.subr.mxu0 0.0
        %716 = vmatpush2.msra.mxu0 0.0
        %717 = vmatprep.subr.mxu0 0.0
        %718 = vmatpush2.msra.mxu0 0.0
        %719 = vmatprep.subr.mxu0 0.0
        %720 = vmatpush2.msra.mxu0 0.0
        %721 = vmatprep.subr.mxu0 0.0
        %722 = vmatpush2.msra.mxu0 0.0
        %723 = vmatprep.mubr.f32.mxu0 0.0
        %v724 = vand.u32 %v322, 4294901760
        %725 = vmatmul.mubr.f32.gmra.mxu0 %v724
        %v726 = vpop.f32.mrf.mxu0
        %v727 = vadd.f32 %v495, %v726
        %v728 = vpop.f32.mrf.mxu0
        %v729 = vadd.f32 %v497, %v728
        %730 = vdwg.mxu0
        %v731 = vand.u32 %v387, 4294901760
        %v732 = vsub.f32 %v387, %v731
        %733 = vmatprep.subr.mxu0 %v732
        %v734 = vand.u32 %v386, 4294901760
        %v735 = vsub.f32 %v386, %v734
        %736 = vmatpush1.msra.mxu0 %v735
        %v737 = vand.u32 %v383, 4294901760
        %v738 = vsub.f32 %v383, %v737
        %739 = vmatprep.subr.mxu0 %v738
        %v740 = vand.u32 %v382, 4294901760
        %v741 = vsub.f32 %v382, %v740
        %742 = vmatpush1.msra.mxu0 %v741
        %v743 = vand.u32 %v379, 4294901760
        %v744 = vsub.f32 %v379, %v743
        %745 = vmatprep.subr.mxu0 %v744
        %v746 = vand.u32 %v378, 4294901760
        %v747 = vsub.f32 %v378, %v746
        %748 = vmatpush1.msra.mxu0 %v747
        %v749 = vand.u32 %v375, 4294901760
        %v750 = vsub.f32 %v375, %v749
        %751 = vmatprep.subr.mxu0 %v750
        %v752 = vand.u32 %v374, 4294901760
        %v753 = vsub.f32 %v374, %v752
        %754 = vmatpush1.msra.mxu0 %v753
        %v755 = vand.u32 %v371, 4294901760
        %v756 = vsub.f32 %v371, %v755
        %757 = vmatprep.subr.mxu0 %v756
        %v758 = vand.u32 %v370, 4294901760
        %v759 = vsub.f32 %v370, %v758
        %760 = vmatpush1.msra.mxu0 %v759
        %v761 = vand.u32 %v367, 4294901760
        %v762 = vsub.f32 %v367, %v761
        %763 = vmatprep.subr.mxu0 %v762
        %v764 = vand.u32 %v366, 4294901760
        %v765 = vsub.f32 %v366, %v764
        %766 = vmatpush1.msra.mxu0 %v765
        %v767 = vand.u32 %v363, 4294901760
        %v768 = vsub.f32 %v363, %v767
        %769 = vmatprep.subr.mxu0 %v768
        %v770 = vand.u32 %v362, 4294901760
        %v771 = vsub.f32 %v362, %v770
        %772 = vmatpush1.msra.mxu0 %v771
        %v773 = vand.u32 %v359, 4294901760
        %v774 = vsub.f32 %v359, %v773
        %775 = vmatprep.subr.mxu0 %v774
        %v776 = vand.u32 %v358, 4294901760
        %v777 = vsub.f32 %v358, %v776
        %778 = vmatpush1.msra.mxu0 %v777
        %v779 = vand.u32 %v355, 4294901760
        %v780 = vsub.f32 %v355, %v779
        %781 = vmatprep.subr.mxu0 %v780
        %v782 = vand.u32 %v354, 4294901760
        %v783 = vsub.f32 %v354, %v782
        %784 = vmatpush1.msra.mxu0 %v783
        %v785 = vand.u32 %v351, 4294901760
        %v786 = vsub.f32 %v351, %v785
        %787 = vmatprep.subr.mxu0 %v786
        %v788 = vand.u32 %v350, 4294901760
        %v789 = vsub.f32 %v350, %v788
        %790 = vmatpush1.msra.mxu0 %v789
        %v791 = vand.u32 %v347, 4294901760
        %v792 = vsub.f32 %v347, %v791
        %793 = vmatprep.subr.mxu0 %v792
        %v794 = vand.u32 %v346, 4294901760
        %v795 = vsub.f32 %v346, %v794
        %796 = vmatpush1.msra.mxu0 %v795
        %v797 = vand.u32 %v343, 4294901760
        %v798 = vsub.f32 %v343, %v797
        %799 = vmatprep.subr.mxu0 %v798
        %v800 = vand.u32 %v342, 4294901760
        %v801 = vsub.f32 %v342, %v800
        %802 = vmatpush1.msra.mxu0 %v801
        %v803 = vand.u32 %v339, 4294901760
        %v804 = vsub.f32 %v339, %v803
        %805 = vmatprep.subr.mxu0 %v804
        %v806 = vand.u32 %v338, 4294901760
        %v807 = vsub.f32 %v338, %v806
        %808 = vmatpush1.msra.mxu0 %v807
        %v809 = vand.u32 %v335, 4294901760
        %v810 = vsub.f32 %v335, %v809
        %811 = vmatprep.subr.mxu0 %v810
        %v812 = vand.u32 %v334, 4294901760
        %v813 = vsub.f32 %v334, %v812
        %814 = vmatpush1.msra.mxu0 %v813
        %v815 = vand.u32 %v331, 4294901760
        %v816 = vsub.f32 %v331, %v815
        %817 = vmatprep.subr.mxu0 %v816
        %v818 = vand.u32 %v330, 4294901760
        %v819 = vsub.f32 %v330, %v818
        %820 = vmatpush1.msra.mxu0 %v819
        %v821 = vand.u32 %v327, 4294901760
        %v822 = vsub.f32 %v327, %v821
        %823 = vmatprep.subr.mxu0 %v822
        %v824 = vand.u32 %v326, 4294901760
        %v825 = vsub.f32 %v326, %v824
        %826 = vmatpush1.msra.mxu0 %v825
        %827 = vmatprep.subr.mxu0 0.0
        %828 = vmatpush2.msra.mxu0 0.0
        %829 = vmatprep.subr.mxu0 0.0
        %830 = vmatpush2.msra.mxu0 0.0
        %831 = vmatprep.subr.mxu0 0.0
        %832 = vmatpush2.msra.mxu0 0.0
        %833 = vmatprep.subr.mxu0 0.0
        %834 = vmatpush2.msra.mxu0 0.0
        %835 = vmatprep.subr.mxu0 0.0
        %836 = vmatpush2.msra.mxu0 0.0
        %837 = vmatprep.subr.mxu0 0.0
        %838 = vmatpush2.msra.mxu0 0.0
        %839 = vmatprep.subr.mxu0 0.0
        %840 = vmatpush2.msra.mxu0 0.0
        %841 = vmatprep.subr.mxu0 0.0
        %842 = vmatpush2.msra.mxu0 0.0
        %843 = vmatprep.subr.mxu0 0.0
        %844 = vmatpush2.msra.mxu0 0.0
        %845 = vmatprep.subr.mxu0 0.0
        %846 = vmatpush2.msra.mxu0 0.0
        %847 = vmatprep.subr.mxu0 0.0
        %848 = vmatpush2.msra.mxu0 0.0
        %849 = vmatprep.subr.mxu0 0.0
        %850 = vmatpush2.msra.mxu0 0.0
        %851 = vmatprep.subr.mxu0 0.0
        %852 = vmatpush2.msra.mxu0 0.0
        %853 = vmatprep.subr.mxu0 0.0
        %854 = vmatpush2.msra.mxu0 0.0
        %855 = vmatprep.subr.mxu0 0.0
        %856 = vmatpush2.msra.mxu0 0.0
        %857 = vmatprep.subr.mxu0 0.0
        %858 = vmatpush2.msra.mxu0 0.0
        %859 = vmatprep.mubr.f32.mxu0 0.0
        %v860 = vand.u32 %v322, 4294901760
        %v861 = vsub.f32 %v322, %v860
        %862 = vmatmul.mubr.f32.gmra.mxu0 %v861
        %v863 = vpop.f32.mrf.mxu0
        %v864 = vadd.f32 %v727, %v863
        %v865 = vpop.f32.mrf.mxu0
        %v866 = vadd.f32 %v729, %v865
        %867 = vdwg.mxu0
        %v868 = vand.u32 %v387, 4294901760
        %869 = vmatprep.subr.mxu0 %v868
        %v870 = vand.u32 %v386, 4294901760
        %871 = vmatpush1.msra.mxu0 %v870
        %v872 = vand.u32 %v383, 4294901760
        %873 = vmatprep.subr.mxu0 %v872
        %v874 = vand.u32 %v382, 4294901760
        %875 = vmatpush1.msra.mxu0 %v874
        %v876 = vand.u32 %v379, 4294901760
        %877 = vmatprep.subr.mxu0 %v876
        %v878 = vand.u32 %v378, 4294901760
        %879 = vmatpush1.msra.mxu0 %v878
        %v880 = vand.u32 %v375, 4294901760
        %881 = vmatprep.subr.mxu0 %v880
        %v882 = vand.u32 %v374, 4294901760
        %883 = vmatpush1.msra.mxu0 %v882
        %v884 = vand.u32 %v371, 4294901760
        %885 = vmatprep.subr.mxu0 %v884
        %v886 = vand.u32 %v370, 4294901760
        %887 = vmatpush1.msra.mxu0 %v886
        %v888 = vand.u32 %v367, 4294901760
        %889 = vmatprep.subr.mxu0 %v888
        %v890 = vand.u32 %v366, 4294901760
        %891 = vmatpush1.msra.mxu0 %v890
        %v892 = vand.u32 %v363, 4294901760
        %893 = vmatprep.subr.mxu0 %v892
        %v894 = vand.u32 %v362, 4294901760
        %895 = vmatpush1.msra.mxu0 %v894
        %v896 = vand.u32 %v359, 4294901760
        %897 = vmatprep.subr.mxu0 %v896
        %v898 = vand.u32 %v358, 4294901760
        %899 = vmatpush1.msra.mxu0 %v898
        %v900 = vand.u32 %v355, 4294901760
        %901 = vmatprep.subr.mxu0 %v900
        %v902 = vand.u32 %v354, 4294901760
        %903 = vmatpush1.msra.mxu0 %v902
        %v904 = vand.u32 %v351, 4294901760
        %905 = vmatprep.subr.mxu0 %v904
        %v906 = vand.u32 %v350, 4294901760
        %907 = vmatpush1.msra.mxu0 %v906
        %v908 = vand.u32 %v347, 4294901760
        %909 = vmatprep.subr.mxu0 %v908
        %v910 = vand.u32 %v346, 4294901760
        %911 = vmatpush1.msra.mxu0 %v910
        %v912 = vand.u32 %v343, 4294901760
        %913 = vmatprep.subr.mxu0 %v912
        %v914 = vand.u32 %v342, 4294901760
        %915 = vmatpush1.msra.mxu0 %v914
        %v916 = vand.u32 %v339, 4294901760
        %917 = vmatprep.subr.mxu0 %v916
        %v918 = vand.u32 %v338, 4294901760
        %919 = vmatpush1.msra.mxu0 %v918
        %v920 = vand.u32 %v335, 4294901760
        %921 = vmatprep.subr.mxu0 %v920
        %v922 = vand.u32 %v334, 4294901760
        %923 = vmatpush1.msra.mxu0 %v922
        %v924 = vand.u32 %v331, 4294901760
        %925 = vmatprep.subr.mxu0 %v924
        %v926 = vand.u32 %v330, 4294901760
        %927 = vmatpush1.msra.mxu0 %v926
        %v928 = vand.u32 %v327, 4294901760
        %929 = vmatprep.subr.mxu0 %v928
        %v930 = vand.u32 %v326, 4294901760
        %931 = vmatpush1.msra.mxu0 %v930
        %932 = vmatprep.subr.mxu0 0.0
        %933 = vmatpush2.msra.mxu0 0.0
        %934 = vmatprep.subr.mxu0 0.0
        %935 = vmatpush2.msra.mxu0 0.0
        %936 = vmatprep.subr.mxu0 0.0
        %937 = vmatpush2.msra.mxu0 0.0
        %938 = vmatprep.subr.mxu0 0.0
        %939 = vmatpush2.msra.mxu0 0.0
        %940 = vmatprep.subr.mxu0 0.0
        %941 = vmatpush2.msra.mxu0 0.0
        %942 = vmatprep.subr.mxu0 0.0
        %943 = vmatpush2.msra.mxu0 0.0
        %944 = vmatprep.subr.mxu0 0.0
        %945 = vmatpush2.msra.mxu0 0.0
        %946 = vmatprep.subr.mxu0 0.0
        %947 = vmatpush2.msra.mxu0 0.0
        %948 = vmatprep.subr.mxu0 0.0
        %949 = vmatpush2.msra.mxu0 0.0
        %950 = vmatprep.subr.mxu0 0.0
        %951 = vmatpush2.msra.mxu0 0.0
        %952 = vmatprep.subr.mxu0 0.0
        %953 = vmatpush2.msra.mxu0 0.0
        %954 = vmatprep.subr.mxu0 0.0
        %955 = vmatpush2.msra.mxu0 0.0
        %956 = vmatprep.subr.mxu0 0.0
        %957 = vmatpush2.msra.mxu0 0.0
        %958 = vmatprep.subr.mxu0 0.0
        %959 = vmatpush2.msra.mxu0 0.0
        %960 = vmatprep.subr.mxu0 0.0
        %961 = vmatpush2.msra.mxu0 0.0
        %962 = vmatprep.subr.mxu0 0.0
        %963 = vmatpush2.msra.mxu0 0.0
        %964 = vmatprep.mubr.f32.mxu0 0.0
        %v965 = vand.u32 %v322, 4294901760
        %v966 = vsub.f32 %v322, %v965
        %v967 = vand.u32 %v966, 4294901760
        %968 = vmatmul.mubr.f32.gmra.mxu0 %v967
        %v969 = vpop.f32.mrf.mxu0
        %v970 = vadd.f32 %v864, %v969
        %v971 = vpop.f32.mrf.mxu0
        %v972 = vadd.f32 %v866, %v971
        %973 = vdwg.mxu0
        %v974 = vand.u32 %v387, 4294901760
        %v975 = vsub.f32 %v387, %v974
        %v976 = vand.u32 %v975, 4294901760
        %977 = vmatprep.subr.mxu0 %v976
        %v978 = vand.u32 %v386, 4294901760
        %v979 = vsub.f32 %v386, %v978
        %v980 = vand.u32 %v979, 4294901760
        %981 = vmatpush1.msra.mxu0 %v980
        %v982 = vand.u32 %v383, 4294901760
        %v983 = vsub.f32 %v383, %v982
        %v984 = vand.u32 %v983, 4294901760
        %985 = vmatprep.subr.mxu0 %v984
        %v986 = vand.u32 %v382, 4294901760
        %v987 = vsub.f32 %v382, %v986
        %v988 = vand.u32 %v987, 4294901760
        %989 = vmatpush1.msra.mxu0 %v988
        %v990 = vand.u32 %v379, 4294901760
        %v991 = vsub.f32 %v379, %v990
        %v992 = vand.u32 %v991, 4294901760
        %993 = vmatprep.subr.mxu0 %v992
        %v994 = vand.u32 %v378, 4294901760
        %v995 = vsub.f32 %v378, %v994
        %v996 = vand.u32 %v995, 4294901760
        %997 = vmatpush1.msra.mxu0 %v996
        %v998 = vand.u32 %v375, 4294901760
        %v999 = vsub.f32 %v375, %v998
        %v1000 = vand.u32 %v999, 4294901760
        %1001 = vmatprep.subr.mxu0 %v1000
        %v1002 = vand.u32 %v374, 4294901760
        %v1003 = vsub.f32 %v374, %v1002
        %v1004 = vand.u32 %v1003, 4294901760
        %1005 = vmatpush1.msra.mxu0 %v1004
        %v1006 = vand.u32 %v371, 4294901760
        %v1007 = vsub.f32 %v371, %v1006
        %v1008 = vand.u32 %v1007, 4294901760
        %1009 = vmatprep.subr.mxu0 %v1008
        %v1010 = vand.u32 %v370, 4294901760
        %v1011 = vsub.f32 %v370, %v1010
        %v1012 = vand.u32 %v1011, 4294901760
        %1013 = vmatpush1.msra.mxu0 %v1012
        %v1014 = vand.u32 %v367, 4294901760
        %v1015 = vsub.f32 %v367, %v1014
        %v1016 = vand.u32 %v1015, 4294901760
        %1017 = vmatprep.subr.mxu0 %v1016
        %v1018 = vand.u32 %v366, 4294901760
        %v1019 = vsub.f32 %v366, %v1018
        %v1020 = vand.u32 %v1019, 4294901760
        %1021 = vmatpush1.msra.mxu0 %v1020
        %v1022 = vand.u32 %v363, 4294901760
        %v1023 = vsub.f32 %v363, %v1022
        %v1024 = vand.u32 %v1023, 4294901760
        %1025 = vmatprep.subr.mxu0 %v1024
        %v1026 = vand.u32 %v362, 4294901760
        %v1027 = vsub.f32 %v362, %v1026
        %v1028 = vand.u32 %v1027, 4294901760
        %1029 = vmatpush1.msra.mxu0 %v1028
        %v1030 = vand.u32 %v359, 4294901760
        %v1031 = vsub.f32 %v359, %v1030
        %v1032 = vand.u32 %v1031, 4294901760
        %1033 = vmatprep.subr.mxu0 %v1032
        %v1034 = vand.u32 %v358, 4294901760
        %v1035 = vsub.f32 %v358, %v1034
        %v1036 = vand.u32 %v1035, 4294901760
        %1037 = vmatpush1.msra.mxu0 %v1036
        %v1038 = vand.u32 %v355, 4294901760
        %v1039 = vsub.f32 %v355, %v1038
        %v1040 = vand.u32 %v1039, 4294901760
        %1041 = vmatprep.subr.mxu0 %v1040
        %v1042 = vand.u32 %v354, 4294901760
        %v1043 = vsub.f32 %v354, %v1042
        %v1044 = vand.u32 %v1043, 4294901760
        %1045 = vmatpush1.msra.mxu0 %v1044
        %v1046 = vand.u32 %v351, 4294901760
        %v1047 = vsub.f32 %v351, %v1046
        %v1048 = vand.u32 %v1047, 4294901760
        %1049 = vmatprep.subr.mxu0 %v1048
        %v1050 = vand.u32 %v350, 4294901760
        %v1051 = vsub.f32 %v350, %v1050
        %v1052 = vand.u32 %v1051, 4294901760
        %1053 = vmatpush1.msra.mxu0 %v1052
        %v1054 = vand.u32 %v347, 4294901760
        %v1055 = vsub.f32 %v347, %v1054
        %v1056 = vand.u32 %v1055, 4294901760
        %1057 = vmatprep.subr.mxu0 %v1056
        %v1058 = vand.u32 %v346, 4294901760
        %v1059 = vsub.f32 %v346, %v1058
        %v1060 = vand.u32 %v1059, 4294901760
        %1061 = vmatpush1.msra.mxu0 %v1060
        %v1062 = vand.u32 %v343, 4294901760
        %v1063 = vsub.f32 %v343, %v1062
        %v1064 = vand.u32 %v1063, 4294901760
        %1065 = vmatprep.subr.mxu0 %v1064
        %v1066 = vand.u32 %v342, 4294901760
        %v1067 = vsub.f32 %v342, %v1066
        %v1068 = vand.u32 %v1067, 4294901760
        %1069 = vmatpush1.msra.mxu0 %v1068
        %v1070 = vand.u32 %v339, 4294901760
        %v1071 = vsub.f32 %v339, %v1070
        %v1072 = vand.u32 %v1071, 4294901760
        %1073 = vmatprep.subr.mxu0 %v1072
        %v1074 = vand.u32 %v338, 4294901760
        %v1075 = vsub.f32 %v338, %v1074
        %v1076 = vand.u32 %v1075, 4294901760
        %1077 = vmatpush1.msra.mxu0 %v1076
        %v1078 = vand.u32 %v335, 4294901760
        %v1079 = vsub.f32 %v335, %v1078
        %v1080 = vand.u32 %v1079, 4294901760
        %1081 = vmatprep.subr.mxu0 %v1080
        %v1082 = vand.u32 %v334, 4294901760
        %v1083 = vsub.f32 %v334, %v1082
        %v1084 = vand.u32 %v1083, 4294901760
        %1085 = vmatpush1.msra.mxu0 %v1084
        %v1086 = vand.u32 %v331, 4294901760
        %v1087 = vsub.f32 %v331, %v1086
        %v1088 = vand.u32 %v1087, 4294901760
        %1089 = vmatprep.subr.mxu0 %v1088
        %v1090 = vand.u32 %v330, 4294901760
        %v1091 = vsub.f32 %v330, %v1090
        %v1092 = vand.u32 %v1091, 4294901760
        %1093 = vmatpush1.msra.mxu0 %v1092
        %v1094 = vand.u32 %v327, 4294901760
        %v1095 = vsub.f32 %v327, %v1094
        %v1096 = vand.u32 %v1095, 4294901760
        %1097 = vmatprep.subr.mxu0 %v1096
        %v1098 = vand.u32 %v326, 4294901760
        %v1099 = vsub.f32 %v326, %v1098
        %v1100 = vand.u32 %v1099, 4294901760
        %1101 = vmatpush1.msra.mxu0 %v1100
        %1102 = vmatprep.subr.mxu0 0.0
        %1103 = vmatpush2.msra.mxu0 0.0
        %1104 = vmatprep.subr.mxu0 0.0
        %1105 = vmatpush2.msra.mxu0 0.0
        %1106 = vmatprep.subr.mxu0 0.0
        %1107 = vmatpush2.msra.mxu0 0.0
        %1108 = vmatprep.subr.mxu0 0.0
        %1109 = vmatpush2.msra.mxu0 0.0
        %1110 = vmatprep.subr.mxu0 0.0
        %1111 = vmatpush2.msra.mxu0 0.0
        %1112 = vmatprep.subr.mxu0 0.0
        %1113 = vmatpush2.msra.mxu0 0.0
        %1114 = vmatprep.subr.mxu0 0.0
        %1115 = vmatpush2.msra.mxu0 0.0
        %1116 = vmatprep.subr.mxu0 0.0
        %1117 = vmatpush2.msra.mxu0 0.0
        %1118 = vmatprep.subr.mxu0 0.0
        %1119 = vmatpush2.msra.mxu0 0.0
        %1120 = vmatprep.subr.mxu0 0.0
        %1121 = vmatpush2.msra.mxu0 0.0
        %1122 = vmatprep.subr.mxu0 0.0
        %1123 = vmatpush2.msra.mxu0 0.0
        %1124 = vmatprep.subr.mxu0 0.0
        %1125 = vmatpush2.msra.mxu0 0.0
        %1126 = vmatprep.subr.mxu0 0.0
        %1127 = vmatpush2.msra.mxu0 0.0
        %1128 = vmatprep.subr.mxu0 0.0
        %1129 = vmatpush2.msra.mxu0 0.0
        %1130 = vmatprep.subr.mxu0 0.0
        %1131 = vmatpush2.msra.mxu0 0.0
        %1132 = vmatprep.subr.mxu0 0.0
        %1133 = vmatpush2.msra.mxu0 0.0
        %1134 = vmatprep.mubr.f32.mxu0 0.0
        %v1135 = vand.u32 %v322, 4294901760
        %1136 = vmatmul.mubr.f32.gmra.mxu0 %v1135
        %v1137 = vpop.f32.mrf.mxu0
        %v1138 = vadd.f32 %v970, %v1137
        %v1139 = vpop.f32.mrf.mxu0
        %v1140 = vadd.f32 %v972, %v1139
        %1141 = vdwg.mxu0
        %v1142 = vand.u32 %v387, 4294901760
        %1143 = vmatprep.subr.mxu0 %v1142
        %v1144 = vand.u32 %v386, 4294901760
        %1145 = vmatpush1.msra.mxu0 %v1144
        %v1146 = vand.u32 %v383, 4294901760
        %1147 = vmatprep.subr.mxu0 %v1146
        %v1148 = vand.u32 %v382, 4294901760
        %1149 = vmatpush1.msra.mxu0 %v1148
        %v1150 = vand.u32 %v379, 4294901760
        %1151 = vmatprep.subr.mxu0 %v1150
        %v1152 = vand.u32 %v378, 4294901760
        %1153 = vmatpush1.msra.mxu0 %v1152
        %v1154 = vand.u32 %v375, 4294901760
        %1155 = vmatprep.subr.mxu0 %v1154
        %v1156 = vand.u32 %v374, 4294901760
        %1157 = vmatpush1.msra.mxu0 %v1156
        %v1158 = vand.u32 %v371, 4294901760
        %1159 = vmatprep.subr.mxu0 %v1158
        %v1160 = vand.u32 %v370, 4294901760
        %1161 = vmatpush1.msra.mxu0 %v1160
        %v1162 = vand.u32 %v367, 4294901760
        %1163 = vmatprep.subr.mxu0 %v1162
        %v1164 = vand.u32 %v366, 4294901760
        %1165 = vmatpush1.msra.mxu0 %v1164
        %v1166 = vand.u32 %v363, 4294901760
        %1167 = vmatprep.subr.mxu0 %v1166
        %v1168 = vand.u32 %v362, 4294901760
        %1169 = vmatpush1.msra.mxu0 %v1168
        %v1170 = vand.u32 %v359, 4294901760
        %1171 = vmatprep.subr.mxu0 %v1170
        %v1172 = vand.u32 %v358, 4294901760
        %1173 = vmatpush1.msra.mxu0 %v1172
        %v1174 = vand.u32 %v355, 4294901760
        %1175 = vmatprep.subr.mxu0 %v1174
        %v1176 = vand.u32 %v354, 4294901760
        %1177 = vmatpush1.msra.mxu0 %v1176
        %v1178 = vand.u32 %v351, 4294901760
        %1179 = vmatprep.subr.mxu0 %v1178
        %v1180 = vand.u32 %v350, 4294901760
        %1181 = vmatpush1.msra.mxu0 %v1180
        %v1182 = vand.u32 %v347, 4294901760
        %1183 = vmatprep.subr.mxu0 %v1182
        %v1184 = vand.u32 %v346, 4294901760
        %1185 = vmatpush1.msra.mxu0 %v1184
        %v1186 = vand.u32 %v343, 4294901760
        %1187 = vmatprep.subr.mxu0 %v1186
        %v1188 = vand.u32 %v342, 4294901760
        %1189 = vmatpush1.msra.mxu0 %v1188
        %v1190 = vand.u32 %v339, 4294901760
        %1191 = vmatprep.subr.mxu0 %v1190
        %v1192 = vand.u32 %v338, 4294901760
        %1193 = vmatpush1.msra.mxu0 %v1192
        %v1194 = vand.u32 %v335, 4294901760
        %1195 = vmatprep.subr.mxu0 %v1194
        %v1196 = vand.u32 %v334, 4294901760
        %1197 = vmatpush1.msra.mxu0 %v1196
        %v1198 = vand.u32 %v331, 4294901760
        %1199 = vmatprep.subr.mxu0 %v1198
        %v1200 = vand.u32 %v330, 4294901760
        %1201 = vmatpush1.msra.mxu0 %v1200
        %v1202 = vand.u32 %v327, 4294901760
        %1203 = vmatprep.subr.mxu0 %v1202
        %v1204 = vand.u32 %v326, 4294901760
        %1205 = vmatpush1.msra.mxu0 %v1204
        %1206 = vmatprep.subr.mxu0 0.0
        %1207 = vmatpush2.msra.mxu0 0.0
        %1208 = vmatprep.subr.mxu0 0.0
        %1209 = vmatpush2.msra.mxu0 0.0
        %1210 = vmatprep.subr.mxu0 0.0
        %1211 = vmatpush2.msra.mxu0 0.0
        %1212 = vmatprep.subr.mxu0 0.0
        %1213 = vmatpush2.msra.mxu0 0.0
        %1214 = vmatprep.subr.mxu0 0.0
        %1215 = vmatpush2.msra.mxu0 0.0
        %1216 = vmatprep.subr.mxu0 0.0
        %1217 = vmatpush2.msra.mxu0 0.0
        %1218 = vmatprep.subr.mxu0 0.0
        %1219 = vmatpush2.msra.mxu0 0.0
        %1220 = vmatprep.subr.mxu0 0.0
        %1221 = vmatpush2.msra.mxu0 0.0
        %1222 = vmatprep.subr.mxu0 0.0
        %1223 = vmatpush2.msra.mxu0 0.0
        %1224 = vmatprep.subr.mxu0 0.0
        %1225 = vmatpush2.msra.mxu0 0.0
        %1226 = vmatprep.subr.mxu0 0.0
        %1227 = vmatpush2.msra.mxu0 0.0
        %1228 = vmatprep.subr.mxu0 0.0
        %1229 = vmatpush2.msra.mxu0 0.0
        %1230 = vmatprep.subr.mxu0 0.0
        %1231 = vmatpush2.msra.mxu0 0.0
        %1232 = vmatprep.subr.mxu0 0.0
        %1233 = vmatpush2.msra.mxu0 0.0
        %1234 = vmatprep.subr.mxu0 0.0
        %1235 = vmatpush2.msra.mxu0 0.0
        %1236 = vmatprep.subr.mxu0 0.0
        %1237 = vmatpush2.msra.mxu0 0.0
        %1238 = vmatprep.mubr.f32.mxu0 0.0
        %v1239 = vand.u32 %v322, 4294901760
        %1240 = vmatmul.mubr.f32.gmra.mxu0 %v1239
        %v1241 = vpop.f32.mrf.mxu0
        %v1242 = vadd.f32 %v1138, %v1241
        %v1243 = vpop.f32.mrf.mxu0
        %v1244 = vadd.f32 %v1140, %v1243
        %1245 = vdwg.mxu0
        %v1246 = vand.u32 %v389, 4294901760
        %1247 = vmatprep.subr.mxu0 %v1246
        %v1248 = vand.u32 %v388, 4294901760
        %1249 = vmatpush1.msra.mxu0 %v1248
        %v1250 = vand.u32 %v385, 4294901760
        %1251 = vmatprep.subr.mxu0 %v1250
        %v1252 = vand.u32 %v384, 4294901760
        %1253 = vmatpush1.msra.mxu0 %v1252
        %v1254 = vand.u32 %v381, 4294901760
        %1255 = vmatprep.subr.mxu0 %v1254
        %v1256 = vand.u32 %v380, 4294901760
        %1257 = vmatpush1.msra.mxu0 %v1256
        %v1258 = vand.u32 %v377, 4294901760
        %1259 = vmatprep.subr.mxu0 %v1258
        %v1260 = vand.u32 %v376, 4294901760
        %1261 = vmatpush1.msra.mxu0 %v1260
        %v1262 = vand.u32 %v373, 4294901760
        %1263 = vmatprep.subr.mxu0 %v1262
        %v1264 = vand.u32 %v372, 4294901760
        %1265 = vmatpush1.msra.mxu0 %v1264
        %v1266 = vand.u32 %v369, 4294901760
        %1267 = vmatprep.subr.mxu0 %v1266
        %v1268 = vand.u32 %v368, 4294901760
        %1269 = vmatpush1.msra.mxu0 %v1268
        %v1270 = vand.u32 %v365, 4294901760
        %1271 = vmatprep.subr.mxu0 %v1270
        %v1272 = vand.u32 %v364, 4294901760
        %1273 = vmatpush1.msra.mxu0 %v1272
        %v1274 = vand.u32 %v361, 4294901760
        %1275 = vmatprep.subr.mxu0 %v1274
        %v1276 = vand.u32 %v360, 4294901760
        %1277 = vmatpush1.msra.mxu0 %v1276
        %v1278 = vand.u32 %v357, 4294901760
        %1279 = vmatprep.subr.mxu0 %v1278
        %v1280 = vand.u32 %v356, 4294901760
        %1281 = vmatpush1.msra.mxu0 %v1280
        %v1282 = vand.u32 %v353, 4294901760
        %1283 = vmatprep.subr.mxu0 %v1282
        %v1284 = vand.u32 %v352, 4294901760
        %1285 = vmatpush1.msra.mxu0 %v1284
        %v1286 = vand.u32 %v349, 4294901760
        %1287 = vmatprep.subr.mxu0 %v1286
        %v1288 = vand.u32 %v348, 4294901760
        %1289 = vmatpush1.msra.mxu0 %v1288
        %v1290 = vand.u32 %v345, 4294901760
        %1291 = vmatprep.subr.mxu0 %v1290
        %v1292 = vand.u32 %v344, 4294901760
        %1293 = vmatpush1.msra.mxu0 %v1292
        %v1294 = vand.u32 %v341, 4294901760
        %1295 = vmatprep.subr.mxu0 %v1294
        %v1296 = vand.u32 %v340, 4294901760
        %1297 = vmatpush1.msra.mxu0 %v1296
        %v1298 = vand.u32 %v337, 4294901760
        %1299 = vmatprep.subr.mxu0 %v1298
        %v1300 = vand.u32 %v336, 4294901760
        %1301 = vmatpush1.msra.mxu0 %v1300
        %v1302 = vand.u32 %v333, 4294901760
        %1303 = vmatprep.subr.mxu0 %v1302
        %v1304 = vand.u32 %v332, 4294901760
        %1305 = vmatpush1.msra.mxu0 %v1304
        %v1306 = vand.u32 %v329, 4294901760
        %1307 = vmatprep.subr.mxu0 %v1306
        %v1308 = vand.u32 %v328, 4294901760
        %1309 = vmatpush1.msra.mxu0 %v1308
        %1310 = vmatprep.subr.mxu0 0.0
        %1311 = vmatpush2.msra.mxu0 0.0
        %1312 = vmatprep.subr.mxu0 0.0
        %1313 = vmatpush2.msra.mxu0 0.0
        %1314 = vmatprep.subr.mxu0 0.0
        %1315 = vmatpush2.msra.mxu0 0.0
        %1316 = vmatprep.subr.mxu0 0.0
        %1317 = vmatpush2.msra.mxu0 0.0
        %1318 = vmatprep.subr.mxu0 0.0
        %1319 = vmatpush2.msra.mxu0 0.0
        %1320 = vmatprep.subr.mxu0 0.0
        %1321 = vmatpush2.msra.mxu0 0.0
        %1322 = vmatprep.subr.mxu0 0.0
        %1323 = vmatpush2.msra.mxu0 0.0
        %1324 = vmatprep.subr.mxu0 0.0
        %1325 = vmatpush2.msra.mxu0 0.0
        %1326 = vmatprep.subr.mxu0 0.0
        %1327 = vmatpush2.msra.mxu0 0.0
        %1328 = vmatprep.subr.mxu0 0.0
        %1329 = vmatpush2.msra.mxu0 0.0
        %1330 = vmatprep.subr.mxu0 0.0
        %1331 = vmatpush2.msra.mxu0 0.0
        %1332 = vmatprep.subr.mxu0 0.0
        %1333 = vmatpush2.msra.mxu0 0.0
        %1334 = vmatprep.subr.mxu0 0.0
        %1335 = vmatpush2.msra.mxu0 0.0
        %1336 = vmatprep.subr.mxu0 0.0
        %1337 = vmatpush2.msra.mxu0 0.0
        %1338 = vmatprep.subr.mxu0 0.0
        %1339 = vmatpush2.msra.mxu0 0.0
        %1340 = vmatprep.subr.mxu0 0.0
        %1341 = vmatpush2.msra.mxu0 0.0
        %1342 = vmatprep.mubr.f32.mxu0 0.0
        %v1343 = vand.u32 %v322, 4294901760
        %v1344 = vsub.f32 %v322, %v1343
        %v1345 = vand.u32 %v1344, 4294901760
        %v1346 = vsub.f32 %v1344, %v1345
        %v1347 = vand.u32 %v1346, 4294901760
        %1348 = vmatmul.mubr.f32.gmra.mxu0 %v1347
        %v1349 = vpop.f32.mrf.mxu0
        %v1350 = vadd.f32 0.0, %v1349
        %v1351 = vpop.f32.mrf.mxu0
        %v1352 = vadd.f32 0.0, %v1351
        %1353 = vdwg.mxu0
        %v1354 = vand.u32 %v389, 4294901760
        %v1355 = vsub.f32 %v389, %v1354
        %v1356 = vand.u32 %v1355, 4294901760
        %v1357 = vsub.f32 %v1355, %v1356
        %v1358 = vand.u32 %v1357, 4294901760
        %1359 = vmatprep.subr.mxu0 %v1358
        %v1360 = vand.u32 %v388, 4294901760
        %v1361 = vsub.f32 %v388, %v1360
        %v1362 = vand.u32 %v1361, 4294901760
        %v1363 = vsub.f32 %v1361, %v1362
        %v1364 = vand.u32 %v1363, 4294901760
        %1365 = vmatpush1.msra.mxu0 %v1364
        %v1366 = vand.u32 %v385, 4294901760
        %v1367 = vsub.f32 %v385, %v1366
        %v1368 = vand.u32 %v1367, 4294901760
        %v1369 = vsub.f32 %v1367, %v1368
        %v1370 = vand.u32 %v1369, 4294901760
        %1371 = vmatprep.subr.mxu0 %v1370
        %v1372 = vand.u32 %v384, 4294901760
        %v1373 = vsub.f32 %v384, %v1372
        %v1374 = vand.u32 %v1373, 4294901760
        %v1375 = vsub.f32 %v1373, %v1374
        %v1376 = vand.u32 %v1375, 4294901760
        %1377 = vmatpush1.msra.mxu0 %v1376
        %v1378 = vand.u32 %v381, 4294901760
        %v1379 = vsub.f32 %v381, %v1378
        %v1380 = vand.u32 %v1379, 4294901760
        %v1381 = vsub.f32 %v1379, %v1380
        %v1382 = vand.u32 %v1381, 4294901760
        %1383 = vmatprep.subr.mxu0 %v1382
        %v1384 = vand.u32 %v380, 4294901760
        %v1385 = vsub.f32 %v380, %v1384
        %v1386 = vand.u32 %v1385, 4294901760
        %v1387 = vsub.f32 %v1385, %v1386
        %v1388 = vand.u32 %v1387, 4294901760
        %1389 = vmatpush1.msra.mxu0 %v1388
        %v1390 = vand.u32 %v377, 4294901760
        %v1391 = vsub.f32 %v377, %v1390
        %v1392 = vand.u32 %v1391, 4294901760
        %v1393 = vsub.f32 %v1391, %v1392
        %v1394 = vand.u32 %v1393, 4294901760
        %1395 = vmatprep.subr.mxu0 %v1394
        %v1396 = vand.u32 %v376, 4294901760
        %v1397 = vsub.f32 %v376, %v1396
        %v1398 = vand.u32 %v1397, 4294901760
        %v1399 = vsub.f32 %v1397, %v1398
        %v1400 = vand.u32 %v1399, 4294901760
        %1401 = vmatpush1.msra.mxu0 %v1400
        %v1402 = vand.u32 %v373, 4294901760
        %v1403 = vsub.f32 %v373, %v1402
        %v1404 = vand.u32 %v1403, 4294901760
        %v1405 = vsub.f32 %v1403, %v1404
        %v1406 = vand.u32 %v1405, 4294901760
        %1407 = vmatprep.subr.mxu0 %v1406
        %v1408 = vand.u32 %v372, 4294901760
        %v1409 = vsub.f32 %v372, %v1408
        %v1410 = vand.u32 %v1409, 4294901760
        %v1411 = vsub.f32 %v1409, %v1410
        %v1412 = vand.u32 %v1411, 4294901760
        %1413 = vmatpush1.msra.mxu0 %v1412
        %v1414 = vand.u32 %v369, 4294901760
        %v1415 = vsub.f32 %v369, %v1414
        %v1416 = vand.u32 %v1415, 4294901760
        %v1417 = vsub.f32 %v1415, %v1416
        %v1418 = vand.u32 %v1417, 4294901760
        %1419 = vmatprep.subr.mxu0 %v1418
        %v1420 = vand.u32 %v368, 4294901760
        %v1421 = vsub.f32 %v368, %v1420
        %v1422 = vand.u32 %v1421, 4294901760
        %v1423 = vsub.f32 %v1421, %v1422
        %v1424 = vand.u32 %v1423, 4294901760
        %1425 = vmatpush1.msra.mxu0 %v1424
        %v1426 = vand.u32 %v365, 4294901760
        %v1427 = vsub.f32 %v365, %v1426
        %v1428 = vand.u32 %v1427, 4294901760
        %v1429 = vsub.f32 %v1427, %v1428
        %v1430 = vand.u32 %v1429, 4294901760
        %1431 = vmatprep.subr.mxu0 %v1430
        %v1432 = vand.u32 %v364, 4294901760
        %v1433 = vsub.f32 %v364, %v1432
        %v1434 = vand.u32 %v1433, 4294901760
        %v1435 = vsub.f32 %v1433, %v1434
        %v1436 = vand.u32 %v1435, 4294901760
        %1437 = vmatpush1.msra.mxu0 %v1436
        %v1438 = vand.u32 %v361, 4294901760
        %v1439 = vsub.f32 %v361, %v1438
        %v1440 = vand.u32 %v1439, 4294901760
        %v1441 = vsub.f32 %v1439, %v1440
        %v1442 = vand.u32 %v1441, 4294901760
        %1443 = vmatprep.subr.mxu0 %v1442
        %v1444 = vand.u32 %v360, 4294901760
        %v1445 = vsub.f32 %v360, %v1444
        %v1446 = vand.u32 %v1445, 4294901760
        %v1447 = vsub.f32 %v1445, %v1446
        %v1448 = vand.u32 %v1447, 4294901760
        %1449 = vmatpush1.msra.mxu0 %v1448
        %v1450 = vand.u32 %v357, 4294901760
        %v1451 = vsub.f32 %v357, %v1450
        %v1452 = vand.u32 %v1451, 4294901760
        %v1453 = vsub.f32 %v1451, %v1452
        %v1454 = vand.u32 %v1453, 4294901760
        %1455 = vmatprep.subr.mxu0 %v1454
        %v1456 = vand.u32 %v356, 4294901760
        %v1457 = vsub.f32 %v356, %v1456
        %v1458 = vand.u32 %v1457, 4294901760
        %v1459 = vsub.f32 %v1457, %v1458
        %v1460 = vand.u32 %v1459, 4294901760
        %1461 = vmatpush1.msra.mxu0 %v1460
        %v1462 = vand.u32 %v353, 4294901760
        %v1463 = vsub.f32 %v353, %v1462
        %v1464 = vand.u32 %v1463, 4294901760
        %v1465 = vsub.f32 %v1463, %v1464
        %v1466 = vand.u32 %v1465, 4294901760
        %1467 = vmatprep.subr.mxu0 %v1466
        %v1468 = vand.u32 %v352, 4294901760
        %v1469 = vsub.f32 %v352, %v1468
        %v1470 = vand.u32 %v1469, 4294901760
        %v1471 = vsub.f32 %v1469, %v1470
        %v1472 = vand.u32 %v1471, 4294901760
        %1473 = vmatpush1.msra.mxu0 %v1472
        %v1474 = vand.u32 %v349, 4294901760
        %v1475 = vsub.f32 %v349, %v1474
        %v1476 = vand.u32 %v1475, 4294901760
        %v1477 = vsub.f32 %v1475, %v1476
        %v1478 = vand.u32 %v1477, 4294901760
        %1479 = vmatprep.subr.mxu0 %v1478
        %v1480 = vand.u32 %v348, 4294901760
        %v1481 = vsub.f32 %v348, %v1480
        %v1482 = vand.u32 %v1481, 4294901760
        %v1483 = vsub.f32 %v1481, %v1482
        %v1484 = vand.u32 %v1483, 4294901760
        %1485 = vmatpush1.msra.mxu0 %v1484
        %v1486 = vand.u32 %v345, 4294901760
        %v1487 = vsub.f32 %v345, %v1486
        %v1488 = vand.u32 %v1487, 4294901760
        %v1489 = vsub.f32 %v1487, %v1488
        %v1490 = vand.u32 %v1489, 4294901760
        %1491 = vmatprep.subr.mxu0 %v1490
        %v1492 = vand.u32 %v344, 4294901760
        %v1493 = vsub.f32 %v344, %v1492
        %v1494 = vand.u32 %v1493, 4294901760
        %v1495 = vsub.f32 %v1493, %v1494
        %v1496 = vand.u32 %v1495, 4294901760
        %1497 = vmatpush1.msra.mxu0 %v1496
        %v1498 = vand.u32 %v341, 4294901760
        %v1499 = vsub.f32 %v341, %v1498
        %v1500 = vand.u32 %v1499, 4294901760
        %v1501 = vsub.f32 %v1499, %v1500
        %v1502 = vand.u32 %v1501, 4294901760
        %1503 = vmatprep.subr.mxu0 %v1502
        %v1504 = vand.u32 %v340, 4294901760
        %v1505 = vsub.f32 %v340, %v1504
        %v1506 = vand.u32 %v1505, 4294901760
        %v1507 = vsub.f32 %v1505, %v1506
        %v1508 = vand.u32 %v1507, 4294901760
        %1509 = vmatpush1.msra.mxu0 %v1508
        %v1510 = vand.u32 %v337, 4294901760
        %v1511 = vsub.f32 %v337, %v1510
        %v1512 = vand.u32 %v1511, 4294901760
        %v1513 = vsub.f32 %v1511, %v1512
        %v1514 = vand.u32 %v1513, 4294901760
        %1515 = vmatprep.subr.mxu0 %v1514
        %v1516 = vand.u32 %v336, 4294901760
        %v1517 = vsub.f32 %v336, %v1516
        %v1518 = vand.u32 %v1517, 4294901760
        %v1519 = vsub.f32 %v1517, %v1518
        %v1520 = vand.u32 %v1519, 4294901760
        %1521 = vmatpush1.msra.mxu0 %v1520
        %v1522 = vand.u32 %v333, 4294901760
        %v1523 = vsub.f32 %v333, %v1522
        %v1524 = vand.u32 %v1523, 4294901760
        %v1525 = vsub.f32 %v1523, %v1524
        %v1526 = vand.u32 %v1525, 4294901760
        %1527 = vmatprep.subr.mxu0 %v1526
        %v1528 = vand.u32 %v332, 4294901760
        %v1529 = vsub.f32 %v332, %v1528
        %v1530 = vand.u32 %v1529, 4294901760
        %v1531 = vsub.f32 %v1529, %v1530
        %v1532 = vand.u32 %v1531, 4294901760
        %1533 = vmatpush1.msra.mxu0 %v1532
        %v1534 = vand.u32 %v329, 4294901760
        %v1535 = vsub.f32 %v329, %v1534
        %v1536 = vand.u32 %v1535, 4294901760
        %v1537 = vsub.f32 %v1535, %v1536
        %v1538 = vand.u32 %v1537, 4294901760
        %1539 = vmatprep.subr.mxu0 %v1538
        %v1540 = vand.u32 %v328, 4294901760
        %v1541 = vsub.f32 %v328, %v1540
        %v1542 = vand.u32 %v1541, 4294901760
        %v1543 = vsub.f32 %v1541, %v1542
        %v1544 = vand.u32 %v1543, 4294901760
        %1545 = vmatpush1.msra.mxu0 %v1544
        %1546 = vmatprep.subr.mxu0 0.0
        %1547 = vmatpush2.msra.mxu0 0.0
        %1548 = vmatprep.subr.mxu0 0.0
        %1549 = vmatpush2.msra.mxu0 0.0
        %1550 = vmatprep.subr.mxu0 0.0
        %1551 = vmatpush2.msra.mxu0 0.0
        %1552 = vmatprep.subr.mxu0 0.0
        %1553 = vmatpush2.msra.mxu0 0.0
        %1554 = vmatprep.subr.mxu0 0.0
        %1555 = vmatpush2.msra.mxu0 0.0
        %1556 = vmatprep.subr.mxu0 0.0
        %1557 = vmatpush2.msra.mxu0 0.0
        %1558 = vmatprep.subr.mxu0 0.0
        %1559 = vmatpush2.msra.mxu0 0.0
        %1560 = vmatprep.subr.mxu0 0.0
        %1561 = vmatpush2.msra.mxu0 0.0
        %1562 = vmatprep.subr.mxu0 0.0
        %1563 = vmatpush2.msra.mxu0 0.0
        %1564 = vmatprep.subr.mxu0 0.0
        %1565 = vmatpush2.msra.mxu0 0.0
        %1566 = vmatprep.subr.mxu0 0.0
        %1567 = vmatpush2.msra.mxu0 0.0
        %1568 = vmatprep.subr.mxu0 0.0
        %1569 = vmatpush2.msra.mxu0 0.0
        %1570 = vmatprep.subr.mxu0 0.0
        %1571 = vmatpush2.msra.mxu0 0.0
        %1572 = vmatprep.subr.mxu0 0.0
        %1573 = vmatpush2.msra.mxu0 0.0
        %1574 = vmatprep.subr.mxu0 0.0
        %1575 = vmatpush2.msra.mxu0 0.0
        %1576 = vmatprep.subr.mxu0 0.0
        %1577 = vmatpush2.msra.mxu0 0.0
        %1578 = vmatprep.mubr.f32.mxu0 0.0
        %v1579 = vand.u32 %v322, 4294901760
        %1580 = vmatmul.mubr.f32.gmra.mxu0 %v1579
        %v1581 = vpop.f32.mrf.mxu0
        %v1582 = vadd.f32 %v1350, %v1581
        %v1583 = vpop.f32.mrf.mxu0
        %v1584 = vadd.f32 %v1352, %v1583
        %1585 = vdwg.mxu0
        %v1586 = vand.u32 %v389, 4294901760
        %v1587 = vsub.f32 %v389, %v1586
        %1588 = vmatprep.subr.mxu0 %v1587
        %v1589 = vand.u32 %v388, 4294901760
        %v1590 = vsub.f32 %v388, %v1589
        %1591 = vmatpush1.msra.mxu0 %v1590
        %v1592 = vand.u32 %v385, 4294901760
        %v1593 = vsub.f32 %v385, %v1592
        %1594 = vmatprep.subr.mxu0 %v1593
        %v1595 = vand.u32 %v384, 4294901760
        %v1596 = vsub.f32 %v384, %v1595
        %1597 = vmatpush1.msra.mxu0 %v1596
        %v1598 = vand.u32 %v381, 4294901760
        %v1599 = vsub.f32 %v381, %v1598
        %1600 = vmatprep.subr.mxu0 %v1599
        %v1601 = vand.u32 %v380, 4294901760
        %v1602 = vsub.f32 %v380, %v1601
        %1603 = vmatpush1.msra.mxu0 %v1602
        %v1604 = vand.u32 %v377, 4294901760
        %v1605 = vsub.f32 %v377, %v1604
        %1606 = vmatprep.subr.mxu0 %v1605
        %v1607 = vand.u32 %v376, 4294901760
        %v1608 = vsub.f32 %v376, %v1607
        %1609 = vmatpush1.msra.mxu0 %v1608
        %v1610 = vand.u32 %v373, 4294901760
        %v1611 = vsub.f32 %v373, %v1610
        %1612 = vmatprep.subr.mxu0 %v1611
        %v1613 = vand.u32 %v372, 4294901760
        %v1614 = vsub.f32 %v372, %v1613
        %1615 = vmatpush1.msra.mxu0 %v1614
        %v1616 = vand.u32 %v369, 4294901760
        %v1617 = vsub.f32 %v369, %v1616
        %1618 = vmatprep.subr.mxu0 %v1617
        %v1619 = vand.u32 %v368, 4294901760
        %v1620 = vsub.f32 %v368, %v1619
        %1621 = vmatpush1.msra.mxu0 %v1620
        %v1622 = vand.u32 %v365, 4294901760
        %v1623 = vsub.f32 %v365, %v1622
        %1624 = vmatprep.subr.mxu0 %v1623
        %v1625 = vand.u32 %v364, 4294901760
        %v1626 = vsub.f32 %v364, %v1625
        %1627 = vmatpush1.msra.mxu0 %v1626
        %v1628 = vand.u32 %v361, 4294901760
        %v1629 = vsub.f32 %v361, %v1628
        %1630 = vmatprep.subr.mxu0 %v1629
        %v1631 = vand.u32 %v360, 4294901760
        %v1632 = vsub.f32 %v360, %v1631
        %1633 = vmatpush1.msra.mxu0 %v1632
        %v1634 = vand.u32 %v357, 4294901760
        %v1635 = vsub.f32 %v357, %v1634
        %1636 = vmatprep.subr.mxu0 %v1635
        %v1637 = vand.u32 %v356, 4294901760
        %v1638 = vsub.f32 %v356, %v1637
        %1639 = vmatpush1.msra.mxu0 %v1638
        %v1640 = vand.u32 %v353, 4294901760
        %v1641 = vsub.f32 %v353, %v1640
        %1642 = vmatprep.subr.mxu0 %v1641
        %v1643 = vand.u32 %v352, 4294901760
        %v1644 = vsub.f32 %v352, %v1643
        %1645 = vmatpush1.msra.mxu0 %v1644
        %v1646 = vand.u32 %v349, 4294901760
        %v1647 = vsub.f32 %v349, %v1646
        %1648 = vmatprep.subr.mxu0 %v1647
        %v1649 = vand.u32 %v348, 4294901760
        %v1650 = vsub.f32 %v348, %v1649
        %1651 = vmatpush1.msra.mxu0 %v1650
        %v1652 = vand.u32 %v345, 4294901760
        %v1653 = vsub.f32 %v345, %v1652
        %1654 = vmatprep.subr.mxu0 %v1653
        %v1655 = vand.u32 %v344, 4294901760
        %v1656 = vsub.f32 %v344, %v1655
        %1657 = vmatpush1.msra.mxu0 %v1656
        %v1658 = vand.u32 %v341, 4294901760
        %v1659 = vsub.f32 %v341, %v1658
        %1660 = vmatprep.subr.mxu0 %v1659
        %v1661 = vand.u32 %v340, 4294901760
        %v1662 = vsub.f32 %v340, %v1661
        %1663 = vmatpush1.msra.mxu0 %v1662
        %v1664 = vand.u32 %v337, 4294901760
        %v1665 = vsub.f32 %v337, %v1664
        %1666 = vmatprep.subr.mxu0 %v1665
        %v1667 = vand.u32 %v336, 4294901760
        %v1668 = vsub.f32 %v336, %v1667
        %1669 = vmatpush1.msra.mxu0 %v1668
        %v1670 = vand.u32 %v333, 4294901760
        %v1671 = vsub.f32 %v333, %v1670
        %1672 = vmatprep.subr.mxu0 %v1671
        %v1673 = vand.u32 %v332, 4294901760
        %v1674 = vsub.f32 %v332, %v1673
        %1675 = vmatpush1.msra.mxu0 %v1674
        %v1676 = vand.u32 %v329, 4294901760
        %v1677 = vsub.f32 %v329, %v1676
        %1678 = vmatprep.subr.mxu0 %v1677
        %v1679 = vand.u32 %v328, 4294901760
        %v1680 = vsub.f32 %v328, %v1679
        %1681 = vmatpush1.msra.mxu0 %v1680
        %1682 = vmatprep.subr.mxu0 0.0
        %1683 = vmatpush2.msra.mxu0 0.0
        %1684 = vmatprep.subr.mxu0 0.0
        %1685 = vmatpush2.msra.mxu0 0.0
        %1686 = vmatprep.subr.mxu0 0.0
        %1687 = vmatpush2.msra.mxu0 0.0
        %1688 = vmatprep.subr.mxu0 0.0
        %1689 = vmatpush2.msra.mxu0 0.0
        %1690 = vmatprep.subr.mxu0 0.0
        %1691 = vmatpush2.msra.mxu0 0.0
        %1692 = vmatprep.subr.mxu0 0.0
        %1693 = vmatpush2.msra.mxu0 0.0
        %1694 = vmatprep.subr.mxu0 0.0
        %1695 = vmatpush2.msra.mxu0 0.0
        %1696 = vmatprep.subr.mxu0 0.0
        %1697 = vmatpush2.msra.mxu0 0.0
        %1698 = vmatprep.subr.mxu0 0.0
        %1699 = vmatpush2.msra.mxu0 0.0
        %1700 = vmatprep.subr.mxu0 0.0
        %1701 = vmatpush2.msra.mxu0 0.0
        %1702 = vmatprep.subr.mxu0 0.0
        %1703 = vmatpush2.msra.mxu0 0.0
        %1704 = vmatprep.subr.mxu0 0.0
        %1705 = vmatpush2.msra.mxu0 0.0
        %1706 = vmatprep.subr.mxu0 0.0
        %1707 = vmatpush2.msra.mxu0 0.0
        %1708 = vmatprep.subr.mxu0 0.0
        %1709 = vmatpush2.msra.mxu0 0.0
        %1710 = vmatprep.subr.mxu0 0.0
        %1711 = vmatpush2.msra.mxu0 0.0
        %1712 = vmatprep.subr.mxu0 0.0
        %1713 = vmatpush2.msra.mxu0 0.0
        %1714 = vmatprep.mubr.f32.mxu0 0.0
        %v1715 = vand.u32 %v322, 4294901760
        %v1716 = vsub.f32 %v322, %v1715
        %1717 = vmatmul.mubr.f32.gmra.mxu0 %v1716
        %v1718 = vpop.f32.mrf.mxu0
        %v1719 = vadd.f32 %v1582, %v1718
        %v1720 = vpop.f32.mrf.mxu0
        %v1721 = vadd.f32 %v1584, %v1720
        %1722 = vdwg.mxu0
        %v1723 = vand.u32 %v389, 4294901760
        %1724 = vmatprep.subr.mxu0 %v1723
        %v1725 = vand.u32 %v388, 4294901760
        %1726 = vmatpush1.msra.mxu0 %v1725
        %v1727 = vand.u32 %v385, 4294901760
        %1728 = vmatprep.subr.mxu0 %v1727
        %v1729 = vand.u32 %v384, 4294901760
        %1730 = vmatpush1.msra.mxu0 %v1729
        %v1731 = vand.u32 %v381, 4294901760
        %1732 = vmatprep.subr.mxu0 %v1731
        %v1733 = vand.u32 %v380, 4294901760
        %1734 = vmatpush1.msra.mxu0 %v1733
        %v1735 = vand.u32 %v377, 4294901760
        %1736 = vmatprep.subr.mxu0 %v1735
        %v1737 = vand.u32 %v376, 4294901760
        %1738 = vmatpush1.msra.mxu0 %v1737
        %v1739 = vand.u32 %v373, 4294901760
        %1740 = vmatprep.subr.mxu0 %v1739
        %v1741 = vand.u32 %v372, 4294901760
        %1742 = vmatpush1.msra.mxu0 %v1741
        %v1743 = vand.u32 %v369, 4294901760
        %1744 = vmatprep.subr.mxu0 %v1743
        %v1745 = vand.u32 %v368, 4294901760
        %1746 = vmatpush1.msra.mxu0 %v1745
        %v1747 = vand.u32 %v365, 4294901760
        %1748 = vmatprep.subr.mxu0 %v1747
        %v1749 = vand.u32 %v364, 4294901760
        %1750 = vmatpush1.msra.mxu0 %v1749
        %v1751 = vand.u32 %v361, 4294901760
        %1752 = vmatprep.subr.mxu0 %v1751
        %v1753 = vand.u32 %v360, 4294901760
        %1754 = vmatpush1.msra.mxu0 %v1753
        %v1755 = vand.u32 %v357, 4294901760
        %1756 = vmatprep.subr.mxu0 %v1755
        %v1757 = vand.u32 %v356, 4294901760
        %1758 = vmatpush1.msra.mxu0 %v1757
        %v1759 = vand.u32 %v353, 4294901760
        %1760 = vmatprep.subr.mxu0 %v1759
        %v1761 = vand.u32 %v352, 4294901760
        %1762 = vmatpush1.msra.mxu0 %v1761
        %v1763 = vand.u32 %v349, 4294901760
        %1764 = vmatprep.subr.mxu0 %v1763
        %v1765 = vand.u32 %v348, 4294901760
        %1766 = vmatpush1.msra.mxu0 %v1765
        %v1767 = vand.u32 %v345, 4294901760
        %1768 = vmatprep.subr.mxu0 %v1767
        %v1769 = vand.u32 %v344, 4294901760
        %1770 = vmatpush1.msra.mxu0 %v1769
        %v1771 = vand.u32 %v341, 4294901760
        %1772 = vmatprep.subr.mxu0 %v1771
        %v1773 = vand.u32 %v340, 4294901760
        %1774 = vmatpush1.msra.mxu0 %v1773
        %v1775 = vand.u32 %v337, 4294901760
        %1776 = vmatprep.subr.mxu0 %v1775
        %v1777 = vand.u32 %v336, 4294901760
        %1778 = vmatpush1.msra.mxu0 %v1777
        %v1779 = vand.u32 %v333, 4294901760
        %1780 = vmatprep.subr.mxu0 %v1779
        %v1781 = vand.u32 %v332, 4294901760
        %1782 = vmatpush1.msra.mxu0 %v1781
        %v1783 = vand.u32 %v329, 4294901760
        %1784 = vmatprep.subr.mxu0 %v1783
        %v1785 = vand.u32 %v328, 4294901760
        %1786 = vmatpush1.msra.mxu0 %v1785
        %1787 = vmatprep.subr.mxu0 0.0
        %1788 = vmatpush2.msra.mxu0 0.0
        %1789 = vmatprep.subr.mxu0 0.0
        %1790 = vmatpush2.msra.mxu0 0.0
        %1791 = vmatprep.subr.mxu0 0.0
        %1792 = vmatpush2.msra.mxu0 0.0
        %1793 = vmatprep.subr.mxu0 0.0
        %1794 = vmatpush2.msra.mxu0 0.0
        %1795 = vmatprep.subr.mxu0 0.0
        %1796 = vmatpush2.msra.mxu0 0.0
        %1797 = vmatprep.subr.mxu0 0.0
        %1798 = vmatpush2.msra.mxu0 0.0
        %1799 = vmatprep.subr.mxu0 0.0
        %1800 = vmatpush2.msra.mxu0 0.0
        %1801 = vmatprep.subr.mxu0 0.0
        %1802 = vmatpush2.msra.mxu0 0.0
        %1803 = vmatprep.subr.mxu0 0.0
        %1804 = vmatpush2.msra.mxu0 0.0
        %1805 = vmatprep.subr.mxu0 0.0
        %1806 = vmatpush2.msra.mxu0 0.0
        %1807 = vmatprep.subr.mxu0 0.0
        %1808 = vmatpush2.msra.mxu0 0.0
        %1809 = vmatprep.subr.mxu0 0.0
        %1810 = vmatpush2.msra.mxu0 0.0
        %1811 = vmatprep.subr.mxu0 0.0
        %1812 = vmatpush2.msra.mxu0 0.0
        %1813 = vmatprep.subr.mxu0 0.0
        %1814 = vmatpush2.msra.mxu0 0.0
        %1815 = vmatprep.subr.mxu0 0.0
        %1816 = vmatpush2.msra.mxu0 0.0
        %1817 = vmatprep.subr.mxu0 0.0
        %1818 = vmatpush2.msra.mxu0 0.0
        %1819 = vmatprep.mubr.f32.mxu0 0.0
        %v1820 = vand.u32 %v322, 4294901760
        %v1821 = vsub.f32 %v322, %v1820
        %v1822 = vand.u32 %v1821, 4294901760
        %1823 = vmatmul.mubr.f32.gmra.mxu0 %v1822
        %v1824 = vpop.f32.mrf.mxu0
        %v1825 = vadd.f32 %v1719, %v1824
        %v1826 = vpop.f32.mrf.mxu0
        %v1827 = vadd.f32 %v1721, %v1826
        %1828 = vdwg.mxu0
        %v1829 = vand.u32 %v389, 4294901760
        %v1830 = vsub.f32 %v389, %v1829
        %v1831 = vand.u32 %v1830, 4294901760
        %1832 = vmatprep.subr.mxu0 %v1831
        %v1833 = vand.u32 %v388, 4294901760
        %v1834 = vsub.f32 %v388, %v1833
        %v1835 = vand.u32 %v1834, 4294901760
        %1836 = vmatpush1.msra.mxu0 %v1835
        %v1837 = vand.u32 %v385, 4294901760
        %v1838 = vsub.f32 %v385, %v1837
        %v1839 = vand.u32 %v1838, 4294901760
        %1840 = vmatprep.subr.mxu0 %v1839
        %v1841 = vand.u32 %v384, 4294901760
        %v1842 = vsub.f32 %v384, %v1841
        %v1843 = vand.u32 %v1842, 4294901760
        %1844 = vmatpush1.msra.mxu0 %v1843
        %v1845 = vand.u32 %v381, 4294901760
        %v1846 = vsub.f32 %v381, %v1845
        %v1847 = vand.u32 %v1846, 4294901760
        %1848 = vmatprep.subr.mxu0 %v1847
        %v1849 = vand.u32 %v380, 4294901760
        %v1850 = vsub.f32 %v380, %v1849
        %v1851 = vand.u32 %v1850, 4294901760
        %1852 = vmatpush1.msra.mxu0 %v1851
        %v1853 = vand.u32 %v377, 4294901760
        %v1854 = vsub.f32 %v377, %v1853
        %v1855 = vand.u32 %v1854, 4294901760
        %1856 = vmatprep.subr.mxu0 %v1855
        %v1857 = vand.u32 %v376, 4294901760
        %v1858 = vsub.f32 %v376, %v1857
        %v1859 = vand.u32 %v1858, 4294901760
        %1860 = vmatpush1.msra.mxu0 %v1859
        %v1861 = vand.u32 %v373, 4294901760
        %v1862 = vsub.f32 %v373, %v1861
        %v1863 = vand.u32 %v1862, 4294901760
        %1864 = vmatprep.subr.mxu0 %v1863
        %v1865 = vand.u32 %v372, 4294901760
        %v1866 = vsub.f32 %v372, %v1865
        %v1867 = vand.u32 %v1866, 4294901760
        %1868 = vmatpush1.msra.mxu0 %v1867
        %v1869 = vand.u32 %v369, 4294901760
        %v1870 = vsub.f32 %v369, %v1869
        %v1871 = vand.u32 %v1870, 4294901760
        %1872 = vmatprep.subr.mxu0 %v1871
        %v1873 = vand.u32 %v368, 4294901760
        %v1874 = vsub.f32 %v368, %v1873
        %v1875 = vand.u32 %v1874, 4294901760
        %1876 = vmatpush1.msra.mxu0 %v1875
        %v1877 = vand.u32 %v365, 4294901760
        %v1878 = vsub.f32 %v365, %v1877
        %v1879 = vand.u32 %v1878, 4294901760
        %1880 = vmatprep.subr.mxu0 %v1879
        %v1881 = vand.u32 %v364, 4294901760
        %v1882 = vsub.f32 %v364, %v1881
        %v1883 = vand.u32 %v1882, 4294901760
        %1884 = vmatpush1.msra.mxu0 %v1883
        %v1885 = vand.u32 %v361, 4294901760
        %v1886 = vsub.f32 %v361, %v1885
        %v1887 = vand.u32 %v1886, 4294901760
        %1888 = vmatprep.subr.mxu0 %v1887
        %v1889 = vand.u32 %v360, 4294901760
        %v1890 = vsub.f32 %v360, %v1889
        %v1891 = vand.u32 %v1890, 4294901760
        %1892 = vmatpush1.msra.mxu0 %v1891
        %v1893 = vand.u32 %v357, 4294901760
        %v1894 = vsub.f32 %v357, %v1893
        %v1895 = vand.u32 %v1894, 4294901760
        %1896 = vmatprep.subr.mxu0 %v1895
        %v1897 = vand.u32 %v356, 4294901760
        %v1898 = vsub.f32 %v356, %v1897
        %v1899 = vand.u32 %v1898, 4294901760
        %1900 = vmatpush1.msra.mxu0 %v1899
        %v1901 = vand.u32 %v353, 4294901760
        %v1902 = vsub.f32 %v353, %v1901
        %v1903 = vand.u32 %v1902, 4294901760
        %1904 = vmatprep.subr.mxu0 %v1903
        %v1905 = vand.u32 %v352, 4294901760
        %v1906 = vsub.f32 %v352, %v1905
        %v1907 = vand.u32 %v1906, 4294901760
        %1908 = vmatpush1.msra.mxu0 %v1907
        %v1909 = vand.u32 %v349, 4294901760
        %v1910 = vsub.f32 %v349, %v1909
        %v1911 = vand.u32 %v1910, 4294901760
        %1912 = vmatprep.subr.mxu0 %v1911
        %v1913 = vand.u32 %v348, 4294901760
        %v1914 = vsub.f32 %v348, %v1913
        %v1915 = vand.u32 %v1914, 4294901760
        %1916 = vmatpush1.msra.mxu0 %v1915
        %v1917 = vand.u32 %v345, 4294901760
        %v1918 = vsub.f32 %v345, %v1917
        %v1919 = vand.u32 %v1918, 4294901760
        %1920 = vmatprep.subr.mxu0 %v1919
        %v1921 = vand.u32 %v344, 4294901760
        %v1922 = vsub.f32 %v344, %v1921
        %v1923 = vand.u32 %v1922, 4294901760
        %1924 = vmatpush1.msra.mxu0 %v1923
        %v1925 = vand.u32 %v341, 4294901760
        %v1926 = vsub.f32 %v341, %v1925
        %v1927 = vand.u32 %v1926, 4294901760
        %1928 = vmatprep.subr.mxu0 %v1927
        %v1929 = vand.u32 %v340, 4294901760
        %v1930 = vsub.f32 %v340, %v1929
        %v1931 = vand.u32 %v1930, 4294901760
        %1932 = vmatpush1.msra.mxu0 %v1931
        %v1933 = vand.u32 %v337, 4294901760
        %v1934 = vsub.f32 %v337, %v1933
        %v1935 = vand.u32 %v1934, 4294901760
        %1936 = vmatprep.subr.mxu0 %v1935
        %v1937 = vand.u32 %v336, 4294901760
        %v1938 = vsub.f32 %v336, %v1937
        %v1939 = vand.u32 %v1938, 4294901760
        %1940 = vmatpush1.msra.mxu0 %v1939
        %v1941 = vand.u32 %v333, 4294901760
        %v1942 = vsub.f32 %v333, %v1941
        %v1943 = vand.u32 %v1942, 4294901760
        %1944 = vmatprep.subr.mxu0 %v1943
        %v1945 = vand.u32 %v332, 4294901760
        %v1946 = vsub.f32 %v332, %v1945
        %v1947 = vand.u32 %v1946, 4294901760
        %1948 = vmatpush1.msra.mxu0 %v1947
        %v1949 = vand.u32 %v329, 4294901760
        %v1950 = vsub.f32 %v329, %v1949
        %v1951 = vand.u32 %v1950, 4294901760
        %1952 = vmatprep.subr.mxu0 %v1951
        %v1953 = vand.u32 %v328, 4294901760
        %v1954 = vsub.f32 %v328, %v1953
        %v1955 = vand.u32 %v1954, 4294901760
        %1956 = vmatpush1.msra.mxu0 %v1955
        %1957 = vmatprep.subr.mxu0 0.0
        %1958 = vmatpush2.msra.mxu0 0.0
        %1959 = vmatprep.subr.mxu0 0.0
        %1960 = vmatpush2.msra.mxu0 0.0
        %1961 = vmatprep.subr.mxu0 0.0
        %1962 = vmatpush2.msra.mxu0 0.0
        %1963 = vmatprep.subr.mxu0 0.0
        %1964 = vmatpush2.msra.mxu0 0.0
        %1965 = vmatprep.subr.mxu0 0.0
        %1966 = vmatpush2.msra.mxu0 0.0
        %1967 = vmatprep.subr.mxu0 0.0
        %1968 = vmatpush2.msra.mxu0 0.0
        %1969 = vmatprep.subr.mxu0 0.0
        %1970 = vmatpush2.msra.mxu0 0.0
        %1971 = vmatprep.subr.mxu0 0.0
        %1972 = vmatpush2.msra.mxu0 0.0
        %1973 = vmatprep.subr.mxu0 0.0
        %1974 = vmatpush2.msra.mxu0 0.0
        %1975 = vmatprep.subr.mxu0 0.0
        %1976 = vmatpush2.msra.mxu0 0.0
        %1977 = vmatprep.subr.mxu0 0.0
        %1978 = vmatpush2.msra.mxu0 0.0
        %1979 = vmatprep.subr.mxu0 0.0
        %1980 = vmatpush2.msra.mxu0 0.0
        %1981 = vmatprep.subr.mxu0 0.0
        %1982 = vmatpush2.msra.mxu0 0.0
        %1983 = vmatprep.subr.mxu0 0.0
        %1984 = vmatpush2.msra.mxu0 0.0
        %1985 = vmatprep.subr.mxu0 0.0
        %1986 = vmatpush2.msra.mxu0 0.0
        %1987 = vmatprep.subr.mxu0 0.0
        %1988 = vmatpush2.msra.mxu0 0.0
        %1989 = vmatprep.mubr.f32.mxu0 0.0
        %v1990 = vand.u32 %v322, 4294901760
        %1991 = vmatmul.mubr.f32.gmra.mxu0 %v1990
        %v1992 = vpop.f32.mrf.mxu0
        %v1993 = vadd.f32 %v1825, %v1992
        %v1994 = vpop.f32.mrf.mxu0
        %v1995 = vadd.f32 %v1827, %v1994
        %1996 = vdwg.mxu0
        %v1997 = vand.u32 %v389, 4294901760
        %1998 = vmatprep.subr.mxu0 %v1997
        %v1999 = vand.u32 %v388, 4294901760
        %2000 = vmatpush1.msra.mxu0 %v1999
        %v2001 = vand.u32 %v385, 4294901760
        %2002 = vmatprep.subr.mxu0 %v2001
        %v2003 = vand.u32 %v384, 4294901760
        %2004 = vmatpush1.msra.mxu0 %v2003
        %v2005 = vand.u32 %v381, 4294901760
        %2006 = vmatprep.subr.mxu0 %v2005
        %v2007 = vand.u32 %v380, 4294901760
        %2008 = vmatpush1.msra.mxu0 %v2007
        %v2009 = vand.u32 %v377, 4294901760
        %2010 = vmatprep.subr.mxu0 %v2009
        %v2011 = vand.u32 %v376, 4294901760
        %2012 = vmatpush1.msra.mxu0 %v2011
        %v2013 = vand.u32 %v373, 4294901760
        %2014 = vmatprep.subr.mxu0 %v2013
        %v2015 = vand.u32 %v372, 4294901760
        %2016 = vmatpush1.msra.mxu0 %v2015
        %v2017 = vand.u32 %v369, 4294901760
        %2018 = vmatprep.subr.mxu0 %v2017
        %v2019 = vand.u32 %v368, 4294901760
        %2020 = vmatpush1.msra.mxu0 %v2019
        %v2021 = vand.u32 %v365, 4294901760
        %2022 = vmatprep.subr.mxu0 %v2021
        %v2023 = vand.u32 %v364, 4294901760
        %2024 = vmatpush1.msra.mxu0 %v2023
        %v2025 = vand.u32 %v361, 4294901760
        %2026 = vmatprep.subr.mxu0 %v2025
        %v2027 = vand.u32 %v360, 4294901760
        %2028 = vmatpush1.msra.mxu0 %v2027
        %v2029 = vand.u32 %v357, 4294901760
        %2030 = vmatprep.subr.mxu0 %v2029
        %v2031 = vand.u32 %v356, 4294901760
        %2032 = vmatpush1.msra.mxu0 %v2031
        %v2033 = vand.u32 %v353, 4294901760
        %2034 = vmatprep.subr.mxu0 %v2033
        %v2035 = vand.u32 %v352, 4294901760
        %2036 = vmatpush1.msra.mxu0 %v2035
        %v2037 = vand.u32 %v349, 4294901760
        %2038 = vmatprep.subr.mxu0 %v2037
        %v2039 = vand.u32 %v348, 4294901760
        %2040 = vmatpush1.msra.mxu0 %v2039
        %v2041 = vand.u32 %v345, 4294901760
        %2042 = vmatprep.subr.mxu0 %v2041
        %v2043 = vand.u32 %v344, 4294901760
        %2044 = vmatpush1.msra.mxu0 %v2043
        %v2045 = vand.u32 %v341, 4294901760
        %2046 = vmatprep.subr.mxu0 %v2045
        %v2047 = vand.u32 %v340, 4294901760
        %2048 = vmatpush1.msra.mxu0 %v2047
        %v2049 = vand.u32 %v337, 4294901760
        %2050 = vmatprep.subr.mxu0 %v2049
        %v2051 = vand.u32 %v336, 4294901760
        %2052 = vmatpush1.msra.mxu0 %v2051
        %v2053 = vand.u32 %v333, 4294901760
        %2054 = vmatprep.subr.mxu0 %v2053
        %v2055 = vand.u32 %v332, 4294901760
        %2056 = vmatpush1.msra.mxu0 %v2055
        %v2057 = vand.u32 %v329, 4294901760
        %2058 = vmatprep.subr.mxu0 %v2057
        %v2059 = vand.u32 %v328, 4294901760
        %2060 = vmatpush1.msra.mxu0 %v2059
        %2061 = vmatprep.subr.mxu0 0.0
        %2062 = vmatpush2.msra.mxu0 0.0
        %2063 = vmatprep.subr.mxu0 0.0
        %2064 = vmatpush2.msra.mxu0 0.0
        %2065 = vmatprep.subr.mxu0 0.0
        %2066 = vmatpush2.msra.mxu0 0.0
        %2067 = vmatprep.subr.mxu0 0.0
        %2068 = vmatpush2.msra.mxu0 0.0
        %2069 = vmatprep.subr.mxu0 0.0
        %2070 = vmatpush2.msra.mxu0 0.0
        %2071 = vmatprep.subr.mxu0 0.0
        %2072 = vmatpush2.msra.mxu0 0.0
        %2073 = vmatprep.subr.mxu0 0.0
        %2074 = vmatpush2.msra.mxu0 0.0
        %2075 = vmatprep.subr.mxu0 0.0
        %2076 = vmatpush2.msra.mxu0 0.0
        %2077 = vmatprep.subr.mxu0 0.0
        %2078 = vmatpush2.msra.mxu0 0.0
        %2079 = vmatprep.subr.mxu0 0.0
        %2080 = vmatpush2.msra.mxu0 0.0
        %2081 = vmatprep.subr.mxu0 0.0
        %2082 = vmatpush2.msra.mxu0 0.0
        %2083 = vmatprep.subr.mxu0 0.0
        %2084 = vmatpush2.msra.mxu0 0.0
        %2085 = vmatprep.subr.mxu0 0.0
        %2086 = vmatpush2.msra.mxu0 0.0
        %2087 = vmatprep.subr.mxu0 0.0
        %2088 = vmatpush2.msra.mxu0 0.0
        %2089 = vmatprep.subr.mxu0 0.0
        %2090 = vmatpush2.msra.mxu0 0.0
        %2091 = vmatprep.subr.mxu0 0.0
        %2092 = vmatpush2.msra.mxu0 0.0
        %2093 = vmatprep.mubr.f32.mxu0 0.0
        %v2094 = vand.u32 %v322, 4294901760
        %2095 = vmatmul.mubr.f32.gmra.mxu0 %v2094
        %v2096 = vpop.f32.mrf.mxu0
        %v2097 = vadd.f32 %v1993, %v2096
        %v2098 = vpop.f32.mrf.mxu0
        %v2099 = vadd.f32 %v1995, %v2098
        %2100 = vdwg.mxu0
        %v2103 = vcombine.high %v324, %v324
        %v2104 = vcombine.high %v325, %v325
        %vm2105 = vcmask 31744
        %v2107 = vsel %vm2105, %v321, 0
        %vm2109 = vcmask 1043456
        %v2110 = vsel %vm2109, %v324, 0
        %v2112 = vsel %vm2109, %v2103, 0
        %v2114 = vsel %vm2109, %v325, 0
        %v2116 = vsel %vm2109, %v2104, 0
        %2118 = vmatprep.subr.mxu0 0.0
        %2119 = vmatpush1.msra.mxu0 0.0
        %2120 = vmatprep.subr.mxu0 0.0
        %2121 = vmatpush1.msra.mxu0 0.0
        %2122 = vmatprep.subr.mxu0 0.0
        %2123 = vmatpush1.msra.mxu0 0.0
        %2124 = vmatprep.subr.mxu0 0.0
        %2125 = vmatpush1.msra.mxu0 0.0
        %2126 = vmatprep.subr.mxu0 0.0
        %2127 = vmatpush1.msra.mxu0 0.0
        %2128 = vmatprep.subr.mxu0 0.0
        %2129 = vmatpush1.msra.mxu0 0.0
        %2130 = vmatprep.subr.mxu0 0.0
        %2131 = vmatpush1.msra.mxu0 0.0
        %2132 = vmatprep.subr.mxu0 0.0
        %2133 = vmatpush1.msra.mxu0 0.0
        %2134 = vmatprep.subr.mxu0 0.0
        %2135 = vmatpush1.msra.mxu0 0.0
        %2136 = vmatprep.subr.mxu0 0.0
        %2137 = vmatpush1.msra.mxu0 0.0
        %2138 = vmatprep.subr.mxu0 0.0
        %2139 = vmatpush1.msra.mxu0 0.0
        %2140 = vmatprep.subr.mxu0 0.0
        %2141 = vmatpush1.msra.mxu0 0.0
        %2142 = vmatprep.subr.mxu0 0.0
        %2143 = vmatpush1.msra.mxu0 0.0
        %2144 = vmatprep.subr.mxu0 0.0
        %2145 = vmatpush1.msra.mxu0 0.0
        %2146 = vmatprep.subr.mxu0 0.0
        %2147 = vmatpush1.msra.mxu0 0.0
        %v2148 = vand.u32 %v2112, 4294901760
        %2149 = vmatprep.subr.mxu0 %v2148
        %v2150 = vand.u32 %v2110, 4294901760
        %2151 = vmatpush1.msra.mxu0 %v2150
        %2152 = vmatprep.subr.mxu0 0.0
        %2153 = vmatpush2.msra.mxu0 0.0
        %2154 = vmatprep.subr.mxu0 0.0
        %2155 = vmatpush2.msra.mxu0 0.0
        %2156 = vmatprep.subr.mxu0 0.0
        %2157 = vmatpush2.msra.mxu0 0.0
        %2158 = vmatprep.subr.mxu0 0.0
        %2159 = vmatpush2.msra.mxu0 0.0
        %2160 = vmatprep.subr.mxu0 0.0
        %2161 = vmatpush2.msra.mxu0 0.0
        %2162 = vmatprep.subr.mxu0 0.0
        %2163 = vmatpush2.msra.mxu0 0.0
        %2164 = vmatprep.subr.mxu0 0.0
        %2165 = vmatpush2.msra.mxu0 0.0
        %2166 = vmatprep.subr.mxu0 0.0
        %2167 = vmatpush2.msra.mxu0 0.0
        %2168 = vmatprep.subr.mxu0 0.0
        %2169 = vmatpush2.msra.mxu0 0.0
        %2170 = vmatprep.subr.mxu0 0.0
        %2171 = vmatpush2.msra.mxu0 0.0
        %2172 = vmatprep.subr.mxu0 0.0
        %2173 = vmatpush2.msra.mxu0 0.0
        %2174 = vmatprep.subr.mxu0 0.0
        %2175 = vmatpush2.msra.mxu0 0.0
        %2176 = vmatprep.subr.mxu0 0.0
        %2177 = vmatpush2.msra.mxu0 0.0
        %2178 = vmatprep.subr.mxu0 0.0
        %2179 = vmatpush2.msra.mxu0 0.0
        %2180 = vmatprep.subr.mxu0 0.0
        %2181 = vmatpush2.msra.mxu0 0.0
        %2182 = vmatprep.subr.mxu0 0.0
        %2183 = vmatpush2.msra.mxu0 0.0
        %2184 = vmatprep.mubr.f32.mxu0 0.0
        %v2185 = vand.u32 %v2107, 4294901760
        %v2186 = vsub.f32 %v2107, %v2185
        %v2187 = vand.u32 %v2186, 4294901760
        %v2188 = vsub.f32 %v2186, %v2187
        %v2189 = vand.u32 %v2188, 4294901760
        %2190 = vmatmul.mubr.f32.gmra.mxu0 %v2189
        %v2191 = vpop.f32.mrf.mxu0
        %v2192 = vadd.f32 %v1242, %v2191
        %v2193 = vpop.f32.mrf.mxu0
        %v2194 = vadd.f32 %v1244, %v2193
        %2195 = vdwg.mxu0
        %2196 = vmatprep.subr.mxu0 0.0
        %2197 = vmatpush1.msra.mxu0 0.0
        %2198 = vmatprep.subr.mxu0 0.0
        %2199 = vmatpush1.msra.mxu0 0.0
        %2200 = vmatprep.subr.mxu0 0.0
        %2201 = vmatpush1.msra.mxu0 0.0
        %2202 = vmatprep.subr.mxu0 0.0
        %2203 = vmatpush1.msra.mxu0 0.0
        %2204 = vmatprep.subr.mxu0 0.0
        %2205 = vmatpush1.msra.mxu0 0.0
        %2206 = vmatprep.subr.mxu0 0.0
        %2207 = vmatpush1.msra.mxu0 0.0
        %2208 = vmatprep.subr.mxu0 0.0
        %2209 = vmatpush1.msra.mxu0 0.0
        %2210 = vmatprep.subr.mxu0 0.0
        %2211 = vmatpush1.msra.mxu0 0.0
        %2212 = vmatprep.subr.mxu0 0.0
        %2213 = vmatpush1.msra.mxu0 0.0
        %2214 = vmatprep.subr.mxu0 0.0
        %2215 = vmatpush1.msra.mxu0 0.0
        %2216 = vmatprep.subr.mxu0 0.0
        %2217 = vmatpush1.msra.mxu0 0.0
        %2218 = vmatprep.subr.mxu0 0.0
        %2219 = vmatpush1.msra.mxu0 0.0
        %2220 = vmatprep.subr.mxu0 0.0
        %2221 = vmatpush1.msra.mxu0 0.0
        %2222 = vmatprep.subr.mxu0 0.0
        %2223 = vmatpush1.msra.mxu0 0.0
        %2224 = vmatprep.subr.mxu0 0.0
        %2225 = vmatpush1.msra.mxu0 0.0
        %v2226 = vand.u32 %v2112, 4294901760
        %v2227 = vsub.f32 %v2112, %v2226
        %v2228 = vand.u32 %v2227, 4294901760
        %v2229 = vsub.f32 %v2227, %v2228
        %v2230 = vand.u32 %v2229, 4294901760
        %2231 = vmatprep.subr.mxu0 %v2230
        %v2232 = vand.u32 %v2110, 4294901760
        %v2233 = vsub.f32 %v2110, %v2232
        %v2234 = vand.u32 %v2233, 4294901760
        %v2235 = vsub.f32 %v2233, %v2234
        %v2236 = vand.u32 %v2235, 4294901760
        %2237 = vmatpush1.msra.mxu0 %v2236
        %2238 = vmatprep.subr.mxu0 0.0
        %2239 = vmatpush2.msra.mxu0 0.0
        %2240 = vmatprep.subr.mxu0 0.0
        %2241 = vmatpush2.msra.mxu0 0.0
        %2242 = vmatprep.subr.mxu0 0.0
        %2243 = vmatpush2.msra.mxu0 0.0
        %2244 = vmatprep.subr.mxu0 0.0
        %2245 = vmatpush2.msra.mxu0 0.0
        %2246 = vmatprep.subr.mxu0 0.0
        %2247 = vmatpush2.msra.mxu0 0.0
        %2248 = vmatprep.subr.mxu0 0.0
        %2249 = vmatpush2.msra.mxu0 0.0
        %2250 = vmatprep.subr.mxu0 0.0
        %2251 = vmatpush2.msra.mxu0 0.0
        %2252 = vmatprep.subr.mxu0 0.0
        %2253 = vmatpush2.msra.mxu0 0.0
        %2254 = vmatprep.subr.mxu0 0.0
        %2255 = vmatpush2.msra.mxu0 0.0
        %2256 = vmatprep.subr.mxu0 0.0
        %2257 = vmatpush2.msra.mxu0 0.0
        %2258 = vmatprep.subr.mxu0 0.0
        %2259 = vmatpush2.msra.mxu0 0.0
        %2260 = vmatprep.subr.mxu0 0.0
        %2261 = vmatpush2.msra.mxu0 0.0
        %2262 = vmatprep.subr.mxu0 0.0
        %2263 = vmatpush2.msra.mxu0 0.0
        %2264 = vmatprep.subr.mxu0 0.0
        %2265 = vmatpush2.msra.mxu0 0.0
        %2266 = vmatprep.subr.mxu0 0.0
        %2267 = vmatpush2.msra.mxu0 0.0
        %2268 = vmatprep.subr.mxu0 0.0
        %2269 = vmatpush2.msra.mxu0 0.0
        %2270 = vmatprep.mubr.f32.mxu0 0.0
        %v2271 = vand.u32 %v2107, 4294901760
        %2272 = vmatmul.mubr.f32.gmra.mxu0 %v2271
        %v2273 = vpop.f32.mrf.mxu0
        %v2274 = vadd.f32 %v2192, %v2273
        %v2275 = vpop.f32.mrf.mxu0
        %v2276 = vadd.f32 %v2194, %v2275
        %2277 = vdwg.mxu0
        %2278 = vmatprep.subr.mxu0 0.0
        %2279 = vmatpush1.msra.mxu0 0.0
        %2280 = vmatprep.subr.mxu0 0.0
        %2281 = vmatpush1.msra.mxu0 0.0
        %2282 = vmatprep.subr.mxu0 0.0
        %2283 = vmatpush1.msra.mxu0 0.0
        %2284 = vmatprep.subr.mxu0 0.0
        %2285 = vmatpush1.msra.mxu0 0.0
        %2286 = vmatprep.subr.mxu0 0.0
        %2287 = vmatpush1.msra.mxu0 0.0
        %2288 = vmatprep.subr.mxu0 0.0
        %2289 = vmatpush1.msra.mxu0 0.0
        %2290 = vmatprep.subr.mxu0 0.0
        %2291 = vmatpush1.msra.mxu0 0.0
        %2292 = vmatprep.subr.mxu0 0.0
        %2293 = vmatpush1.msra.mxu0 0.0
        %2294 = vmatprep.subr.mxu0 0.0
        %2295 = vmatpush1.msra.mxu0 0.0
        %2296 = vmatprep.subr.mxu0 0.0
        %2297 = vmatpush1.msra.mxu0 0.0
        %2298 = vmatprep.subr.mxu0 0.0
        %2299 = vmatpush1.msra.mxu0 0.0
        %2300 = vmatprep.subr.mxu0 0.0
        %2301 = vmatpush1.msra.mxu0 0.0
        %2302 = vmatprep.subr.mxu0 0.0
        %2303 = vmatpush1.msra.mxu0 0.0
        %2304 = vmatprep.subr.mxu0 0.0
        %2305 = vmatpush1.msra.mxu0 0.0
        %2306 = vmatprep.subr.mxu0 0.0
        %2307 = vmatpush1.msra.mxu0 0.0
        %v2308 = vand.u32 %v2112, 4294901760
        %v2309 = vsub.f32 %v2112, %v2308
        %2310 = vmatprep.subr.mxu0 %v2309
        %v2311 = vand.u32 %v2110, 4294901760
        %v2312 = vsub.f32 %v2110, %v2311
        %2313 = vmatpush1.msra.mxu0 %v2312
        %2314 = vmatprep.subr.mxu0 0.0
        %2315 = vmatpush2.msra.mxu0 0.0
        %2316 = vmatprep.subr.mxu0 0.0
        %2317 = vmatpush2.msra.mxu0 0.0
        %2318 = vmatprep.subr.mxu0 0.0
        %2319 = vmatpush2.msra.mxu0 0.0
        %2320 = vmatprep.subr.mxu0 0.0
        %2321 = vmatpush2.msra.mxu0 0.0
        %2322 = vmatprep.subr.mxu0 0.0
        %2323 = vmatpush2.msra.mxu0 0.0
        %2324 = vmatprep.subr.mxu0 0.0
        %2325 = vmatpush2.msra.mxu0 0.0
        %2326 = vmatprep.subr.mxu0 0.0
        %2327 = vmatpush2.msra.mxu0 0.0
        %2328 = vmatprep.subr.mxu0 0.0
        %2329 = vmatpush2.msra.mxu0 0.0
        %2330 = vmatprep.subr.mxu0 0.0
        %2331 = vmatpush2.msra.mxu0 0.0
        %2332 = vmatprep.subr.mxu0 0.0
        %2333 = vmatpush2.msra.mxu0 0.0
        %2334 = vmatprep.subr.mxu0 0.0
        %2335 = vmatpush2.msra.mxu0 0.0
        %2336 = vmatprep.subr.mxu0 0.0
        %2337 = vmatpush2.msra.mxu0 0.0
        %2338 = vmatprep.subr.mxu0 0.0
        %2339 = vmatpush2.msra.mxu0 0.0
        %2340 = vmatprep.subr.mxu0 0.0
        %2341 = vmatpush2.msra.mxu0 0.0
        %2342 = vmatprep.subr.mxu0 0.0
        %2343 = vmatpush2.msra.mxu0 0.0
        %2344 = vmatprep.subr.mxu0 0.0
        %2345 = vmatpush2.msra.mxu0 0.0
        %2346 = vmatprep.mubr.f32.mxu0 0.0
        %v2347 = vand.u32 %v2107, 4294901760
        %v2348 = vsub.f32 %v2107, %v2347
        %2349 = vmatmul.mubr.f32.gmra.mxu0 %v2348
        %v2350 = vpop.f32.mrf.mxu0
        %v2351 = vadd.f32 %v2274, %v2350
        %v2352 = vpop.f32.mrf.mxu0
        %v2353 = vadd.f32 %v2276, %v2352
        %2354 = vdwg.mxu0
        %2355 = vmatprep.subr.mxu0 0.0
        %2356 = vmatpush1.msra.mxu0 0.0
        %2357 = vmatprep.subr.mxu0 0.0
        %2358 = vmatpush1.msra.mxu0 0.0
        %2359 = vmatprep.subr.mxu0 0.0
        %2360 = vmatpush1.msra.mxu0 0.0
        %2361 = vmatprep.subr.mxu0 0.0
        %2362 = vmatpush1.msra.mxu0 0.0
        %2363 = vmatprep.subr.mxu0 0.0
        %2364 = vmatpush1.msra.mxu0 0.0
        %2365 = vmatprep.subr.mxu0 0.0
        %2366 = vmatpush1.msra.mxu0 0.0
        %2367 = vmatprep.subr.mxu0 0.0
        %2368 = vmatpush1.msra.mxu0 0.0
        %2369 = vmatprep.subr.mxu0 0.0
        %2370 = vmatpush1.msra.mxu0 0.0
        %2371 = vmatprep.subr.mxu0 0.0
        %2372 = vmatpush1.msra.mxu0 0.0
        %2373 = vmatprep.subr.mxu0 0.0
        %2374 = vmatpush1.msra.mxu0 0.0
        %2375 = vmatprep.subr.mxu0 0.0
        %2376 = vmatpush1.msra.mxu0 0.0
        %2377 = vmatprep.subr.mxu0 0.0
        %2378 = vmatpush1.msra.mxu0 0.0
        %2379 = vmatprep.subr.mxu0 0.0
        %2380 = vmatpush1.msra.mxu0 0.0
        %2381 = vmatprep.subr.mxu0 0.0
        %2382 = vmatpush1.msra.mxu0 0.0
        %2383 = vmatprep.subr.mxu0 0.0
        %2384 = vmatpush1.msra.mxu0 0.0
        %v2385 = vand.u32 %v2112, 4294901760
        %2386 = vmatprep.subr.mxu0 %v2385
        %v2387 = vand.u32 %v2110, 4294901760
        %2388 = vmatpush1.msra.mxu0 %v2387
        %2389 = vmatprep.subr.mxu0 0.0
        %2390 = vmatpush2.msra.mxu0 0.0
        %2391 = vmatprep.subr.mxu0 0.0
        %2392 = vmatpush2.msra.mxu0 0.0
        %2393 = vmatprep.subr.mxu0 0.0
        %2394 = vmatpush2.msra.mxu0 0.0
        %2395 = vmatprep.subr.mxu0 0.0
        %2396 = vmatpush2.msra.mxu0 0.0
        %2397 = vmatprep.subr.mxu0 0.0
        %2398 = vmatpush2.msra.mxu0 0.0
        %2399 = vmatprep.subr.mxu0 0.0
        %2400 = vmatpush2.msra.mxu0 0.0
        %2401 = vmatprep.subr.mxu0 0.0
        %2402 = vmatpush2.msra.mxu0 0.0
        %2403 = vmatprep.subr.mxu0 0.0
        %2404 = vmatpush2.msra.mxu0 0.0
        %2405 = vmatprep.subr.mxu0 0.0
        %2406 = vmatpush2.msra.mxu0 0.0
        %2407 = vmatprep.subr.mxu0 0.0
        %2408 = vmatpush2.msra.mxu0 0.0
        %2409 = vmatprep.subr.mxu0 0.0
        %2410 = vmatpush2.msra.mxu0 0.0
        %2411 = vmatprep.subr.mxu0 0.0
        %2412 = vmatpush2.msra.mxu0 0.0
        %2413 = vmatprep.subr.mxu0 0.0
        %2414 = vmatpush2.msra.mxu0 0.0
        %2415 = vmatprep.subr.mxu0 0.0
        %2416 = vmatpush2.msra.mxu0 0.0
        %2417 = vmatprep.subr.mxu0 0.0
        %2418 = vmatpush2.msra.mxu0 0.0
        %2419 = vmatprep.subr.mxu0 0.0
        %2420 = vmatpush2.msra.mxu0 0.0
        %2421 = vmatprep.mubr.f32.mxu0 0.0
        %v2422 = vand.u32 %v2107, 4294901760
        %v2423 = vsub.f32 %v2107, %v2422
        %v2424 = vand.u32 %v2423, 4294901760
        %2425 = vmatmul.mubr.f32.gmra.mxu0 %v2424
        %v2426 = vpop.f32.mrf.mxu0
        %v2427 = vadd.f32 %v2351, %v2426
        %v2428 = vpop.f32.mrf.mxu0
        %v2429 = vadd.f32 %v2353, %v2428
        %2430 = vdwg.mxu0
        %2431 = vmatprep.subr.mxu0 0.0
        %2432 = vmatpush1.msra.mxu0 0.0
        %2433 = vmatprep.subr.mxu0 0.0
        %2434 = vmatpush1.msra.mxu0 0.0
        %2435 = vmatprep.subr.mxu0 0.0
        %2436 = vmatpush1.msra.mxu0 0.0
        %2437 = vmatprep.subr.mxu0 0.0
        %2438 = vmatpush1.msra.mxu0 0.0
        %2439 = vmatprep.subr.mxu0 0.0
        %2440 = vmatpush1.msra.mxu0 0.0
        %2441 = vmatprep.subr.mxu0 0.0
        %2442 = vmatpush1.msra.mxu0 0.0
        %2443 = vmatprep.subr.mxu0 0.0
        %2444 = vmatpush1.msra.mxu0 0.0
        %2445 = vmatprep.subr.mxu0 0.0
        %2446 = vmatpush1.msra.mxu0 0.0
        %2447 = vmatprep.subr.mxu0 0.0
        %2448 = vmatpush1.msra.mxu0 0.0
        %2449 = vmatprep.subr.mxu0 0.0
        %2450 = vmatpush1.msra.mxu0 0.0
        %2451 = vmatprep.subr.mxu0 0.0
        %2452 = vmatpush1.msra.mxu0 0.0
        %2453 = vmatprep.subr.mxu0 0.0
        %2454 = vmatpush1.msra.mxu0 0.0
        %2455 = vmatprep.subr.mxu0 0.0
        %2456 = vmatpush1.msra.mxu0 0.0
        %2457 = vmatprep.subr.mxu0 0.0
        %2458 = vmatpush1.msra.mxu0 0.0
        %2459 = vmatprep.subr.mxu0 0.0
        %2460 = vmatpush1.msra.mxu0 0.0
        %v2461 = vand.u32 %v2112, 4294901760
        %v2462 = vsub.f32 %v2112, %v2461
        %v2463 = vand.u32 %v2462, 4294901760
        %2464 = vmatprep.subr.mxu0 %v2463
        %v2465 = vand.u32 %v2110, 4294901760
        %v2466 = vsub.f32 %v2110, %v2465
        %v2467 = vand.u32 %v2466, 4294901760
        %2468 = vmatpush1.msra.mxu0 %v2467
        %2469 = vmatprep.subr.mxu0 0.0
        %2470 = vmatpush2.msra.mxu0 0.0
        %2471 = vmatprep.subr.mxu0 0.0
        %2472 = vmatpush2.msra.mxu0 0.0
        %2473 = vmatprep.subr.mxu0 0.0
        %2474 = vmatpush2.msra.mxu0 0.0
        %2475 = vmatprep.subr.mxu0 0.0
        %2476 = vmatpush2.msra.mxu0 0.0
        %2477 = vmatprep.subr.mxu0 0.0
        %2478 = vmatpush2.msra.mxu0 0.0
        %2479 = vmatprep.subr.mxu0 0.0
        %2480 = vmatpush2.msra.mxu0 0.0
        %2481 = vmatprep.subr.mxu0 0.0
        %2482 = vmatpush2.msra.mxu0 0.0
        %2483 = vmatprep.subr.mxu0 0.0
        %2484 = vmatpush2.msra.mxu0 0.0
        %2485 = vmatprep.subr.mxu0 0.0
        %2486 = vmatpush2.msra.mxu0 0.0
        %2487 = vmatprep.subr.mxu0 0.0
        %2488 = vmatpush2.msra.mxu0 0.0
        %2489 = vmatprep.subr.mxu0 0.0
        %2490 = vmatpush2.msra.mxu0 0.0
        %2491 = vmatprep.subr.mxu0 0.0
        %2492 = vmatpush2.msra.mxu0 0.0
        %2493 = vmatprep.subr.mxu0 0.0
        %2494 = vmatpush2.msra.mxu0 0.0
        %2495 = vmatprep.subr.mxu0 0.0
        %2496 = vmatpush2.msra.mxu0 0.0
        %2497 = vmatprep.subr.mxu0 0.0
        %2498 = vmatpush2.msra.mxu0 0.0
        %2499 = vmatprep.subr.mxu0 0.0
        %2500 = vmatpush2.msra.mxu0 0.0
        %2501 = vmatprep.mubr.f32.mxu0 0.0
        %v2502 = vand.u32 %v2107, 4294901760
        %2503 = vmatmul.mubr.f32.gmra.mxu0 %v2502
        %v2504 = vpop.f32.mrf.mxu0
        %v2505 = vadd.f32 %v2427, %v2504
        %v2506 = vpop.f32.mrf.mxu0
        %v2507 = vadd.f32 %v2429, %v2506
        %2508 = vdwg.mxu0
        %2509 = vmatprep.subr.mxu0 0.0
        %2510 = vmatpush1.msra.mxu0 0.0
        %2511 = vmatprep.subr.mxu0 0.0
        %2512 = vmatpush1.msra.mxu0 0.0
        %2513 = vmatprep.subr.mxu0 0.0
        %2514 = vmatpush1.msra.mxu0 0.0
        %2515 = vmatprep.subr.mxu0 0.0
        %2516 = vmatpush1.msra.mxu0 0.0
        %2517 = vmatprep.subr.mxu0 0.0
        %2518 = vmatpush1.msra.mxu0 0.0
        %2519 = vmatprep.subr.mxu0 0.0
        %2520 = vmatpush1.msra.mxu0 0.0
        %2521 = vmatprep.subr.mxu0 0.0
        %2522 = vmatpush1.msra.mxu0 0.0
        %2523 = vmatprep.subr.mxu0 0.0
        %2524 = vmatpush1.msra.mxu0 0.0
        %2525 = vmatprep.subr.mxu0 0.0
        %2526 = vmatpush1.msra.mxu0 0.0
        %2527 = vmatprep.subr.mxu0 0.0
        %2528 = vmatpush1.msra.mxu0 0.0
        %2529 = vmatprep.subr.mxu0 0.0
        %2530 = vmatpush1.msra.mxu0 0.0
        %2531 = vmatprep.subr.mxu0 0.0
        %2532 = vmatpush1.msra.mxu0 0.0
        %2533 = vmatprep.subr.mxu0 0.0
        %2534 = vmatpush1.msra.mxu0 0.0
        %2535 = vmatprep.subr.mxu0 0.0
        %2536 = vmatpush1.msra.mxu0 0.0
        %2537 = vmatprep.subr.mxu0 0.0
        %2538 = vmatpush1.msra.mxu0 0.0
        %v2539 = vand.u32 %v2112, 4294901760
        %2540 = vmatprep.subr.mxu0 %v2539
        %v2541 = vand.u32 %v2110, 4294901760
        %2542 = vmatpush1.msra.mxu0 %v2541
        %2543 = vmatprep.subr.mxu0 0.0
        %2544 = vmatpush2.msra.mxu0 0.0
        %2545 = vmatprep.subr.mxu0 0.0
        %2546 = vmatpush2.msra.mxu0 0.0
        %2547 = vmatprep.subr.mxu0 0.0
        %2548 = vmatpush2.msra.mxu0 0.0
        %2549 = vmatprep.subr.mxu0 0.0
        %2550 = vmatpush2.msra.mxu0 0.0
        %2551 = vmatprep.subr.mxu0 0.0
        %2552 = vmatpush2.msra.mxu0 0.0
        %2553 = vmatprep.subr.mxu0 0.0
        %2554 = vmatpush2.msra.mxu0 0.0
        %2555 = vmatprep.subr.mxu0 0.0
        %2556 = vmatpush2.msra.mxu0 0.0
        %2557 = vmatprep.subr.mxu0 0.0
        %2558 = vmatpush2.msra.mxu0 0.0
        %2559 = vmatprep.subr.mxu0 0.0
        %2560 = vmatpush2.msra.mxu0 0.0
        %2561 = vmatprep.subr.mxu0 0.0
        %2562 = vmatpush2.msra.mxu0 0.0
        %2563 = vmatprep.subr.mxu0 0.0
        %2564 = vmatpush2.msra.mxu0 0.0
        %2565 = vmatprep.subr.mxu0 0.0
        %2566 = vmatpush2.msra.mxu0 0.0
        %2567 = vmatprep.subr.mxu0 0.0
        %2568 = vmatpush2.msra.mxu0 0.0
        %2569 = vmatprep.subr.mxu0 0.0
        %2570 = vmatpush2.msra.mxu0 0.0
        %2571 = vmatprep.subr.mxu0 0.0
        %2572 = vmatpush2.msra.mxu0 0.0
        %2573 = vmatprep.subr.mxu0 0.0
        %2574 = vmatpush2.msra.mxu0 0.0
        %2575 = vmatprep.mubr.f32.mxu0 0.0
        %v2576 = vand.u32 %v2107, 4294901760
        %2577 = vmatmul.mubr.f32.gmra.mxu0 %v2576
        %v2578 = vpop.f32.mrf.mxu0
        %v2579 = vadd.f32 %v2505, %v2578
        %v2580 = vpop.f32.mrf.mxu0
        %v2581 = vadd.f32 %v2507, %v2580
        %2582 = vdwg.mxu0
        %2583 = vmatprep.subr.mxu0 0.0
        %2584 = vmatpush1.msra.mxu0 0.0
        %2585 = vmatprep.subr.mxu0 0.0
        %2586 = vmatpush1.msra.mxu0 0.0
        %2587 = vmatprep.subr.mxu0 0.0
        %2588 = vmatpush1.msra.mxu0 0.0
        %2589 = vmatprep.subr.mxu0 0.0
        %2590 = vmatpush1.msra.mxu0 0.0
        %2591 = vmatprep.subr.mxu0 0.0
        %2592 = vmatpush1.msra.mxu0 0.0
        %2593 = vmatprep.subr.mxu0 0.0
        %2594 = vmatpush1.msra.mxu0 0.0
        %2595 = vmatprep.subr.mxu0 0.0
        %2596 = vmatpush1.msra.mxu0 0.0
        %2597 = vmatprep.subr.mxu0 0.0
        %2598 = vmatpush1.msra.mxu0 0.0
        %2599 = vmatprep.subr.mxu0 0.0
        %2600 = vmatpush1.msra.mxu0 0.0
        %2601 = vmatprep.subr.mxu0 0.0
        %2602 = vmatpush1.msra.mxu0 0.0
        %2603 = vmatprep.subr.mxu0 0.0
        %2604 = vmatpush1.msra.mxu0 0.0
        %2605 = vmatprep.subr.mxu0 0.0
        %2606 = vmatpush1.msra.mxu0 0.0
        %2607 = vmatprep.subr.mxu0 0.0
        %2608 = vmatpush1.msra.mxu0 0.0
        %2609 = vmatprep.subr.mxu0 0.0
        %2610 = vmatpush1.msra.mxu0 0.0
        %2611 = vmatprep.subr.mxu0 0.0
        %2612 = vmatpush1.msra.mxu0 0.0
        %v2613 = vand.u32 %v2116, 4294901760
        %2614 = vmatprep.subr.mxu0 %v2613
        %v2615 = vand.u32 %v2114, 4294901760
        %2616 = vmatpush1.msra.mxu0 %v2615
        %2617 = vmatprep.subr.mxu0 0.0
        %2618 = vmatpush2.msra.mxu0 0.0
        %2619 = vmatprep.subr.mxu0 0.0
        %2620 = vmatpush2.msra.mxu0 0.0
        %2621 = vmatprep.subr.mxu0 0.0
        %2622 = vmatpush2.msra.mxu0 0.0
        %2623 = vmatprep.subr.mxu0 0.0
        %2624 = vmatpush2.msra.mxu0 0.0
        %2625 = vmatprep.subr.mxu0 0.0
        %2626 = vmatpush2.msra.mxu0 0.0
        %2627 = vmatprep.subr.mxu0 0.0
        %2628 = vmatpush2.msra.mxu0 0.0
        %2629 = vmatprep.subr.mxu0 0.0
        %2630 = vmatpush2.msra.mxu0 0.0
        %2631 = vmatprep.subr.mxu0 0.0
        %2632 = vmatpush2.msra.mxu0 0.0
        %2633 = vmatprep.subr.mxu0 0.0
        %2634 = vmatpush2.msra.mxu0 0.0
        %2635 = vmatprep.subr.mxu0 0.0
        %2636 = vmatpush2.msra.mxu0 0.0
        %2637 = vmatprep.subr.mxu0 0.0
        %2638 = vmatpush2.msra.mxu0 0.0
        %2639 = vmatprep.subr.mxu0 0.0
        %2640 = vmatpush2.msra.mxu0 0.0
        %2641 = vmatprep.subr.mxu0 0.0
        %2642 = vmatpush2.msra.mxu0 0.0
        %2643 = vmatprep.subr.mxu0 0.0
        %2644 = vmatpush2.msra.mxu0 0.0
        %2645 = vmatprep.subr.mxu0 0.0
        %2646 = vmatpush2.msra.mxu0 0.0
        %2647 = vmatprep.subr.mxu0 0.0
        %2648 = vmatpush2.msra.mxu0 0.0
        %2649 = vmatprep.mubr.f32.mxu0 0.0
        %v2650 = vand.u32 %v2107, 4294901760
        %v2651 = vsub.f32 %v2107, %v2650
        %v2652 = vand.u32 %v2651, 4294901760
        %v2653 = vsub.f32 %v2651, %v2652
        %v2654 = vand.u32 %v2653, 4294901760
        %2655 = vmatmul.mubr.f32.gmra.mxu0 %v2654
        %v2656 = vpop.f32.mrf.mxu0
        %v2657 = vadd.f32 %v2097, %v2656
        %v2658 = vpop.f32.mrf.mxu0
        %v2659 = vadd.f32 %v2099, %v2658
        %2660 = vdwg.mxu0
        %2661 = vmatprep.subr.mxu0 0.0
        %2662 = vmatpush1.msra.mxu0 0.0
        %2663 = vmatprep.subr.mxu0 0.0
        %2664 = vmatpush1.msra.mxu0 0.0
        %2665 = vmatprep.subr.mxu0 0.0
        %2666 = vmatpush1.msra.mxu0 0.0
        %2667 = vmatprep.subr.mxu0 0.0
        %2668 = vmatpush1.msra.mxu0 0.0
        %2669 = vmatprep.subr.mxu0 0.0
        %2670 = vmatpush1.msra.mxu0 0.0
        %2671 = vmatprep.subr.mxu0 0.0
        %2672 = vmatpush1.msra.mxu0 0.0
        %2673 = vmatprep.subr.mxu0 0.0
        %2674 = vmatpush1.msra.mxu0 0.0
        %2675 = vmatprep.subr.mxu0 0.0
        %2676 = vmatpush1.msra.mxu0 0.0
        %2677 = vmatprep.subr.mxu0 0.0
        %2678 = vmatpush1.msra.mxu0 0.0
        %2679 = vmatprep.subr.mxu0 0.0
        %2680 = vmatpush1.msra.mxu0 0.0
        %2681 = vmatprep.subr.mxu0 0.0
        %2682 = vmatpush1.msra.mxu0 0.0
        %2683 = vmatprep.subr.mxu0 0.0
        %2684 = vmatpush1.msra.mxu0 0.0
        %2685 = vmatprep.subr.mxu0 0.0
        %2686 = vmatpush1.msra.mxu0 0.0
        %2687 = vmatprep.subr.mxu0 0.0
        %2688 = vmatpush1.msra.mxu0 0.0
        %2689 = vmatprep.subr.mxu0 0.0
        %2690 = vmatpush1.msra.mxu0 0.0
        %v2691 = vand.u32 %v2116, 4294901760
        %v2692 = vsub.f32 %v2116, %v2691
        %v2693 = vand.u32 %v2692, 4294901760
        %v2694 = vsub.f32 %v2692, %v2693
        %v2695 = vand.u32 %v2694, 4294901760
        %2696 = vmatprep.subr.mxu0 %v2695
        %v2697 = vand.u32 %v2114, 4294901760
        %v2698 = vsub.f32 %v2114, %v2697
        %v2699 = vand.u32 %v2698, 4294901760
        %v2700 = vsub.f32 %v2698, %v2699
        %v2701 = vand.u32 %v2700, 4294901760
        %2702 = vmatpush1.msra.mxu0 %v2701
        %2703 = vmatprep.subr.mxu0 0.0
        %2704 = vmatpush2.msra.mxu0 0.0
        %2705 = vmatprep.subr.mxu0 0.0
        %2706 = vmatpush2.msra.mxu0 0.0
        %2707 = vmatprep.subr.mxu0 0.0
        %2708 = vmatpush2.msra.mxu0 0.0
        %2709 = vmatprep.subr.mxu0 0.0
        %2710 = vmatpush2.msra.mxu0 0.0
        %2711 = vmatprep.subr.mxu0 0.0
        %2712 = vmatpush2.msra.mxu0 0.0
        %2713 = vmatprep.subr.mxu0 0.0
        %2714 = vmatpush2.msra.mxu0 0.0
        %2715 = vmatprep.subr.mxu0 0.0
        %2716 = vmatpush2.msra.mxu0 0.0
        %2717 = vmatprep.subr.mxu0 0.0
        %2718 = vmatpush2.msra.mxu0 0.0
        %2719 = vmatprep.subr.mxu0 0.0
        %2720 = vmatpush2.msra.mxu0 0.0
        %2721 = vmatprep.subr.mxu0 0.0
        %2722 = vmatpush2.msra.mxu0 0.0
        %2723 = vmatprep.subr.mxu0 0.0
        %2724 = vmatpush2.msra.mxu0 0.0
        %2725 = vmatprep.subr.mxu0 0.0
        %2726 = vmatpush2.msra.mxu0 0.0
        %2727 = vmatprep.subr.mxu0 0.0
        %2728 = vmatpush2.msra.mxu0 0.0
        %2729 = vmatprep.subr.mxu0 0.0
        %2730 = vmatpush2.msra.mxu0 0.0
        %2731 = vmatprep.subr.mxu0 0.0
        %2732 = vmatpush2.msra.mxu0 0.0
        %2733 = vmatprep.subr.mxu0 0.0
        %2734 = vmatpush2.msra.mxu0 0.0
        %2735 = vmatprep.mubr.f32.mxu0 0.0
        %v2736 = vand.u32 %v2107, 4294901760
        %2737 = vmatmul.mubr.f32.gmra.mxu0 %v2736
        %v2738 = vpop.f32.mrf.mxu0
        %v2739 = vadd.f32 %v2657, %v2738
        %v2740 = vpop.f32.mrf.mxu0
        %v2741 = vadd.f32 %v2659, %v2740
        %2742 = vdwg.mxu0
        %2743 = vmatprep.subr.mxu0 0.0
        %2744 = vmatpush1.msra.mxu0 0.0
        %2745 = vmatprep.subr.mxu0 0.0
        %2746 = vmatpush1.msra.mxu0 0.0
        %2747 = vmatprep.subr.mxu0 0.0
        %2748 = vmatpush1.msra.mxu0 0.0
        %2749 = vmatprep.subr.mxu0 0.0
        %2750 = vmatpush1.msra.mxu0 0.0
        %2751 = vmatprep.subr.mxu0 0.0
        %2752 = vmatpush1.msra.mxu0 0.0
        %2753 = vmatprep.subr.mxu0 0.0
        %2754 = vmatpush1.msra.mxu0 0.0
        %2755 = vmatprep.subr.mxu0 0.0
        %2756 = vmatpush1.msra.mxu0 0.0
        %2757 = vmatprep.subr.mxu0 0.0
        %2758 = vmatpush1.msra.mxu0 0.0
        %2759 = vmatprep.subr.mxu0 0.0
        %2760 = vmatpush1.msra.mxu0 0.0
        %2761 = vmatprep.subr.mxu0 0.0
        %2762 = vmatpush1.msra.mxu0 0.0
        %2763 = vmatprep.subr.mxu0 0.0
        %2764 = vmatpush1.msra.mxu0 0.0
        %2765 = vmatprep.subr.mxu0 0.0
        %2766 = vmatpush1.msra.mxu0 0.0
        %2767 = vmatprep.subr.mxu0 0.0
        %2768 = vmatpush1.msra.mxu0 0.0
        %2769 = vmatprep.subr.mxu0 0.0
        %2770 = vmatpush1.msra.mxu0 0.0
        %2771 = vmatprep.subr.mxu0 0.0
        %2772 = vmatpush1.msra.mxu0 0.0
        %v2773 = vand.u32 %v2116, 4294901760
        %v2774 = vsub.f32 %v2116, %v2773
        %2775 = vmatprep.subr.mxu0 %v2774
        %v2776 = vand.u32 %v2114, 4294901760
        %v2777 = vsub.f32 %v2114, %v2776
        %2778 = vmatpush1.msra.mxu0 %v2777
        %2779 = vmatprep.subr.mxu0 0.0
        %2780 = vmatpush2.msra.mxu0 0.0
        %2781 = vmatprep.subr.mxu0 0.0
        %2782 = vmatpush2.msra.mxu0 0.0
        %2783 = vmatprep.subr.mxu0 0.0
        %2784 = vmatpush2.msra.mxu0 0.0
        %2785 = vmatprep.subr.mxu0 0.0
        %2786 = vmatpush2.msra.mxu0 0.0
        %2787 = vmatprep.subr.mxu0 0.0
        %2788 = vmatpush2.msra.mxu0 0.0
        %2789 = vmatprep.subr.mxu0 0.0
        %2790 = vmatpush2.msra.mxu0 0.0
        %2791 = vmatprep.subr.mxu0 0.0
        %2792 = vmatpush2.msra.mxu0 0.0
        %2793 = vmatprep.subr.mxu0 0.0
        %2794 = vmatpush2.msra.mxu0 0.0
        %2795 = vmatprep.subr.mxu0 0.0
        %2796 = vmatpush2.msra.mxu0 0.0
        %2797 = vmatprep.subr.mxu0 0.0
        %2798 = vmatpush2.msra.mxu0 0.0
        %2799 = vmatprep.subr.mxu0 0.0
        %2800 = vmatpush2.msra.mxu0 0.0
        %2801 = vmatprep.subr.mxu0 0.0
        %2802 = vmatpush2.msra.mxu0 0.0
        %2803 = vmatprep.subr.mxu0 0.0
        %2804 = vmatpush2.msra.mxu0 0.0
        %2805 = vmatprep.subr.mxu0 0.0
        %2806 = vmatpush2.msra.mxu0 0.0
        %2807 = vmatprep.subr.mxu0 0.0
        %2808 = vmatpush2.msra.mxu0 0.0
        %2809 = vmatprep.subr.mxu0 0.0
        %2810 = vmatpush2.msra.mxu0 0.0
        %2811 = vmatprep.mubr.f32.mxu0 0.0
        %v2812 = vand.u32 %v2107, 4294901760
        %v2813 = vsub.f32 %v2107, %v2812
        %2814 = vmatmul.mubr.f32.gmra.mxu0 %v2813
        %v2815 = vpop.f32.mrf.mxu0
        %v2816 = vadd.f32 %v2739, %v2815
        %v2817 = vpop.f32.mrf.mxu0
        %v2818 = vadd.f32 %v2741, %v2817
        %2819 = vdwg.mxu0
        %2820 = vmatprep.subr.mxu0 0.0
        %2821 = vmatpush1.msra.mxu0 0.0
        %2822 = vmatprep.subr.mxu0 0.0
        %2823 = vmatpush1.msra.mxu0 0.0
        %2824 = vmatprep.subr.mxu0 0.0
        %2825 = vmatpush1.msra.mxu0 0.0
        %2826 = vmatprep.subr.mxu0 0.0
        %2827 = vmatpush1.msra.mxu0 0.0
        %2828 = vmatprep.subr.mxu0 0.0
        %2829 = vmatpush1.msra.mxu0 0.0
        %2830 = vmatprep.subr.mxu0 0.0
        %2831 = vmatpush1.msra.mxu0 0.0
        %2832 = vmatprep.subr.mxu0 0.0
        %2833 = vmatpush1.msra.mxu0 0.0
        %2834 = vmatprep.subr.mxu0 0.0
        %2835 = vmatpush1.msra.mxu0 0.0
        %2836 = vmatprep.subr.mxu0 0.0
        %2837 = vmatpush1.msra.mxu0 0.0
        %2838 = vmatprep.subr.mxu0 0.0
        %2839 = vmatpush1.msra.mxu0 0.0
        %2840 = vmatprep.subr.mxu0 0.0
        %2841 = vmatpush1.msra.mxu0 0.0
        %2842 = vmatprep.subr.mxu0 0.0
        %2843 = vmatpush1.msra.mxu0 0.0
        %2844 = vmatprep.subr.mxu0 0.0
        %2845 = vmatpush1.msra.mxu0 0.0
        %2846 = vmatprep.subr.mxu0 0.0
        %2847 = vmatpush1.msra.mxu0 0.0
        %2848 = vmatprep.subr.mxu0 0.0
        %2849 = vmatpush1.msra.mxu0 0.0
        %v2850 = vand.u32 %v2116, 4294901760
        %2851 = vmatprep.subr.mxu0 %v2850
        %v2852 = vand.u32 %v2114, 4294901760
        %2853 = vmatpush1.msra.mxu0 %v2852
        %2854 = vmatprep.subr.mxu0 0.0
        %2855 = vmatpush2.msra.mxu0 0.0
        %2856 = vmatprep.subr.mxu0 0.0
        %2857 = vmatpush2.msra.mxu0 0.0
        %2858 = vmatprep.subr.mxu0 0.0
        %2859 = vmatpush2.msra.mxu0 0.0
        %2860 = vmatprep.subr.mxu0 0.0
        %2861 = vmatpush2.msra.mxu0 0.0
        %2862 = vmatprep.subr.mxu0 0.0
        %2863 = vmatpush2.msra.mxu0 0.0
        %2864 = vmatprep.subr.mxu0 0.0
        %2865 = vmatpush2.msra.mxu0 0.0
        %2866 = vmatprep.subr.mxu0 0.0
        %2867 = vmatpush2.msra.mxu0 0.0
        %2868 = vmatprep.subr.mxu0 0.0
        %2869 = vmatpush2.msra.mxu0 0.0
        %2870 = vmatprep.subr.mxu0 0.0
        %2871 = vmatpush2.msra.mxu0 0.0
        %2872 = vmatprep.subr.mxu0 0.0
        %2873 = vmatpush2.msra.mxu0 0.0
        %2874 = vmatprep.subr.mxu0 0.0
        %2875 = vmatpush2.msra.mxu0 0.0
        %2876 = vmatprep.subr.mxu0 0.0
        %2877 = vmatpush2.msra.mxu0 0.0
        %2878 = vmatprep.subr.mxu0 0.0
        %2879 = vmatpush2.msra.mxu0 0.0
        %2880 = vmatprep.subr.mxu0 0.0
        %2881 = vmatpush2.msra.mxu0 0.0
        %2882 = vmatprep.subr.mxu0 0.0
        %2883 = vmatpush2.msra.mxu0 0.0
        %2884 = vmatprep.subr.mxu0 0.0
        %2885 = vmatpush2.msra.mxu0 0.0
        %2886 = vmatprep.mubr.f32.mxu0 0.0
        %v2887 = vand.u32 %v2107, 4294901760
        %v2888 = vsub.f32 %v2107, %v2887
        %v2889 = vand.u32 %v2888, 4294901760
        %2890 = vmatmul.mubr.f32.gmra.mxu0 %v2889
        %v2891 = vpop.f32.mrf.mxu0
        %v2892 = vadd.f32 %v2816, %v2891
        %v2893 = vpop.f32.mrf.mxu0
        %v2894 = vadd.f32 %v2818, %v2893
        %2895 = vdwg.mxu0
        %2896 = vmatprep.subr.mxu0 0.0
        %2897 = vmatpush1.msra.mxu0 0.0
        %2898 = vmatprep.subr.mxu0 0.0
        %2899 = vmatpush1.msra.mxu0 0.0
        %2900 = vmatprep.subr.mxu0 0.0
        %2901 = vmatpush1.msra.mxu0 0.0
        %2902 = vmatprep.subr.mxu0 0.0
        %2903 = vmatpush1.msra.mxu0 0.0
        %2904 = vmatprep.subr.mxu0 0.0
        %2905 = vmatpush1.msra.mxu0 0.0
        %2906 = vmatprep.subr.mxu0 0.0
        %2907 = vmatpush1.msra.mxu0 0.0
        %2908 = vmatprep.subr.mxu0 0.0
        %2909 = vmatpush1.msra.mxu0 0.0
        %2910 = vmatprep.subr.mxu0 0.0
        %2911 = vmatpush1.msra.mxu0 0.0
        %2912 = vmatprep.subr.mxu0 0.0
        %2913 = vmatpush1.msra.mxu0 0.0
        %2914 = vmatprep.subr.mxu0 0.0
        %2915 = vmatpush1.msra.mxu0 0.0
        %2916 = vmatprep.subr.mxu0 0.0
        %2917 = vmatpush1.msra.mxu0 0.0
        %2918 = vmatprep.subr.mxu0 0.0
        %2919 = vmatpush1.msra.mxu0 0.0
        %2920 = vmatprep.subr.mxu0 0.0
        %2921 = vmatpush1.msra.mxu0 0.0
        %2922 = vmatprep.subr.mxu0 0.0
        %2923 = vmatpush1.msra.mxu0 0.0
        %2924 = vmatprep.subr.mxu0 0.0
        %2925 = vmatpush1.msra.mxu0 0.0
        %v2926 = vand.u32 %v2116, 4294901760
        %v2927 = vsub.f32 %v2116, %v2926
        %v2928 = vand.u32 %v2927, 4294901760
        %2929 = vmatprep.subr.mxu0 %v2928
        %v2930 = vand.u32 %v2114, 4294901760
        %v2931 = vsub.f32 %v2114, %v2930
        %v2932 = vand.u32 %v2931, 4294901760
        %2933 = vmatpush1.msra.mxu0 %v2932
        %2934 = vmatprep.subr.mxu0 0.0
        %2935 = vmatpush2.msra.mxu0 0.0
        %2936 = vmatprep.subr.mxu0 0.0
        %2937 = vmatpush2.msra.mxu0 0.0
        %2938 = vmatprep.subr.mxu0 0.0
        %2939 = vmatpush2.msra.mxu0 0.0
        %2940 = vmatprep.subr.mxu0 0.0
        %2941 = vmatpush2.msra.mxu0 0.0
        %2942 = vmatprep.subr.mxu0 0.0
        %2943 = vmatpush2.msra.mxu0 0.0
        %2944 = vmatprep.subr.mxu0 0.0
        %2945 = vmatpush2.msra.mxu0 0.0
        %2946 = vmatprep.subr.mxu0 0.0
        %2947 = vmatpush2.msra.mxu0 0.0
        %2948 = vmatprep.subr.mxu0 0.0
        %2949 = vmatpush2.msra.mxu0 0.0
        %2950 = vmatprep.subr.mxu0 0.0
        %2951 = vmatpush2.msra.mxu0 0.0
        %2952 = vmatprep.subr.mxu0 0.0
        %2953 = vmatpush2.msra.mxu0 0.0
        %2954 = vmatprep.subr.mxu0 0.0
        %2955 = vmatpush2.msra.mxu0 0.0
        %2956 = vmatprep.subr.mxu0 0.0
        %2957 = vmatpush2.msra.mxu0 0.0
        %2958 = vmatprep.subr.mxu0 0.0
        %2959 = vmatpush2.msra.mxu0 0.0
        %2960 = vmatprep.subr.mxu0 0.0
        %2961 = vmatpush2.msra.mxu0 0.0
        %2962 = vmatprep.subr.mxu0 0.0
        %2963 = vmatpush2.msra.mxu0 0.0
        %2964 = vmatprep.subr.mxu0 0.0
        %2965 = vmatpush2.msra.mxu0 0.0
        %2966 = vmatprep.mubr.f32.mxu0 0.0
        %v2967 = vand.u32 %v2107, 4294901760
        %2968 = vmatmul.mubr.f32.gmra.mxu0 %v2967
        %v2969 = vpop.f32.mrf.mxu0
        %v2970 = vadd.f32 %v2892, %v2969
        %v2971 = vpop.f32.mrf.mxu0
        %v2972 = vadd.f32 %v2894, %v2971
        %2973 = vdwg.mxu0
        %2974 = vmatprep.subr.mxu0 0.0
        %2975 = vmatpush1.msra.mxu0 0.0
        %2976 = vmatprep.subr.mxu0 0.0
        %2977 = vmatpush1.msra.mxu0 0.0
        %2978 = vmatprep.subr.mxu0 0.0
        %2979 = vmatpush1.msra.mxu0 0.0
        %2980 = vmatprep.subr.mxu0 0.0
        %2981 = vmatpush1.msra.mxu0 0.0
        %2982 = vmatprep.subr.mxu0 0.0
        %2983 = vmatpush1.msra.mxu0 0.0
        %2984 = vmatprep.subr.mxu0 0.0
        %2985 = vmatpush1.msra.mxu0 0.0
        %2986 = vmatprep.subr.mxu0 0.0
        %2987 = vmatpush1.msra.mxu0 0.0
        %2988 = vmatprep.subr.mxu0 0.0
        %2989 = vmatpush1.msra.mxu0 0.0
        %2990 = vmatprep.subr.mxu0 0.0
        %2991 = vmatpush1.msra.mxu0 0.0
        %2992 = vmatprep.subr.mxu0 0.0
        %2993 = vmatpush1.msra.mxu0 0.0
        %2994 = vmatprep.subr.mxu0 0.0
        %2995 = vmatpush1.msra.mxu0 0.0
        %2996 = vmatprep.subr.mxu0 0.0
        %2997 = vmatpush1.msra.mxu0 0.0
        %2998 = vmatprep.subr.mxu0 0.0
        %2999 = vmatpush1.msra.mxu0 0.0
        %3000 = vmatprep.subr.mxu0 0.0
        %3001 = vmatpush1.msra.mxu0 0.0
        %3002 = vmatprep.subr.mxu0 0.0
        %3003 = vmatpush1.msra.mxu0 0.0
        %v3004 = vand.u32 %v2116, 4294901760
        %3005 = vmatprep.subr.mxu0 %v3004
        %v3006 = vand.u32 %v2114, 4294901760
        %3007 = vmatpush1.msra.mxu0 %v3006
        %3008 = vmatprep.subr.mxu0 0.0
        %3009 = vmatpush2.msra.mxu0 0.0
        %3010 = vmatprep.subr.mxu0 0.0
        %3011 = vmatpush2.msra.mxu0 0.0
        %3012 = vmatprep.subr.mxu0 0.0
        %3013 = vmatpush2.msra.mxu0 0.0
        %3014 = vmatprep.subr.mxu0 0.0
        %3015 = vmatpush2.msra.mxu0 0.0
        %3016 = vmatprep.subr.mxu0 0.0
        %3017 = vmatpush2.msra.mxu0 0.0
        %3018 = vmatprep.subr.mxu0 0.0
        %3019 = vmatpush2.msra.mxu0 0.0
        %3020 = vmatprep.subr.mxu0 0.0
        %3021 = vmatpush2.msra.mxu0 0.0
        %3022 = vmatprep.subr.mxu0 0.0
        %3023 = vmatpush2.msra.mxu0 0.0
        %3024 = vmatprep.subr.mxu0 0.0
        %3025 = vmatpush2.msra.mxu0 0.0
        %3026 = vmatprep.subr.mxu0 0.0
        %3027 = vmatpush2.msra.mxu0 0.0
        %3028 = vmatprep.subr.mxu0 0.0
        %3029 = vmatpush2.msra.mxu0 0.0
        %3030 = vmatprep.subr.mxu0 0.0
        %3031 = vmatpush2.msra.mxu0 0.0
        %3032 = vmatprep.subr.mxu0 0.0
        %3033 = vmatpush2.msra.mxu0 0.0
        %3034 = vmatprep.subr.mxu0 0.0
        %3035 = vmatpush2.msra.mxu0 0.0
        %3036 = vmatprep.subr.mxu0 0.0
        %3037 = vmatpush2.msra.mxu0 0.0
        %3038 = vmatprep.subr.mxu0 0.0
        %3039 = vmatpush2.msra.mxu0 0.0
        %3040 = vmatprep.mubr.f32.mxu0 0.0
        %v3041 = vand.u32 %v2107, 4294901760
        %3042 = vmatmul.mubr.f32.gmra.mxu0 %v3041
        %v3043 = vpop.f32.mrf.mxu0
        %v3044 = vadd.f32 %v2970, %v3043
        %v3045 = vpop.f32.mrf.mxu0
        %v3046 = vadd.f32 %v2972, %v3045
        %3047 = vdwg.mxu0
        %v3049 = vlaneseq
        %v3050 = vshrl.u32 %v3049, 7
        %v3051 = vsub.s32 0, %v3050
        %v3052 = vrot.slane %v390, %v3051
        %v3053 = vlaneseq
        %v3054 = vshrl.u32 %v3053, 7
        %v3055 = vsub.s32 1, %v3054
        %v3056 = vrot.slane %v390, %v3055
        %v3057 = vlaneseq
        %v3058 = vshrl.u32 %v3057, 7
        %v3059 = vsub.s32 2, %v3058
        %v3060 = vrot.slane %v390, %v3059
        %v3061 = vlaneseq
        %v3062 = vshrl.u32 %v3061, 7
        %v3063 = vsub.s32 3, %v3062
        %v3064 = vrot.slane %v390, %v3063
        %v3069 = vadd.f32 %v2579, %v3052
        %v3070 = vadd.f32 %v2581, %v3056
        %v3071 = vadd.f32 %v3044, %v3060
        %v3072 = vadd.f32 %v3046, %v3064
        %v3073 = vxor.u32 %v3069, 2147483648
        %v3074 = vmul.f32 %v3073, 1.442695
        %v3075 = vpow.pop %v3074
        %v3076 = vadd.f32 %v3075, 1.0
        %v3077 = vrcp.pop %v3076
        %v3078 = vmul.f32 1.0, %v3077
        %v3079 = vxor.u32 %v3070, 2147483648
        %v3080 = vmul.f32 %v3079, 1.442695
        %v3081 = vpow.pop %v3080
        %v3082 = vadd.f32 %v3081, 1.0
        %v3083 = vrcp.pop %v3082
        %v3084 = vmul.f32 1.0, %v3083
        %v3085 = vtanh.pop %v3071
        %v3086 = vxor.u32 %v3072, 2147483648
        %v3087 = vmul.f32 %v3086, 1.442695
        %v3088 = vpow.pop %v3087
        %v3089 = vadd.f32 %v3088, 1.0
        %v3090 = vrcp.pop %v3089
        %v3091 = vmul.f32 1.0, %v3090
        %v3092 = vmul.f32 %v3084, %v323
        %v3093 = vmul.f32 %v3078, %v3085
        %v3094 = vadd.f32 %v3092, %v3093
        %v3095 = vtanh.pop %v3094
        %v3096 = vmul.f32 %v3091, %v3095
        %3097 = vst [vmem:[#allocation6] sm:$0xff] %v3096
        %3098 = vst [vmem:[#allocation7] sm:$0xff] %v3094
        %v3099 = vld [vmem:[%s4] sm:$0x1]
        %v3100 = vld [vmem:[#allocation2] sm:$0x1]
        %v3102 = vlaneseq
        %v3103 = vshrl.u32 %v3102, 7
        %v3104 = vsub.s32 0, %v3103
        %v3105 = vrot.slane %v3099, %v3104
        %v3107 = vmul.f32 %v3096, %v3105
        %3108 = vadd.xlane.f32.xlu0 %v3107
        %v3109 = vpop.xlane.xlu0 %3108
        %v3111 = vlaneseq
        %v3112 = vshrl.u32 %v3111, 7
        %v3113 = vsub.s32 0, %v3112
        %v3114 = vrot.slane %v3100, %v3113
        %v3116 = vadd.f32 %v3109, %v3114
        %v3117 = vtanh.pop %v3116
        %vm3118 = vcmask 7168
        %3119 = vst.msk [vmem:[%s314] sm:$0xff] %vm3118, %v3117
        %p3120 = scmp.lt.s32.totalorder %s25, 7
        %s3121 = scalar_select %p3120, %s25, 7
        %s3122 = smul.addr %s3121, 8
        %s3123 = scalar_lea.vmem %s6, %s3122
        // Predicated region
        $region53: #{lstm_policy_rollout.1} parent=43 // pred_check
          %p3124 = pneg %p174
        $region54: #{lstm_policy_rollout.1} parent=43 // pred_check_branch
          %3126 = sbr.rel (%p3124) target = $region56
        $region55: #{lstm_policy_rollout.1} parent=43 // pred_region
          _
        $region56: #{lstm_policy_rollout.1} parent=43 // pred_fallthru
          _
        // Predicated region
        $region57: #{lstm_policy_rollout.1} parent=43 // pred_check
          %p3127 = pneg %p195
        $region58: #{lstm_policy_rollout.1} parent=43 // pred_check_branch
          %3129 = sbr.rel (%p3127) target = $region60
        $region59: #{lstm_policy_rollout.1} parent=43 // pred_region
          %s3131 = ssub.s32 128, 128
          %3132 = vsyncadd [#allocation5], %s3131
          %s3134 = sshll.u32 [#allocation6], 4
          %s3135 = int_to_ptr.vmem [resolvable:$true] %s3134
          %3137 = dma.vmem_to_hbm [thread:$0]  %s3135, 128, %s7, [#allocation5]
        $region60: #{lstm_policy_rollout.1} parent=43 // pred_fallthru
          _
        // Predicated region
        $region61: #{lstm_policy_rollout.1} parent=43 // pred_check
          %p3138 = pneg %p216
        $region62: #{lstm_policy_rollout.1} parent=43 // pred_check_branch
          %3140 = sbr.rel (%p3138) target = $region64
        $region63: #{lstm_policy_rollout.1} parent=43 // pred_region
          %s3142 = ssub.s32 128, 128
          %3143 = vsyncadd [#allocation8], %s3142
          %s3145 = sshll.u32 [#allocation7], 4
          %s3146 = int_to_ptr.vmem [resolvable:$true] %s3145
          %3148 = dma.vmem_to_hbm [thread:$0]  %s3146, 128, %s8, [#allocation8]
        $region64: #{lstm_policy_rollout.1} parent=43 // pred_fallthru
          _
        // Predicated region
        $region65: #{lstm_policy_rollout.1} parent=43 // pred_check
          %p3149 = pneg %p195
        $region66: #{lstm_policy_rollout.1} parent=43 // pred_check_branch
          %3151 = sbr.rel (%p3149) target = $region68
        $region67: #{lstm_policy_rollout.1} parent=43 // pred_region
          %3152 = dma.done [#allocation5], 128
        $region68: #{lstm_policy_rollout.1} parent=43 // pred_fallthru
          _
        // Predicated region
        $region69: #{lstm_policy_rollout.1} parent=43 // pred_check
          %p3153 = pneg %p216
        $region70: #{lstm_policy_rollout.1} parent=43 // pred_check_branch
          %3155 = sbr.rel (%p3153) target = $region72
        $region71: #{lstm_policy_rollout.1} parent=43 // pred_region
          %3156 = dma.done [#allocation8], 128
        $region72: #{lstm_policy_rollout.1} parent=43 // pred_fallthru
          _
      $region44: #{lstm_policy_rollout.1} parent=5 // pred_fallthru
        _
      %p3157 = scmp.le.s32.totalorder 2, %s20
      // Predicated region
      $region73: #{lstm_policy_rollout.1} parent=5 // pred_check
        %p3158 = pneg %p3157
      $region74: #{lstm_policy_rollout.1} parent=5 // pred_check_branch
        %3160 = sbr.rel (%p3158) target = $region76
      $region75: #{lstm_policy_rollout.1} parent=5 // pred_region
        %s3161 = ssub.s32 %s20, 2
        // Predicated region
        $region77: #{lstm_policy_rollout.1} parent=75 // pred_check
          %p3162 = pneg %p180
        $region78: #{lstm_policy_rollout.1} parent=75 // pred_check_branch
          %3164 = sbr.rel (%p3162) target = $region80
        $region79: #{lstm_policy_rollout.1} parent=75 // pred_region
          %p3165 = scmp.lt.s32.totalorder %s26, 7
          %s3166 = scalar_select %p3165, %s26, 7
          %s3167 = smul.addr %s3166, 8
          %s3168 = scalar_lea.vmem %s6, %s3167
        $region80: #{lstm_policy_rollout.1} parent=75 // pred_fallthru
          _
      $region76: #{lstm_policy_rollout.1} parent=5 // pred_fallthru
        _
    $region6: #{lstm_policy_rollout.1} parent=1 // loop_footer
      %s24 = sadd.s32 1, %s20
    $region7: #{lstm_policy_rollout.1} parent=1 // loop_footer_branch
      %19 = sbr.rel target = $region3
    $region8: #{lstm_policy_rollout.1} parent=1 // loop_exit
      _
    %3169 = vsyncpa [#allocation4], 1
    %s3170 = scalar_lea.sflag [#allocation4], 1
    %3171 = vsyncpa %s3170, 1
    %3172 = vsyncpa [#allocation5], 1
    %s3173 = scalar_lea.sflag [#allocation5], 1
    %3174 = vsyncpa %s3173, 1
    %3175 = vsyncpa [#allocation8], 1

</llo_original>
